<compile_context>
chip_gen: v7x
topology: tpu7x:2x2x1
jax: 0.10.0
libtpu: 0.0.40
codegen_flags: <defaults>
</compile_context>

<pallas_src>
import math

import jax
import jax.numpy as jnp
from jax.experimental import pallas as pl
from jax.experimental.pallas import tpu as pltpu

D_MODEL = 32
NUM_HEADS = 4
D_FF = 64
EPS = 1e-5                       # torch.nn.LayerNorm default
MATMUL_DTYPE = jnp.bfloat16      # MXU input dtype (f32 accumulate)
NEG_INF = -1e9                   # matches masked_fill(mask == 0, -1e9)


# ---------------------------------------------------------------------------
# Block sizing: VMEM-budgeted, single step for small problems (no forced split)
# ---------------------------------------------------------------------------
def _vmem_budget_bytes():
    try:
        return int(pltpu.get_tpu_info().vmem_capacity_bytes)
    except Exception:
        return 64 << 20          # conservative (v7x per-core VMEM)


def _pick_block_batch(batch, seq_q, seq_k, d_model, d_ff):
    # Approximate per-batch-element resident bytes per grid step:
    # x slab (f32) + enc slab (bf16) + int8 masks + output slab + activation headroom.
    per_b = (seq_q * d_model * 4
             + seq_k * d_model * 2
             + seq_q * seq_q + seq_q * seq_k
             + seq_q * d_model * 4
             + seq_q * max(3 * d_model, d_ff) * 4)
    budget = _vmem_budget_bytes() // 6        # headroom for double-buffering + scratch
    bt = max(1, min(batch, budget // max(per_b, 1)))
    bt = max(1, min(bt, 8192 // max(seq_q, 1)))   # cap matmul M at ~8k rows
    while batch % bt:
        bt -= 1
    if bt < batch:
        # When tiling, the folded (bt*S, D) row blocks must respect the (8,128) rule.
        while bt > 1 and ((bt * seq_q) % 8 or (bt * seq_k) % 8 or batch % bt):
            bt -= 1
        if (bt * seq_q) % 8 or (bt * seq_k) % 8:
            bt = batch
    return bt


# ---------------------------------------------------------------------------
# In-kernel helpers (traced inside the Pallas kernel body)
# ---------------------------------------------------------------------------
def _layer_norm(y, gamma, beta):
    mu = jnp.mean(y, axis=-1, keepdims=True)
    var = jnp.mean(jnp.square(y - mu), axis=-1, keepdims=True)   # biased, like torch
    return (y - mu) * jax.lax.rsqrt(var + EPS) * gamma + beta


def _attention(q2, k2, v2, wo, mask_bias, bt, sq, sk):
    """Multi-head attention core + single fused output projection.

    q2 (pre-scaled by 1/sqrt(dk)): (bt*sq, D); k2/v2: (bt*sk, D), f32.
    wo: (D, D) in the matmul dtype.  mask_bias: (bt, sq, sk) f32 additive bias
    (0 keep / -1e9 masked), computed once by the caller (hoisted out of the loop).
    Head contexts are written back onto their lane range and projected with one
    K=D matmul (equivalent to torch's head-concat followed by W_o).
    """
    d = q2.shape[-1]
    dk = d // NUM_HEADS
    mdt = wo.dtype
    ctx = []
    for h in range(NUM_HEADS):                      # static unroll (NUM_HEADS is small)
        lo, hi = h * dk, (h + 1) * dk
        qh = q2[:, lo:hi].reshape(bt, sq, dk).astype(mdt)
        kh = k2[:, lo:hi].reshape(bt, sk, dk).astype(mdt)
        vh = v2[:, lo:hi].reshape(bt, sk, dk).astype(mdt)
        # scores: contract on d_k directly, batched over the folded batch dim
        s = jnp.einsum('bqd,bkd->bqk', qh, kh,
                       preferred_element_type=jnp.float32)
        s = s + mask_bias
        s = s - jnp.max(s, axis=-1, keepdims=True)
        p = jnp.exp(s)
        p = p * pl.reciprocal(jnp.sum(p, axis=-1, keepdims=True), approx=True)
        oh = jnp.einsum('bqk,bkd->bqd', p.astype(mdt), vh,
                        preferred_element_type=jnp.float32)
        ctx.append(oh.reshape(bt * sq, dk))
    ctx = jnp.concatenate(ctx, axis=-1).astype(mdt)     # (bt*sq, D), heads on lanes
    return jnp.dot(ctx, wo, preferred_element_type=jnp.float32)


# ---------------------------------------------------------------------------
# Pallas kernel: one grid step = one block of batch elements, resident in VMEM
# ---------------------------------------------------------------------------
def decoder_layer_kernel(
    x_ref, enc_ref, tgt_ref, src_ref,
    sa_wqkv_ref, sa_wo_ref, ca_wq_ref, ca_wkv_ref, ca_wo_ref, w1_ref, w2_ref,
    pk_ref,
    out_ref,
):
    bt, sq, sk = src_ref.shape
    d = x_ref.shape[-1]
    dff = w1_ref.shape[-1]
    mdt = sa_wqkv_ref.dtype

    x = x_ref[...]                       # (bt*sq, d) f32, token-major (residual path)
    enc = enc_ref[...]                   # (bt*sk, d) already in the matmul dtype

    # int8 masks -> additive f32 bias, computed ONCE per attention (hoisted).
    tgt_bias = jnp.where(tgt_ref[...].astype(jnp.float32) == 0.0, NEG_INF, 0.0)
    src_bias = jnp.where(src_ref[...].astype(jnp.float32) == 0.0, NEG_INF, 0.0)

    # Packed biases + LayerNorm params (single f32 slab; every slice starts at lane 0).
    pk = pk_ref[...]
    sa_bqkv = pk[0:1, :3 * d]
    sa_bo   = pk[1:2, :d]
    ca_bq   = pk[2:3, :d]
    ca_bkv  = pk[3:4, :2 * d]
    ca_bo   = pk[4:5, :d]
    b1      = pk[5:6, :dff]
    b2      = pk[6:7, :d]
    g1, be1 = pk[7:8, :d],  pk[8:9, :d]
    g2, be2 = pk[9:10, :d], pk[10:11, :d]
    g3, be3 = pk[11:12, :d], pk[12:13, :d]

    # TODO(synk): dropout is intentionally identity (inference semantics); no RNG mask.

    # ---- self-attention (Wq/bq pre-scaled by 1/sqrt(dk)) + residual + norm1 ----
    qkv = jnp.dot(x.astype(mdt), sa_wqkv_ref[...],
                  preferred_element_type=jnp.float32) + sa_bqkv
    sa = _attention(qkv[:, :d], qkv[:, d:2 * d], qkv[:, 2 * d:],
                    sa_wo_ref[...], tgt_bias, bt, sq, sq) + sa_bo
    x = _layer_norm(x + sa, g1, be1)

    # ---- cross-attention + residual + norm2 ----
    q = jnp.dot(x.astype(mdt), ca_wq_ref[...],
                preferred_element_type=jnp.float32) + ca_bq
    kv = jnp.dot(enc, ca_wkv_ref[...],
                 preferred_element_type=jnp.float32) + ca_bkv
    ca = _attention(q, kv[:, :d], kv[:, d:],
                    ca_wo_ref[...], src_bias, bt, sq, sk) + ca_bo
    x = _layer_norm(x + ca, g2, be2)

    # ---- feed-forward + residual + norm3 ----
    h = jnp.maximum(jnp.dot(x.astype(mdt), w1_ref[...],
                            preferred_element_type=jnp.float32) + b1, 0.0)
    ffn = jnp.dot(h.astype(mdt), w2_ref[...],
                  preferred_element_type=jnp.float32) + b2
    x = _layer_norm(x + ffn, g3, be3)

    out_ref[...] = x                     # one contiguous (bt*sq, d) slab store


# ---------------------------------------------------------------------------
# Wrapper: packs parameters, folds batch, sets up the grid
# ---------------------------------------------------------------------------
def transformer_decoder_layer(x, enc_out, src_mask, tgt_mask, params,
                              matmul_dtype=MATMUL_DTYPE):
    B, S, D = x.shape
    Sk = enc_out.shape[1]
    (sa_wq, sa_bq, sa_wk, sa_bk, sa_wv, sa_bv, sa_wo, sa_bo,
     ca_wq, ca_bq, ca_wk, ca_bk, ca_wv, ca_bv, ca_wo, ca_bo,
     w1, b1, w2, b2, g1, be1, g2, be2, g3, be3) = params

    f32, mdt = jnp.float32, matmul_dtype
    dff = w1.shape[-1]
    scale = 1.0 / math.sqrt(D // NUM_HEADS)   # folded into Wq/bq (removes in-kernel mul)

    weights = [
        jnp.concatenate([sa_wq * scale, sa_wk, sa_wv], axis=1).astype(mdt),  # (D, 3D)
        sa_wo.astype(mdt),
        (ca_wq * scale).astype(mdt),
        jnp.concatenate([ca_wk, ca_wv], axis=1).astype(mdt),                 # (D, 2D)
        ca_wo.astype(mdt),
        w1.astype(mdt),
        w2.astype(mdt),
    ]

    # Pack all (1,N) biases + LayerNorm params into one (16, W) f32 slab:
    # a single DMA stream / single VMEM tile instead of ~13 padded tiny inputs.
    W = ((max(3 * D, 2 * D, dff, 128) + 127) // 128) * 128
    pk = jnp.zeros((16, W), f32)
    rows = [
        (0, jnp.concatenate([sa_bq * scale, sa_bk, sa_bv], axis=1)),
        (1, sa_bo), (2, ca_bq * scale),
        (3, jnp.concatenate([ca_bk, ca_bv], axis=1)),
        (4, ca_bo), (5, b1), (6, b2),
        (7, g1), (8, be1), (9, g2), (10, be2), (11, g3), (12, be3),
    ]
    for r, a in rows:
        a = a.astype(f32).reshape(1, -1)
        pk = pk.at[r:r + 1, :a.shape[-1]].set(a)

    bt = _pick_block_batch(B, S, Sk, D, dff)
    nblk = B // bt

    x2 = x.reshape(B * S, D).astype(f32)            # residual / LayerNorm path stays f32
    enc2 = enc_out.reshape(B * Sk, D).astype(mdt)   # MXU-only input: ship in bf16
    tgt_i8 = (tgt_mask != 0).astype(jnp.int8)       # 4x less O(S^2) mask DMA than f32
    src_i8 = (src_mask != 0).astype(jnp.int8)

    def const_spec(arr):
        nd = arr.ndim
        return pl.BlockSpec(arr.shape, lambda i, _nd=nd: (0,) * _nd)

    in_specs = [
        pl.BlockSpec((bt * S, D), lambda i: (i, 0)),       # x rows of this batch block
        pl.BlockSpec((bt * Sk, D), lambda i: (i, 0)),      # enc rows of this batch block
        pl.BlockSpec((bt, S, S), lambda i: (i, 0, 0)),     # tgt_mask (int8)
        pl.BlockSpec((bt, S, Sk), lambda i: (i, 0, 0)),    # src_mask (int8)
    ] + [const_spec(w) for w in weights] + [const_spec(pk)]

    dims = ("parallel",) if nblk > 1 else ("arbitrary",)
    out = pl.pallas_call(
        decoder_layer_kernel,
        out_shape=jax.ShapeDtypeStruct((B * S, D), jnp.float32),
        grid=(nblk,),
        in_specs=in_specs,
        out_specs=pl.BlockSpec((bt * S, D), lambda i: (i, 0)),
        compiler_params=pltpu.CompilerParams(dimension_semantics=dims),
    )(x2, enc2, tgt_i8, src_i8, *weights, pk)
    return out.reshape(B, S, D)


# ---------------------------------------------------------------------------
# Pure-JAX f32 reference (mirrors the PyTorch forward) for self-validation
# ---------------------------------------------------------------------------
def ref_forward(x, enc_out, src_mask, tgt_mask, params):
    (sa_wq, sa_bq, sa_wk, sa_bk, sa_wv, sa_bv, sa_wo, sa_bo,
     ca_wq, ca_bq, ca_wk, ca_bk, ca_wv, ca_bv, ca_wo, ca_bo,
     w1, b1, w2, b2, g1, be1, g2, be2, g3, be3) = params
    dk = D_MODEL // NUM_HEADS

    def mha(xq, xk, xv, wq, bq, wk, bk, wv, bv, wo, bo, mask):
        B, Sq, _ = xq.shape
        Sk = xk.shape[1]
        q = (xq @ wq + bq).reshape(B, Sq, NUM_HEADS, dk).transpose(0, 2, 1, 3)
        k = (xk @ wk + bk).reshape(B, Sk, NUM_HEADS, dk).transpose(0, 2, 1, 3)
        v = (xv @ wv + bv).reshape(B, Sk, NUM_HEADS, dk).transpose(0, 2, 1, 3)
        s = jnp.einsum('bhqd,bhkd->bhqk', q, k) / math.sqrt(dk)
        s = jnp.where(mask[:, None] == 0, -1e9, s)
        a = jax.nn.softmax(s, axis=-1)
        o = jnp.einsum('bhqk,bhkd->bhqd', a, v)
        o = o.transpose(0, 2, 1, 3).reshape(B, Sq, D_MODEL)
        return o @ wo + bo

    def ln(y, g, b):
        mu = y.mean(-1, keepdims=True)
        var = ((y - mu) ** 2).mean(-1, keepdims=True)
        return (y - mu) / jnp.sqrt(var + EPS) * g + b

    x = ln(x + mha(x, x, x, sa_wq, sa_bq, sa_wk, sa_bk, sa_wv, sa_bv, sa_wo, sa_bo, tgt_mask), g1, be1)
    x = ln(x + mha(x, enc_out, enc_out, ca_wq, ca_bq, ca_wk, ca_bk, ca_wv, ca_bv, ca_wo, ca_bo, src_mask), g2, be2)
    h = jnp.maximum(x @ w1 + b1, 0.0)
    x = ln(x + (h @ w2 + b2), g3, be3)
    return x


# ---------------------------------------------------------------------------
if __name__ == "__main__":
    B, S, SK = 2, 8, 8

    key = jax.random.PRNGKey(0)

    def nrm(key, shape, scale=0.1):
        return (scale * jax.random.normal(key, shape)).astype(jnp.float32)

    keys = jax.random.split(key, 32)
    ki = iter(keys)

    params = [
        # self-attention
        nrm(next(ki), (D_MODEL, D_MODEL)), nrm(next(ki), (1, D_MODEL)),   # Wq, bq
        nrm(next(ki), (D_MODEL, D_MODEL)), nrm(next(ki), (1, D_MODEL)),   # Wk, bk
        nrm(next(ki), (D_MODEL, D_MODEL)), nrm(next(ki), (1, D_MODEL)),   # Wv, bv
        nrm(next(ki), (D_MODEL, D_MODEL)), nrm(next(ki), (1, D_MODEL)),   # Wo, bo
        # cross-attention
        nrm(next(ki), (D_MODEL, D_MODEL)), nrm(next(ki), (1, D_MODEL)),
        nrm(next(ki), (D_MODEL, D_MODEL)), nrm(next(ki), (1, D_MODEL)),
        nrm(next(ki), (D_MODEL, D_MODEL)), nrm(next(ki), (1, D_MODEL)),
        nrm(next(ki), (D_MODEL, D_MODEL)), nrm(next(ki), (1, D_MODEL)),
        # feed-forward
        nrm(next(ki), (D_MODEL, D_FF)), nrm(next(ki), (1, D_FF)),
        nrm(next(ki), (D_FF, D_MODEL)), nrm(next(ki), (1, D_MODEL)),
        # layer norms (gamma near 1, beta small)
        1.0 + nrm(next(ki), (1, D_MODEL)), nrm(next(ki), (1, D_MODEL)),
        1.0 + nrm(next(ki), (1, D_MODEL)), nrm(next(ki), (1, D_MODEL)),
        1.0 + nrm(next(ki), (1, D_MODEL)), nrm(next(ki), (1, D_MODEL)),
    ]

    x = jax.random.normal(next(ki), (B, S, D_MODEL), dtype=jnp.float32)
    enc_out = jax.random.normal(next(ki), (B, SK, D_MODEL), dtype=jnp.float32)
    tgt_mask = jnp.broadcast_to(jnp.tril(jnp.ones((S, S), jnp.float32)), (B, S, S))
    src_mask = jnp.ones((B, S, SK), jnp.float32)

    out = transformer_decoder_layer(x, enc_out, src_mask, tgt_mask, params)
    out = jax.block_until_ready(out)

    ref = ref_forward(x, enc_out, src_mask, tgt_mask, params)
    assert out.shape == (B, S, D_MODEL)
    # bf16 MXU inputs + approx EUP reciprocal -> compare to the f32 reference with a
    # relaxed (but still structure-validating) tolerance.
    assert jnp.allclose(out, ref, atol=3e-2, rtol=3e-2), float(jnp.max(jnp.abs(out - ref)))

    print("KERNEL_OK")
</pallas_src>

<mosaic_0001>
module attributes {stable_mosaic.version = 11 : i64} {
  func.func @decoder_layer_kernel(%arg0: i32, %arg1: memref<16x32xf32, #tpu.memory_space<vmem>>, %arg2: memref<16x32xbf16, #tpu.memory_space<vmem>>, %arg3: memref<2x8x8xi8, #tpu.memory_space<vmem>>, %arg4: memref<2x8x8xi8, #tpu.memory_space<vmem>>, %arg5: memref<32x96xbf16, #tpu.memory_space<vmem>>, %arg6: memref<32x32xbf16, #tpu.memory_space<vmem>>, %arg7: memref<32x32xbf16, #tpu.memory_space<vmem>>, %arg8: memref<32x64xbf16, #tpu.memory_space<vmem>>, %arg9: memref<32x32xbf16, #tpu.memory_space<vmem>>, %arg10: memref<32x64xbf16, #tpu.memory_space<vmem>>, %arg11: memref<64x32xbf16, #tpu.memory_space<vmem>>, %arg12: memref<16x128xf32, #tpu.memory_space<vmem>>, %arg13: memref<16x32xf32, #tpu.memory_space<vmem>>) attributes {dimension_semantics = [#tpu.dimension_semantics<arbitrary>], iteration_bounds = array<i64: 1>, scalar_prefetch = 0 : i64, scratch_operands = 0 : i64, tpu.core_type = #tpu.core_type<tc>, window_params = [{transform_indices = @transform_0, window_bounds = array<i64: 16, 32>}, {transform_indices = @transform_1, window_bounds = array<i64: 16, 32>}, {transform_indices = @transform_2, window_bounds = array<i64: 2, 8, 8>}, {transform_indices = @transform_3, window_bounds = array<i64: 2, 8, 8>}, {pipeline_mode = #tpu.pipeline_mode<synchronous>, transform_indices = @transform_4, window_bounds = array<i64: 32, 96>}, {pipeline_mode = #tpu.pipeline_mode<synchronous>, transform_indices = @transform_5, window_bounds = array<i64: 32, 32>}, {pipeline_mode = #tpu.pipeline_mode<synchronous>, transform_indices = @transform_6, window_bounds = array<i64: 32, 32>}, {pipeline_mode = #tpu.pipeline_mode<synchronous>, transform_indices = @transform_7, window_bounds = array<i64: 32, 64>}, {pipeline_mode = #tpu.pipeline_mode<synchronous>, transform_indices = @transform_8, window_bounds = array<i64: 32, 32>}, {pipeline_mode = #tpu.pipeline_mode<synchronous>, transform_indices = @transform_9, window_bounds = array<i64: 32, 64>}, {pipeline_mode = #tpu.pipeline_mode<synchronous>, transform_indices = @transform_10, window_bounds = array<i64: 64, 32>}, {pipeline_mode = #tpu.pipeline_mode<synchronous>, transform_indices = @transform_11, window_bounds = array<i64: 16, 128>}, {transform_indices = @transform_12, window_bounds = array<i64: 16, 32>}]} {
    %c0 = arith.constant 0 : index
    %c0_0 = arith.constant 0 : index
    %0 = vector.load %arg1[%c0, %c0_0] : memref<16x32xf32, #tpu.memory_space<vmem>>, vector<16x32xf32>
    %c0_1 = arith.constant 0 : index
    %c0_2 = arith.constant 0 : index
    %1 = vector.load %arg2[%c0_1, %c0_2] : memref<16x32xbf16, #tpu.memory_space<vmem>>, vector<16x32xbf16>
    %c0_3 = arith.constant 0 : index
    %c0_4 = arith.constant 0 : index
    %c0_5 = arith.constant 0 : index
    %2 = vector.load %arg3[%c0_3, %c0_4, %c0_5] : memref<2x8x8xi8, #tpu.memory_space<vmem>>, vector<2x8x8xi8>
    %3 = arith.sitofp %2 : vector<2x8x8xi8> to vector<2x8x8xf32>
    %cst = arith.constant 0.000000e+00 : f32
    %4 = vector.broadcast %cst : f32 to vector<2x8x8xf32>
    %5 = arith.cmpf oeq, %3, %4 : vector<2x8x8xf32>
    %cst_6 = arith.constant -1.000000e+09 : f32
    %cst_7 = arith.constant 0.000000e+00 : f32
    %6 = vector.broadcast %cst_6 : f32 to vector<2x8x8xf32>
    %7 = vector.broadcast %cst_7 : f32 to vector<2x8x8xf32>
    %8 = arith.select %5, %6, %7 : vector<2x8x8xi1>, vector<2x8x8xf32>
    %c0_8 = arith.constant 0 : index
    %c0_9 = arith.constant 0 : index
    %c0_10 = arith.constant 0 : index
    %9 = vector.load %arg4[%c0_8, %c0_9, %c0_10] : memref<2x8x8xi8, #tpu.memory_space<vmem>>, vector<2x8x8xi8>
    %10 = arith.sitofp %9 : vector<2x8x8xi8> to vector<2x8x8xf32>
    %cst_11 = arith.constant 0.000000e+00 : f32
    %11 = vector.broadcast %cst_11 : f32 to vector<2x8x8xf32>
    %12 = arith.cmpf oeq, %10, %11 : vector<2x8x8xf32>
    %cst_12 = arith.constant -1.000000e+09 : f32
    %cst_13 = arith.constant 0.000000e+00 : f32
    %13 = vector.broadcast %cst_12 : f32 to vector<2x8x8xf32>
    %14 = vector.broadcast %cst_13 : f32 to vector<2x8x8xf32>
    %15 = arith.select %12, %13, %14 : vector<2x8x8xi1>, vector<2x8x8xf32>
    %c0_14 = arith.constant 0 : index
    %c0_15 = arith.constant 0 : index
    %16 = vector.load %arg12[%c0_14, %c0_15] : memref<16x128xf32, #tpu.memory_space<vmem>>, vector<16x128xf32>
    %17 = vector.extract_strided_slice %16 {offsets = [0, 0], sizes = [1, 96], strides = [1, 1]} : vector<16x128xf32> to vector<1x96xf32>
    %18 = vector.extract_strided_slice %16 {offsets = [1, 0], sizes = [1, 32], strides = [1, 1]} : vector<16x128xf32> to vector<1x32xf32>
    %19 = vector.extract_strided_slice %16 {offsets = [2, 0], sizes = [1, 32], strides = [1, 1]} : vector<16x128xf32> to vector<1x32xf32>
    %20 = vector.extract_strided_slice %16 {offsets = [3, 0], sizes = [1, 64], strides = [1, 1]} : vector<16x128xf32> to vector<1x64xf32>
    %21 = vector.extract_strided_slice %16 {offsets = [4, 0], sizes = [1, 32], strides = [1, 1]} : vector<16x128xf32> to vector<1x32xf32>
    %22 = vector.extract_strided_slice %16 {offsets = [5, 0], sizes = [1, 64], strides = [1, 1]} : vector<16x128xf32> to vector<1x64xf32>
    %23 = vector.extract_strided_slice %16 {offsets = [6, 0], sizes = [1, 32], strides = [1, 1]} : vector<16x128xf32> to vector<1x32xf32>
    %24 = vector.extract_strided_slice %16 {offsets = [7, 0], sizes = [1, 32], strides = [1, 1]} : vector<16x128xf32> to vector<1x32xf32>
    %25 = vector.extract_strided_slice %16 {offsets = [8, 0], sizes = [1, 32], strides = [1, 1]} : vector<16x128xf32> to vector<1x32xf32>
    %26 = vector.extract_strided_slice %16 {offsets = [9, 0], sizes = [1, 32], strides = [1, 1]} : vector<16x128xf32> to vector<1x32xf32>
    %27 = vector.extract_strided_slice %16 {offsets = [10, 0], sizes = [1, 32], strides = [1, 1]} : vector<16x128xf32> to vector<1x32xf32>
    %28 = vector.extract_strided_slice %16 {offsets = [11, 0], sizes = [1, 32], strides = [1, 1]} : vector<16x128xf32> to vector<1x32xf32>
    %29 = vector.extract_strided_slice %16 {offsets = [12, 0], sizes = [1, 32], strides = [1, 1]} : vector<16x128xf32> to vector<1x32xf32>
    %30 = arith.truncf %0 : vector<16x32xf32> to vector<16x32xbf16>
    %c0_16 = arith.constant 0 : index
    %c0_17 = arith.constant 0 : index
    %31 = vector.load %arg5[%c0_16, %c0_17] : memref<32x96xbf16, #tpu.memory_space<vmem>>, vector<32x96xbf16>
    %cst_18 = arith.constant dense<0.000000e+00> : vector<16x96xf32>
    %32 = tpu.matmul %30, %31, %cst_18 {dimension_numbers = #tpu.dot_dimension_numbers<[1], [0], [0], [1], [0, 0, 1, 1], [], []>} : vector<16x32xbf16>, vector<32x96xbf16>, vector<16x96xf32> -> vector<16x96xf32>
    %33 = vector.broadcast %17 : vector<1x96xf32> to vector<16x96xf32>
    %34 = arith.addf %32, %33 : vector<16x96xf32>
    %35 = vector.extract_strided_slice %34 {offsets = [0, 0], sizes = [16, 32], strides = [1, 1]} : vector<16x96xf32> to vector<16x32xf32>
    %36 = vector.extract_strided_slice %34 {offsets = [0, 32], sizes = [16, 32], strides = [1, 1]} : vector<16x96xf32> to vector<16x32xf32>
    %37 = vector.extract_strided_slice %34 {offsets = [0, 64], sizes = [16, 32], strides = [1, 1]} : vector<16x96xf32> to vector<16x32xf32>
    %c0_19 = arith.constant 0 : index
    %c0_20 = arith.constant 0 : index
    %38 = vector.load %arg6[%c0_19, %c0_20] : memref<32x32xbf16, #tpu.memory_space<vmem>>, vector<32x32xbf16>
    %39 = vector.extract_strided_slice %35 {offsets = [0, 0], sizes = [16, 8], strides = [1, 1]} : vector<16x32xf32> to vector<16x8xf32>
    %40 = vector.shape_cast %39 : vector<16x8xf32> to vector<2x8x8xf32>
    %41 = arith.truncf %40 : vector<2x8x8xf32> to vector<2x8x8xbf16>
    %42 = vector.extract_strided_slice %36 {offsets = [0, 0], sizes = [16, 8], strides = [1, 1]} : vector<16x32xf32> to vector<16x8xf32>
    %43 = vector.shape_cast %42 : vector<16x8xf32> to vector<2x8x8xf32>
    %44 = arith.truncf %43 : vector<2x8x8xf32> to vector<2x8x8xbf16>
    %45 = vector.extract_strided_slice %37 {offsets = [0, 0], sizes = [16, 8], strides = [1, 1]} : vector<16x32xf32> to vector<16x8xf32>
    %46 = vector.shape_cast %45 : vector<16x8xf32> to vector<2x8x8xf32>
    %47 = arith.truncf %46 : vector<2x8x8xf32> to vector<2x8x8xbf16>
    "tpu.trace_start"() <{level = 10 : i32, message = "bqd,bkd->bqk"}> : () -> ()
    %cst_21 = arith.constant dense<0.000000e+00> : vector<2x8x8xf32>
    %48 = tpu.matmul %41, %44, %cst_21 {dimension_numbers = #tpu.dot_dimension_numbers<[2], [2], [1], [1], [0, 0, 0, 1, 1, 1], [0], [0]>} : vector<2x8x8xbf16>, vector<2x8x8xbf16>, vector<2x8x8xf32> -> vector<2x8x8xf32>
    "tpu.trace_stop"() : () -> ()
    %49 = arith.addf %48, %8 : vector<2x8x8xf32>
    %cst_22 = arith.constant dense<0xFF800000> : vector<2x8xf32>
    %50 = vector.multi_reduction <maximumf>, %49, %cst_22 [2] : vector<2x8x8xf32> to vector<2x8xf32>
    %51 = vector.shape_cast %50 : vector<2x8xf32> to vector<2x8x1xf32>
    %52 = vector.broadcast %51 : vector<2x8x1xf32> to vector<2x8x8xf32>
    %53 = arith.subf %49, %52 : vector<2x8x8xf32>
    %54 = math.exp %53 : vector<2x8x8xf32>
    %cst_23 = arith.constant dense<0.000000e+00> : vector<2x8xf32>
    %55 = vector.multi_reduction <add>, %54, %cst_23 [2] : vector<2x8x8xf32> to vector<2x8xf32>
    %56 = vector.shape_cast %55 : vector<2x8xf32> to vector<2x8x1xf32>
    %57 = tpu.reciprocal %56 {approx = true} : vector<2x8x1xf32> -> vector<2x8x1xf32>
    %58 = vector.broadcast %57 : vector<2x8x1xf32> to vector<2x8x8xf32>
    %59 = arith.mulf %54, %58 : vector<2x8x8xf32>
    %60 = arith.truncf %59 : vector<2x8x8xf32> to vector<2x8x8xbf16>
    "tpu.trace_start"() <{level = 10 : i32, message = "bqk,bkd->bqd"}> : () -> ()
    %cst_24 = arith.constant dense<0.000000e+00> : vector<2x8x8xf32>
    %61 = tpu.matmul %60, %47, %cst_24 {dimension_numbers = #tpu.dot_dimension_numbers<[2], [1], [1], [2], [0, 0, 0, 1, 1, 2], [0], [0]>} : vector<2x8x8xbf16>, vector<2x8x8xbf16>, vector<2x8x8xf32> -> vector<2x8x8xf32>
    "tpu.trace_stop"() : () -> ()
    %62 = vector.shape_cast %61 : vector<2x8x8xf32> to vector<16x8xf32>
    %63 = vector.extract_strided_slice %35 {offsets = [0, 8], sizes = [16, 8], strides = [1, 1]} : vector<16x32xf32> to vector<16x8xf32>
    %64 = vector.shape_cast %63 : vector<16x8xf32> to vector<2x8x8xf32>
    %65 = arith.truncf %64 : vector<2x8x8xf32> to vector<2x8x8xbf16>
    %66 = vector.extract_strided_slice %36 {offsets = [0, 8], sizes = [16, 8], strides = [1, 1]} : vector<16x32xf32> to vector<16x8xf32>
    %67 = vector.shape_cast %66 : vector<16x8xf32> to vector<2x8x8xf32>
    %68 = arith.truncf %67 : vector<2x8x8xf32> to vector<2x8x8xbf16>
    %69 = vector.extract_strided_slice %37 {offsets = [0, 8], sizes = [16, 8], strides = [1, 1]} : vector<16x32xf32> to vector<16x8xf32>
    %70 = vector.shape_cast %69 : vector<16x8xf32> to vector<2x8x8xf32>
    %71 = arith.truncf %70 : vector<2x8x8xf32> to vector<2x8x8xbf16>
    "tpu.trace_start"() <{level = 10 : i32, message = "bqd,bkd->bqk"}> : () -> ()
    %cst_25 = arith.constant dense<0.000000e+00> : vector<2x8x8xf32>
    %72 = tpu.matmul %65, %68, %cst_25 {dimension_numbers = #tpu.dot_dimension_numbers<[2], [2], [1], [1], [0, 0, 0, 1, 1, 1], [0], [0]>} : vector<2x8x8xbf16>, vector<2x8x8xbf16>, vector<2x8x8xf32> -> vector<2x8x8xf32>
    "tpu.trace_stop"() : () -> ()
    %73 = arith.addf %72, %8 : vector<2x8x8xf32>
    %cst_26 = arith.constant dense<0xFF800000> : vector<2x8xf32>
    %74 = vector.multi_reduction <maximumf>, %73, %cst_26 [2] : vector<2x8x8xf32> to vector<2x8xf32>
    %75 = vector.shape_cast %74 : vector<2x8xf32> to vector<2x8x1xf32>
    %76 = vector.broadcast %75 : vector<2x8x1xf32> to vector<2x8x8xf32>
    %77 = arith.subf %73, %76 : vector<2x8x8xf32>
    %78 = math.exp %77 : vector<2x8x8xf32>
    %cst_27 = arith.constant dense<0.000000e+00> : vector<2x8xf32>
    %79 = vector.multi_reduction <add>, %78, %cst_27 [2] : vector<2x8x8xf32> to vector<2x8xf32>
    %80 = vector.shape_cast %79 : vector<2x8xf32> to vector<2x8x1xf32>
    %81 = tpu.reciprocal %80 {approx = true} : vector<2x8x1xf32> -> vector<2x8x1xf32>
    %82 = vector.broadcast %81 : vector<2x8x1xf32> to vector<2x8x8xf32>
    %83 = arith.mulf %78, %82 : vector<2x8x8xf32>
    %84 = arith.truncf %83 : vector<2x8x8xf32> to vector<2x8x8xbf16>
    "tpu.trace_start"() <{level = 10 : i32, message = "bqk,bkd->bqd"}> : () -> ()
    %cst_28 = arith.constant dense<0.000000e+00> : vector<2x8x8xf32>
    %85 = tpu.matmul %84, %71, %cst_28 {dimension_numbers = #tpu.dot_dimension_numbers<[2], [1], [1], [2], [0, 0, 0, 1, 1, 2], [0], [0]>} : vector<2x8x8xbf16>, vector<2x8x8xbf16>, vector<2x8x8xf32> -> vector<2x8x8xf32>
    "tpu.trace_stop"() : () -> ()
    %86 = vector.shape_cast %85 : vector<2x8x8xf32> to vector<16x8xf32>
    %87 = vector.extract_strided_slice %35 {offsets = [0, 16], sizes = [16, 8], strides = [1, 1]} : vector<16x32xf32> to vector<16x8xf32>
    %88 = vector.shape_cast %87 : vector<16x8xf32> to vector<2x8x8xf32>
    %89 = arith.truncf %88 : vector<2x8x8xf32> to vector<2x8x8xbf16>
    %90 = vector.extract_strided_slice %36 {offsets = [0, 16], sizes = [16, 8], strides = [1, 1]} : vector<16x32xf32> to vector<16x8xf32>
    %91 = vector.shape_cast %90 : vector<16x8xf32> to vector<2x8x8xf32>
    %92 = arith.truncf %91 : vector<2x8x8xf32> to vector<2x8x8xbf16>
    %93 = vector.extract_strided_slice %37 {offsets = [0, 16], sizes = [16, 8], strides = [1, 1]} : vector<16x32xf32> to vector<16x8xf32>
    %94 = vector.shape_cast %93 : vector<16x8xf32> to vector<2x8x8xf32>
    %95 = arith.truncf %94 : vector<2x8x8xf32> to vector<2x8x8xbf16>
    "tpu.trace_start"() <{level = 10 : i32, message = "bqd,bkd->bqk"}> : () -> ()
    %cst_29 = arith.constant dense<0.000000e+00> : vector<2x8x8xf32>
    %96 = tpu.matmul %89, %92, %cst_29 {dimension_numbers = #tpu.dot_dimension_numbers<[2], [2], [1], [1], [0, 0, 0, 1, 1, 1], [0], [0]>} : vector<2x8x8xbf16>, vector<2x8x8xbf16>, vector<2x8x8xf32> -> vector<2x8x8xf32>
    "tpu.trace_stop"() : () -> ()
    %97 = arith.addf %96, %8 : vector<2x8x8xf32>
    %cst_30 = arith.constant dense<0xFF800000> : vector<2x8xf32>
    %98 = vector.multi_reduction <maximumf>, %97, %cst_30 [2] : vector<2x8x8xf32> to vector<2x8xf32>
    %99 = vector.shape_cast %98 : vector<2x8xf32> to vector<2x8x1xf32>
    %100 = vector.broadcast %99 : vector<2x8x1xf32> to vector<2x8x8xf32>
    %101 = arith.subf %97, %100 : vector<2x8x8xf32>
    %102 = math.exp %101 : vector<2x8x8xf32>
    %cst_31 = arith.constant dense<0.000000e+00> : vector<2x8xf32>
    %103 = vector.multi_reduction <add>, %102, %cst_31 [2] : vector<2x8x8xf32> to vector<2x8xf32>
    %104 = vector.shape_cast %103 : vector<2x8xf32> to vector<2x8x1xf32>
    %105 = tpu.reciprocal %104 {approx = true} : vector<2x8x1xf32> -> vector<2x8x1xf32>
    %106 = vector.broadcast %105 : vector<2x8x1xf32> to vector<2x8x8xf32>
    %107 = arith.mulf %102, %106 : vector<2x8x8xf32>
    %108 = arith.truncf %107 : vector<2x8x8xf32> to vector<2x8x8xbf16>
    "tpu.trace_start"() <{level = 10 : i32, message = "bqk,bkd->bqd"}> : () -> ()
    %cst_32 = arith.constant dense<0.000000e+00> : vector<2x8x8xf32>
    %109 = tpu.matmul %108, %95, %cst_32 {dimension_numbers = #tpu.dot_dimension_numbers<[2], [1], [1], [2], [0, 0, 0, 1, 1, 2], [0], [0]>} : vector<2x8x8xbf16>, vector<2x8x8xbf16>, vector<2x8x8xf32> -> vector<2x8x8xf32>
    "tpu.trace_stop"() : () -> ()
    %110 = vector.shape_cast %109 : vector<2x8x8xf32> to vector<16x8xf32>
    %111 = vector.extract_strided_slice %35 {offsets = [0, 24], sizes = [16, 8], strides = [1, 1]} : vector<16x32xf32> to vector<16x8xf32>
    %112 = vector.shape_cast %111 : vector<16x8xf32> to vector<2x8x8xf32>
    %113 = arith.truncf %112 : vector<2x8x8xf32> to vector<2x8x8xbf16>
    %114 = vector.extract_strided_slice %36 {offsets = [0, 24], sizes = [16, 8], strides = [1, 1]} : vector<16x32xf32> to vector<16x8xf32>
    %115 = vector.shape_cast %114 : vector<16x8xf32> to vector<2x8x8xf32>
    %116 = arith.truncf %115 : vector<2x8x8xf32> to vector<2x8x8xbf16>
    %117 = vector.extract_strided_slice %37 {offsets = [0, 24], sizes = [16, 8], strides = [1, 1]} : vector<16x32xf32> to vector<16x8xf32>
    %118 = vector.shape_cast %117 : vector<16x8xf32> to vector<2x8x8xf32>
    %119 = arith.truncf %118 : vector<2x8x8xf32> to vector<2x8x8xbf16>
    "tpu.trace_start"() <{level = 10 : i32, message = "bqd,bkd->bqk"}> : () -> ()
    %cst_33 = arith.constant dense<0.000000e+00> : vector<2x8x8xf32>
    %120 = tpu.matmul %113, %116, %cst_33 {dimension_numbers = #tpu.dot_dimension_numbers<[2], [2], [1], [1], [0, 0, 0, 1, 1, 1], [0], [0]>} : vector<2x8x8xbf16>, vector<2x8x8xbf16>, vector<2x8x8xf32> -> vector<2x8x8xf32>
    "tpu.trace_stop"() : () -> ()
    %121 = arith.addf %120, %8 : vector<2x8x8xf32>
    %cst_34 = arith.constant dense<0xFF800000> : vector<2x8xf32>
    %122 = vector.multi_reduction <maximumf>, %121, %cst_34 [2] : vector<2x8x8xf32> to vector<2x8xf32>
    %123 = vector.shape_cast %122 : vector<2x8xf32> to vector<2x8x1xf32>
    %124 = vector.broadcast %123 : vector<2x8x1xf32> to vector<2x8x8xf32>
    %125 = arith.subf %121, %124 : vector<2x8x8xf32>
    %126 = math.exp %125 : vector<2x8x8xf32>
    %cst_35 = arith.constant dense<0.000000e+00> : vector<2x8xf32>
    %127 = vector.multi_reduction <add>, %126, %cst_35 [2] : vector<2x8x8xf32> to vector<2x8xf32>
    %128 = vector.shape_cast %127 : vector<2x8xf32> to vector<2x8x1xf32>
    %129 = tpu.reciprocal %128 {approx = true} : vector<2x8x1xf32> -> vector<2x8x1xf32>
    %130 = vector.broadcast %129 : vector<2x8x1xf32> to vector<2x8x8xf32>
    %131 = arith.mulf %126, %130 : vector<2x8x8xf32>
    %132 = arith.truncf %131 : vector<2x8x8xf32> to vector<2x8x8xbf16>
    "tpu.trace_start"() <{level = 10 : i32, message = "bqk,bkd->bqd"}> : () -> ()
    %cst_36 = arith.constant dense<0.000000e+00> : vector<2x8x8xf32>
    %133 = tpu.matmul %132, %119, %cst_36 {dimension_numbers = #tpu.dot_dimension_numbers<[2], [1], [1], [2], [0, 0, 0, 1, 1, 2], [0], [0]>} : vector<2x8x8xbf16>, vector<2x8x8xbf16>, vector<2x8x8xf32> -> vector<2x8x8xf32>
    "tpu.trace_stop"() : () -> ()
    %134 = vector.shape_cast %133 : vector<2x8x8xf32> to vector<16x8xf32>
    %135 = tpu.concatenate %62, %86, %110, %134 in 1 : vector<16x8xf32>, vector<16x8xf32>, vector<16x8xf32>, vector<16x8xf32> -> vector<16x32xf32>
    %136 = arith.truncf %135 : vector<16x32xf32> to vector<16x32xbf16>
    %cst_37 = arith.constant dense<0.000000e+00> : vector<16x32xf32>
    %137 = tpu.matmul %136, %38, %cst_37 {dimension_numbers = #tpu.dot_dimension_numbers<[1], [0], [0], [1], [0, 0, 1, 1], [], []>} : vector<16x32xbf16>, vector<32x32xbf16>, vector<16x32xf32> -> vector<16x32xf32>
    %138 = vector.broadcast %18 : vector<1x32xf32> to vector<16x32xf32>
    %139 = arith.addf %137, %138 : vector<16x32xf32>
    %140 = arith.addf %0, %139 : vector<16x32xf32>
    %cst_38 = arith.constant dense<0.000000e+00> : vector<16xf32>
    %141 = vector.multi_reduction <add>, %140, %cst_38 [1] : vector<16x32xf32> to vector<16xf32>
    %142 = vector.shape_cast %141 : vector<16xf32> to vector<16x1xf32>
    %cst_39 = arith.constant 3.200000e+01 : f32
    %143 = vector.broadcast %cst_39 : f32 to vector<16x1xf32>
    %144 = arith.divf %142, %143 : vector<16x1xf32>
    %145 = vector.broadcast %144 : vector<16x1xf32> to vector<16x32xf32>
    %146 = arith.subf %140, %145 : vector<16x32xf32>
    %147 = arith.mulf %146, %146 : vector<16x32xf32>
    %cst_40 = arith.constant dense<0.000000e+00> : vector<16xf32>
    %148 = vector.multi_reduction <add>, %147, %cst_40 [1] : vector<16x32xf32> to vector<16xf32>
    %149 = vector.shape_cast %148 : vector<16xf32> to vector<16x1xf32>
    %cst_41 = arith.constant 3.200000e+01 : f32
    %150 = vector.broadcast %cst_41 : f32 to vector<16x1xf32>
    %151 = arith.divf %149, %150 : vector<16x1xf32>
    %152 = vector.broadcast %144 : vector<16x1xf32> to vector<16x32xf32>
    %153 = arith.subf %140, %152 : vector<16x32xf32>
    %cst_42 = arith.constant 9.99999974E-6 : f32
    %154 = vector.broadcast %cst_42 : f32 to vector<16x1xf32>
    %155 = arith.addf %151, %154 : vector<16x1xf32>
    %156 = math.rsqrt %155 : vector<16x1xf32>
    %157 = vector.broadcast %156 : vector<16x1xf32> to vector<16x32xf32>
    %158 = arith.mulf %153, %157 : vector<16x32xf32>
    %159 = vector.broadcast %24 : vector<1x32xf32> to vector<16x32xf32>
    %160 = arith.mulf %158, %159 : vector<16x32xf32>
    %161 = vector.broadcast %25 : vector<1x32xf32> to vector<16x32xf32>
    %162 = arith.addf %160, %161 : vector<16x32xf32>
    %163 = arith.truncf %162 : vector<16x32xf32> to vector<16x32xbf16>
    %c0_43 = arith.constant 0 : index
    %c0_44 = arith.constant 0 : index
    %164 = vector.load %arg7[%c0_43, %c0_44] : memref<32x32xbf16, #tpu.memory_space<vmem>>, vector<32x32xbf16>
    %cst_45 = arith.constant dense<0.000000e+00> : vector<16x32xf32>
    %165 = tpu.matmul %163, %164, %cst_45 {dimension_numbers = #tpu.dot_dimension_numbers<[1], [0], [0], [1], [0, 0, 1, 1], [], []>} : vector<16x32xbf16>, vector<32x32xbf16>, vector<16x32xf32> -> vector<16x32xf32>
    %166 = vector.broadcast %19 : vector<1x32xf32> to vector<16x32xf32>
    %167 = arith.addf %165, %166 : vector<16x32xf32>
    %c0_46 = arith.constant 0 : index
    %c0_47 = arith.constant 0 : index
    %168 = vector.load %arg8[%c0_46, %c0_47] : memref<32x64xbf16, #tpu.memory_space<vmem>>, vector<32x64xbf16>
    %cst_48 = arith.constant dense<0.000000e+00> : vector<16x64xf32>
    %169 = tpu.matmul %1, %168, %cst_48 {dimension_numbers = #tpu.dot_dimension_numbers<[1], [0], [0], [1], [0, 0, 1, 1], [], []>} : vector<16x32xbf16>, vector<32x64xbf16>, vector<16x64xf32> -> vector<16x64xf32>
    %170 = vector.broadcast %20 : vector<1x64xf32> to vector<16x64xf32>
    %171 = arith.addf %169, %170 : vector<16x64xf32>
    %172 = vector.extract_strided_slice %171 {offsets = [0, 0], sizes = [16, 32], strides = [1, 1]} : vector<16x64xf32> to vector<16x32xf32>
    %173 = vector.extract_strided_slice %171 {offsets = [0, 32], sizes = [16, 32], strides = [1, 1]} : vector<16x64xf32> to vector<16x32xf32>
    %c0_49 = arith.constant 0 : index
    %c0_50 = arith.constant 0 : index
    %174 = vector.load %arg9[%c0_49, %c0_50] : memref<32x32xbf16, #tpu.memory_space<vmem>>, vector<32x32xbf16>
    %175 = vector.extract_strided_slice %167 {offsets = [0, 0], sizes = [16, 8], strides = [1, 1]} : vector<16x32xf32> to vector<16x8xf32>
    %176 = vector.shape_cast %175 : vector<16x8xf32> to vector<2x8x8xf32>
    %177 = arith.truncf %176 : vector<2x8x8xf32> to vector<2x8x8xbf16>
    %178 = vector.extract_strided_slice %172 {offsets = [0, 0], sizes = [16, 8], strides = [1, 1]} : vector<16x32xf32> to vector<16x8xf32>
    %179 = vector.shape_cast %178 : vector<16x8xf32> to vector<2x8x8xf32>
    %180 = arith.truncf %179 : vector<2x8x8xf32> to vector<2x8x8xbf16>
    %181 = vector.extract_strided_slice %173 {offsets = [0, 0], sizes = [16, 8], strides = [1, 1]} : vector<16x32xf32> to vector<16x8xf32>
    %182 = vector.shape_cast %181 : vector<16x8xf32> to vector<2x8x8xf32>
    %183 = arith.truncf %182 : vector<2x8x8xf32> to vector<2x8x8xbf16>
    "tpu.trace_start"() <{level = 10 : i32, message = "bqd,bkd->bqk"}> : () -> ()
    %cst_51 = arith.constant dense<0.000000e+00> : vector<2x8x8xf32>
    %184 = tpu.matmul %177, %180, %cst_51 {dimension_numbers = #tpu.dot_dimension_numbers<[2], [2], [1], [1], [0, 0, 0, 1, 1, 1], [0], [0]>} : vector<2x8x8xbf16>, vector<2x8x8xbf16>, vector<2x8x8xf32> -> vector<2x8x8xf32>
    "tpu.trace_stop"() : () -> ()
    %185 = arith.addf %184, %15 : vector<2x8x8xf32>
    %cst_52 = arith.constant dense<0xFF800000> : vector<2x8xf32>
    %186 = vector.multi_reduction <maximumf>, %185, %cst_52 [2] : vector<2x8x8xf32> to vector<2x8xf32>
    %187 = vector.shape_cast %186 : vector<2x8xf32> to vector<2x8x1xf32>
    %188 = vector.broadcast %187 : vector<2x8x1xf32> to vector<2x8x8xf32>
    %189 = arith.subf %185, %188 : vector<2x8x8xf32>
    %190 = math.exp %189 : vector<2x8x8xf32>
    %cst_53 = arith.constant dense<0.000000e+00> : vector<2x8xf32>
    %191 = vector.multi_reduction <add>, %190, %cst_53 [2] : vector<2x8x8xf32> to vector<2x8xf32>
    %192 = vector.shape_cast %191 : vector<2x8xf32> to vector<2x8x1xf32>
    %193 = tpu.reciprocal %192 {approx = true} : vector<2x8x1xf32> -> vector<2x8x1xf32>
    %194 = vector.broadcast %193 : vector<2x8x1xf32> to vector<2x8x8xf32>
    %195 = arith.mulf %190, %194 : vector<2x8x8xf32>
    %196 = arith.truncf %195 : vector<2x8x8xf32> to vector<2x8x8xbf16>
    "tpu.trace_start"() <{level = 10 : i32, message = "bqk,bkd->bqd"}> : () -> ()
    %cst_54 = arith.constant dense<0.000000e+00> : vector<2x8x8xf32>
    %197 = tpu.matmul %196, %183, %cst_54 {dimension_numbers = #tpu.dot_dimension_numbers<[2], [1], [1], [2], [0, 0, 0, 1, 1, 2], [0], [0]>} : vector<2x8x8xbf16>, vector<2x8x8xbf16>, vector<2x8x8xf32> -> vector<2x8x8xf32>
    "tpu.trace_stop"() : () -> ()
    %198 = vector.shape_cast %197 : vector<2x8x8xf32> to vector<16x8xf32>
    %199 = vector.extract_strided_slice %167 {offsets = [0, 8], sizes = [16, 8], strides = [1, 1]} : vector<16x32xf32> to vector<16x8xf32>
    %200 = vector.shape_cast %199 : vector<16x8xf32> to vector<2x8x8xf32>
    %201 = arith.truncf %200 : vector<2x8x8xf32> to vector<2x8x8xbf16>
    %202 = vector.extract_strided_slice %172 {offsets = [0, 8], sizes = [16, 8], strides = [1, 1]} : vector<16x32xf32> to vector<16x8xf32>
    %203 = vector.shape_cast %202 : vector<16x8xf32> to vector<2x8x8xf32>
    %204 = arith.truncf %203 : vector<2x8x8xf32> to vector<2x8x8xbf16>
    %205 = vector.extract_strided_slice %173 {offsets = [0, 8], sizes = [16, 8], strides = [1, 1]} : vector<16x32xf32> to vector<16x8xf32>
    %206 = vector.shape_cast %205 : vector<16x8xf32> to vector<2x8x8xf32>
    %207 = arith.truncf %206 : vector<2x8x8xf32> to vector<2x8x8xbf16>
    "tpu.trace_start"() <{level = 10 : i32, message = "bqd,bkd->bqk"}> : () -> ()
    %cst_55 = arith.constant dense<0.000000e+00> : vector<2x8x8xf32>
    %208 = tpu.matmul %201, %204, %cst_55 {dimension_numbers = #tpu.dot_dimension_numbers<[2], [2], [1], [1], [0, 0, 0, 1, 1, 1], [0], [0]>} : vector<2x8x8xbf16>, vector<2x8x8xbf16>, vector<2x8x8xf32> -> vector<2x8x8xf32>
    "tpu.trace_stop"() : () -> ()
    %209 = arith.addf %208, %15 : vector<2x8x8xf32>
    %cst_56 = arith.constant dense<0xFF800000> : vector<2x8xf32>
    %210 = vector.multi_reduction <maximumf>, %209, %cst_56 [2] : vector<2x8x8xf32> to vector<2x8xf32>
    %211 = vector.shape_cast %210 : vector<2x8xf32> to vector<2x8x1xf32>
    %212 = vector.broadcast %211 : vector<2x8x1xf32> to vector<2x8x8xf32>
    %213 = arith.subf %209, %212 : vector<2x8x8xf32>
    %214 = math.exp %213 : vector<2x8x8xf32>
    %cst_57 = arith.constant dense<0.000000e+00> : vector<2x8xf32>
    %215 = vector.multi_reduction <add>, %214, %cst_57 [2] : vector<2x8x8xf32> to vector<2x8xf32>
    %216 = vector.shape_cast %215 : vector<2x8xf32> to vector<2x8x1xf32>
    %217 = tpu.reciprocal %216 {approx = true} : vector<2x8x1xf32> -> vector<2x8x1xf32>
    %218 = vector.broadcast %217 : vector<2x8x1xf32> to vector<2x8x8xf32>
    %219 = arith.mulf %214, %218 : vector<2x8x8xf32>
    %220 = arith.truncf %219 : vector<2x8x8xf32> to vector<2x8x8xbf16>
    "tpu.trace_start"() <{level = 10 : i32, message = "bqk,bkd->bqd"}> : () -> ()
    %cst_58 = arith.constant dense<0.000000e+00> : vector<2x8x8xf32>
    %221 = tpu.matmul %220, %207, %cst_58 {dimension_numbers = #tpu.dot_dimension_numbers<[2], [1], [1], [2], [0, 0, 0, 1, 1, 2], [0], [0]>} : vector<2x8x8xbf16>, vector<2x8x8xbf16>, vector<2x8x8xf32> -> vector<2x8x8xf32>
    "tpu.trace_stop"() : () -> ()
    %222 = vector.shape_cast %221 : vector<2x8x8xf32> to vector<16x8xf32>
    %223 = vector.extract_strided_slice %167 {offsets = [0, 16], sizes = [16, 8], strides = [1, 1]} : vector<16x32xf32> to vector<16x8xf32>
    %224 = vector.shape_cast %223 : vector<16x8xf32> to vector<2x8x8xf32>
    %225 = arith.truncf %224 : vector<2x8x8xf32> to vector<2x8x8xbf16>
    %226 = vector.extract_strided_slice %172 {offsets = [0, 16], sizes = [16, 8], strides = [1, 1]} : vector<16x32xf32> to vector<16x8xf32>
    %227 = vector.shape_cast %226 : vector<16x8xf32> to vector<2x8x8xf32>
    %228 = arith.truncf %227 : vector<2x8x8xf32> to vector<2x8x8xbf16>
    %229 = vector.extract_strided_slice %173 {offsets = [0, 16], sizes = [16, 8], strides = [1, 1]} : vector<16x32xf32> to vector<16x8xf32>
    %230 = vector.shape_cast %229 : vector<16x8xf32> to vector<2x8x8xf32>
    %231 = arith.truncf %230 : vector<2x8x8xf32> to vector<2x8x8xbf16>
    "tpu.trace_start"() <{level = 10 : i32, message = "bqd,bkd->bqk"}> : () -> ()
    %cst_59 = arith.constant dense<0.000000e+00> : vector<2x8x8xf32>
    %232 = tpu.matmul %225, %228, %cst_59 {dimension_numbers = #tpu.dot_dimension_numbers<[2], [2], [1], [1], [0, 0, 0, 1, 1, 1], [0], [0]>} : vector<2x8x8xbf16>, vector<2x8x8xbf16>, vector<2x8x8xf32> -> vector<2x8x8xf32>
    "tpu.trace_stop"() : () -> ()
    %233 = arith.addf %232, %15 : vector<2x8x8xf32>
    %cst_60 = arith.constant dense<0xFF800000> : vector<2x8xf32>
    %234 = vector.multi_reduction <maximumf>, %233, %cst_60 [2] : vector<2x8x8xf32> to vector<2x8xf32>
    %235 = vector.shape_cast %234 : vector<2x8xf32> to vector<2x8x1xf32>
    %236 = vector.broadcast %235 : vector<2x8x1xf32> to vector<2x8x8xf32>
    %237 = arith.subf %233, %236 : vector<2x8x8xf32>
    %238 = math.exp %237 : vector<2x8x8xf32>
    %cst_61 = arith.constant dense<0.000000e+00> : vector<2x8xf32>
    %239 = vector.multi_reduction <add>, %238, %cst_61 [2] : vector<2x8x8xf32> to vector<2x8xf32>
    %240 = vector.shape_cast %239 : vector<2x8xf32> to vector<2x8x1xf32>
    %241 = tpu.reciprocal %240 {approx = true} : vector<2x8x1xf32> -> vector<2x8x1xf32>
    %242 = vector.broadcast %241 : vector<2x8x1xf32> to vector<2x8x8xf32>
    %243 = arith.mulf %238, %242 : vector<2x8x8xf32>
    %244 = arith.truncf %243 : vector<2x8x8xf32> to vector<2x8x8xbf16>
    "tpu.trace_start"() <{level = 10 : i32, message = "bqk,bkd->bqd"}> : () -> ()
    %cst_62 = arith.constant dense<0.000000e+00> : vector<2x8x8xf32>
    %245 = tpu.matmul %244, %231, %cst_62 {dimension_numbers = #tpu.dot_dimension_numbers<[2], [1], [1], [2], [0, 0, 0, 1, 1, 2], [0], [0]>} : vector<2x8x8xbf16>, vector<2x8x8xbf16>, vector<2x8x8xf32> -> vector<2x8x8xf32>
    "tpu.trace_stop"() : () -> ()
    %246 = vector.shape_cast %245 : vector<2x8x8xf32> to vector<16x8xf32>
    %247 = vector.extract_strided_slice %167 {offsets = [0, 24], sizes = [16, 8], strides = [1, 1]} : vector<16x32xf32> to vector<16x8xf32>
    %248 = vector.shape_cast %247 : vector<16x8xf32> to vector<2x8x8xf32>
    %249 = arith.truncf %248 : vector<2x8x8xf32> to vector<2x8x8xbf16>
    %250 = vector.extract_strided_slice %172 {offsets = [0, 24], sizes = [16, 8], strides = [1, 1]} : vector<16x32xf32> to vector<16x8xf32>
    %251 = vector.shape_cast %250 : vector<16x8xf32> to vector<2x8x8xf32>
    %252 = arith.truncf %251 : vector<2x8x8xf32> to vector<2x8x8xbf16>
    %253 = vector.extract_strided_slice %173 {offsets = [0, 24], sizes = [16, 8], strides = [1, 1]} : vector<16x32xf32> to vector<16x8xf32>
    %254 = vector.shape_cast %253 : vector<16x8xf32> to vector<2x8x8xf32>
    %255 = arith.truncf %254 : vector<2x8x8xf32> to vector<2x8x8xbf16>
    "tpu.trace_start"() <{level = 10 : i32, message = "bqd,bkd->bqk"}> : () -> ()
    %cst_63 = arith.constant dense<0.000000e+00> : vector<2x8x8xf32>
    %256 = tpu.matmul %249, %252, %cst_63 {dimension_numbers = #tpu.dot_dimension_numbers<[2], [2], [1], [1], [0, 0, 0, 1, 1, 1], [0], [0]>} : vector<2x8x8xbf16>, vector<2x8x8xbf16>, vector<2x8x8xf32> -> vector<2x8x8xf32>
    "tpu.trace_stop"() : () -> ()
    %257 = arith.addf %256, %15 : vector<2x8x8xf32>
    %cst_64 = arith.constant dense<0xFF800000> : vector<2x8xf32>
    %258 = vector.multi_reduction <maximumf>, %257, %cst_64 [2] : vector<2x8x8xf32> to vector<2x8xf32>
    %259 = vector.shape_cast %258 : vector<2x8xf32> to vector<2x8x1xf32>
    %260 = vector.broadcast %259 : vector<2x8x1xf32> to vector<2x8x8xf32>
    %261 = arith.subf %257, %260 : vector<2x8x8xf32>
    %262 = math.exp %261 : vector<2x8x8xf32>
    %cst_65 = arith.constant dense<0.000000e+00> : vector<2x8xf32>
    %263 = vector.multi_reduction <add>, %262, %cst_65 [2] : vector<2x8x8xf32> to vector<2x8xf32>
    %264 = vector.shape_cast %263 : vector<2x8xf32> to vector<2x8x1xf32>
    %265 = tpu.reciprocal %264 {approx = true} : vector<2x8x1xf32> -> vector<2x8x1xf32>
    %266 = vector.broadcast %265 : vector<2x8x1xf32> to vector<2x8x8xf32>
    %267 = arith.mulf %262, %266 : vector<2x8x8xf32>
    %268 = arith.truncf %267 : vector<2x8x8xf32> to vector<2x8x8xbf16>
    "tpu.trace_start"() <{level = 10 : i32, message = "bqk,bkd->bqd"}> : () -> ()
    %cst_66 = arith.constant dense<0.000000e+00> : vector<2x8x8xf32>
    %269 = tpu.matmul %268, %255, %cst_66 {dimension_numbers = #tpu.dot_dimension_numbers<[2], [1], [1], [2], [0, 0, 0, 1, 1, 2], [0], [0]>} : vector<2x8x8xbf16>, vector<2x8x8xbf16>, vector<2x8x8xf32> -> vector<2x8x8xf32>
    "tpu.trace_stop"() : () -> ()
    %270 = vector.shape_cast %269 : vector<2x8x8xf32> to vector<16x8xf32>
    %271 = tpu.concatenate %198, %222, %246, %270 in 1 : vector<16x8xf32>, vector<16x8xf32>, vector<16x8xf32>, vector<16x8xf32> -> vector<16x32xf32>
    %272 = arith.truncf %271 : vector<16x32xf32> to vector<16x32xbf16>
    %cst_67 = arith.constant dense<0.000000e+00> : vector<16x32xf32>
    %273 = tpu.matmul %272, %174, %cst_67 {dimension_numbers = #tpu.dot_dimension_numbers<[1], [0], [0], [1], [0, 0, 1, 1], [], []>} : vector<16x32xbf16>, vector<32x32xbf16>, vector<16x32xf32> -> vector<16x32xf32>
    %274 = vector.broadcast %21 : vector<1x32xf32> to vector<16x32xf32>
    %275 = arith.addf %273, %274 : vector<16x32xf32>
    %276 = arith.addf %162, %275 : vector<16x32xf32>
    %cst_68 = arith.constant dense<0.000000e+00> : vector<16xf32>
    %277 = vector.multi_reduction <add>, %276, %cst_68 [1] : vector<16x32xf32> to vector<16xf32>
    %278 = vector.shape_cast %277 : vector<16xf32> to vector<16x1xf32>
    %cst_69 = arith.constant 3.200000e+01 : f32
    %279 = vector.broadcast %cst_69 : f32 to vector<16x1xf32>
    %280 = arith.divf %278, %279 : vector<16x1xf32>
    %281 = vector.broadcast %280 : vector<16x1xf32> to vector<16x32xf32>
    %282 = arith.subf %276, %281 : vector<16x32xf32>
    %283 = arith.mulf %282, %282 : vector<16x32xf32>
    %cst_70 = arith.constant dense<0.000000e+00> : vector<16xf32>
    %284 = vector.multi_reduction <add>, %283, %cst_70 [1] : vector<16x32xf32> to vector<16xf32>
    %285 = vector.shape_cast %284 : vector<16xf32> to vector<16x1xf32>
    %cst_71 = arith.constant 3.200000e+01 : f32
    %286 = vector.broadcast %cst_71 : f32 to vector<16x1xf32>
    %287 = arith.divf %285, %286 : vector<16x1xf32>
    %288 = vector.broadcast %280 : vector<16x1xf32> to vector<16x32xf32>
    %289 = arith.subf %276, %288 : vector<16x32xf32>
    %cst_72 = arith.constant 9.99999974E-6 : f32
    %290 = vector.broadcast %cst_72 : f32 to vector<16x1xf32>
    %291 = arith.addf %287, %290 : vector<16x1xf32>
    %292 = math.rsqrt %291 : vector<16x1xf32>
    %293 = vector.broadcast %292 : vector<16x1xf32> to vector<16x32xf32>
    %294 = arith.mulf %289, %293 : vector<16x32xf32>
    %295 = vector.broadcast %26 : vector<1x32xf32> to vector<16x32xf32>
    %296 = arith.mulf %294, %295 : vector<16x32xf32>
    %297 = vector.broadcast %27 : vector<1x32xf32> to vector<16x32xf32>
    %298 = arith.addf %296, %297 : vector<16x32xf32>
    %299 = arith.truncf %298 : vector<16x32xf32> to vector<16x32xbf16>
    %c0_73 = arith.constant 0 : index
    %c0_74 = arith.constant 0 : index
    %300 = vector.load %arg10[%c0_73, %c0_74] : memref<32x64xbf16, #tpu.memory_space<vmem>>, vector<32x64xbf16>
    %cst_75 = arith.constant dense<0.000000e+00> : vector<16x64xf32>
    %301 = tpu.matmul %299, %300, %cst_75 {dimension_numbers = #tpu.dot_dimension_numbers<[1], [0], [0], [1], [0, 0, 1, 1], [], []>} : vector<16x32xbf16>, vector<32x64xbf16>, vector<16x64xf32> -> vector<16x64xf32>
    %302 = vector.broadcast %22 : vector<1x64xf32> to vector<16x64xf32>
    %303 = arith.addf %301, %302 : vector<16x64xf32>
    %cst_76 = arith.constant 0.000000e+00 : f32
    %304 = vector.broadcast %cst_76 : f32 to vector<16x64xf32>
    %305 = arith.maximumf %303, %304 : vector<16x64xf32>
    %306 = arith.truncf %305 : vector<16x64xf32> to vector<16x64xbf16>
    %c0_77 = arith.constant 0 : index
    %c0_78 = arith.constant 0 : index
    %307 = vector.load %arg11[%c0_77, %c0_78] : memref<64x32xbf16, #tpu.memory_space<vmem>>, vector<64x32xbf16>
    %cst_79 = arith.constant dense<0.000000e+00> : vector<16x32xf32>
    %308 = tpu.matmul %306, %307, %cst_79 {dimension_numbers = #tpu.dot_dimension_numbers<[1], [0], [0], [1], [0, 0, 1, 1], [], []>} : vector<16x64xbf16>, vector<64x32xbf16>, vector<16x32xf32> -> vector<16x32xf32>
    %309 = vector.broadcast %23 : vector<1x32xf32> to vector<16x32xf32>
    %310 = arith.addf %308, %309 : vector<16x32xf32>
    %311 = arith.addf %298, %310 : vector<16x32xf32>
    %cst_80 = arith.constant dense<0.000000e+00> : vector<16xf32>
    %312 = vector.multi_reduction <add>, %311, %cst_80 [1] : vector<16x32xf32> to vector<16xf32>
    %313 = vector.shape_cast %312 : vector<16xf32> to vector<16x1xf32>
    %cst_81 = arith.constant 3.200000e+01 : f32
    %314 = vector.broadcast %cst_81 : f32 to vector<16x1xf32>
    %315 = arith.divf %313, %314 : vector<16x1xf32>
    %316 = vector.broadcast %315 : vector<16x1xf32> to vector<16x32xf32>
    %317 = arith.subf %311, %316 : vector<16x32xf32>
    %318 = arith.mulf %317, %317 : vector<16x32xf32>
    %cst_82 = arith.constant dense<0.000000e+00> : vector<16xf32>
    %319 = vector.multi_reduction <add>, %318, %cst_82 [1] : vector<16x32xf32> to vector<16xf32>
    %320 = vector.shape_cast %319 : vector<16xf32> to vector<16x1xf32>
    %cst_83 = arith.constant 3.200000e+01 : f32
    %321 = vector.broadcast %cst_83 : f32 to vector<16x1xf32>
    %322 = arith.divf %320, %321 : vector<16x1xf32>
    %323 = vector.broadcast %315 : vector<16x1xf32> to vector<16x32xf32>
    %324 = arith.subf %311, %323 : vector<16x32xf32>
    %cst_84 = arith.constant 9.99999974E-6 : f32
    %325 = vector.broadcast %cst_84 : f32 to vector<16x1xf32>
    %326 = arith.addf %322, %325 : vector<16x1xf32>
    %327 = math.rsqrt %326 : vector<16x1xf32>
    %328 = vector.broadcast %327 : vector<16x1xf32> to vector<16x32xf32>
    %329 = arith.mulf %324, %328 : vector<16x32xf32>
    %330 = vector.broadcast %28 : vector<1x32xf32> to vector<16x32xf32>
    %331 = arith.mulf %329, %330 : vector<16x32xf32>
    %332 = vector.broadcast %29 : vector<1x32xf32> to vector<16x32xf32>
    %333 = arith.addf %331, %332 : vector<16x32xf32>
    %c0_85 = arith.constant 0 : index
    %c0_86 = arith.constant 0 : index
    %334 = vector.load %arg13[%c0_85, %c0_86] : memref<16x32xf32, #tpu.memory_space<vmem>>, vector<16x32xf32>
    tpu.vector_store %arg13[%c0_85, %c0_86], %333 {strides = array<i32>} : memref<16x32xf32, #tpu.memory_space<vmem>>, vector<16x32xf32>,
    return
  }
  func.func @transform_0(%arg0: i32) -> (i32, i32) {
    %c0_i32 = arith.constant 0 : i32
    %c0_i32_0 = arith.constant 0 : i32
    return %arg0, %c0_i32 : i32, i32
  }
  func.func @transform_1(%arg0: i32) -> (i32, i32) {
    %c0_i32 = arith.constant 0 : i32
    %c0_i32_0 = arith.constant 0 : i32
    return %arg0, %c0_i32 : i32, i32
  }
  func.func @transform_2(%arg0: i32) -> (i32, i32, i32) {
    %c0_i32 = arith.constant 0 : i32
    %c0_i32_0 = arith.constant 0 : i32
    %c0_i32_1 = arith.constant 0 : i32
    return %arg0, %c0_i32, %c0_i32_0 : i32, i32, i32
  }
  func.func @transform_3(%arg0: i32) -> (i32, i32, i32) {
    %c0_i32 = arith.constant 0 : i32
    %c0_i32_0 = arith.constant 0 : i32
    %c0_i32_1 = arith.constant 0 : i32
    return %arg0, %c0_i32, %c0_i32_0 : i32, i32, i32
  }
  func.func @transform_4(%arg0: i32) -> (i32, i32) {
    %c0_i32 = arith.constant 0 : i32
    %c0_i32_0 = arith.constant 0 : i32
    %c0_i32_1 = arith.constant 0 : i32
    return %c0_i32, %c0_i32_0 : i32, i32
  }
  func.func @transform_5(%arg0: i32) -> (i32, i32) {
    %c0_i32 = arith.constant 0 : i32
    %c0_i32_0 = arith.constant 0 : i32
    %c0_i32_1 = arith.constant 0 : i32
    return %c0_i32, %c0_i32_0 : i32, i32
  }
  func.func @transform_6(%arg0: i32) -> (i32, i32) {
    %c0_i32 = arith.constant 0 : i32
    %c0_i32_0 = arith.constant 0 : i32
    %c0_i32_1 = arith.constant 0 : i32
    return %c0_i32, %c0_i32_0 : i32, i32
  }
  func.func @transform_7(%arg0: i32) -> (i32, i32) {
    %c0_i32 = arith.constant 0 : i32
    %c0_i32_0 = arith.constant 0 : i32
    %c0_i32_1 = arith.constant 0 : i32
    return %c0_i32, %c0_i32_0 : i32, i32
  }
  func.func @transform_8(%arg0: i32) -> (i32, i32) {
    %c0_i32 = arith.constant 0 : i32
    %c0_i32_0 = arith.constant 0 : i32
    %c0_i32_1 = arith.constant 0 : i32
    return %c0_i32, %c0_i32_0 : i32, i32
  }
  func.func @transform_9(%arg0: i32) -> (i32, i32) {
    %c0_i32 = arith.constant 0 : i32
    %c0_i32_0 = arith.constant 0 : i32
    %c0_i32_1 = arith.constant 0 : i32
    return %c0_i32, %c0_i32_0 : i32, i32
  }
  func.func @transform_10(%arg0: i32) -> (i32, i32) {
    %c0_i32 = arith.constant 0 : i32
    %c0_i32_0 = arith.constant 0 : i32
    %c0_i32_1 = arith.constant 0 : i32
    return %c0_i32, %c0_i32_0 : i32, i32
  }
  func.func @transform_11(%arg0: i32) -> (i32, i32) {
    %c0_i32 = arith.constant 0 : i32
    %c0_i32_0 = arith.constant 0 : i32
    %c0_i32_1 = arith.constant 0 : i32
    return %c0_i32, %c0_i32_0 : i32, i32
  }
  func.func @transform_12(%arg0: i32) -> (i32, i32) {
    %c0_i32 = arith.constant 0 : i32
    %c0_i32_0 = arith.constant 0 : i32
    return %arg0, %c0_i32 : i32, i32
  }
}

</mosaic_0001>

<llo_original>
// kernel: tpu_custom_call.1
$region0: #{tpu_custom_call.1}
  #allocation0 [shape = 'u32[]', space=smem, size = 0x4, offset = 0x4, fixed_abs, tag = 'smem constant byte address 0x4 - core index']
  #allocation1 [shape = 'u32[144,128]{1,0:T(1,128)}', space=vmem, size = 0x12000, scoped, tag = 'internal scratch']
  %s0 = inlined_call_operand.vmem [shape: f32[16,32], index: 0, kind: input, shape index: {}]
  %s1 = inlined_call_operand.hbm [shape: bf16[16,32], index: 1, kind: input, shape index: {}]
  %s2 = inlined_call_operand.hbm [shape: s8[2,8,8], index: 2, kind: input, shape index: {}]
  %s3 = inlined_call_operand.hbm [shape: s8[2,8,8], index: 3, kind: input, shape index: {}]
  %s4 = inlined_call_operand.vmem [shape: bf16[32,96], index: 4, kind: input, shape index: {}]
  %s5 = inlined_call_operand.vmem [shape: bf16[32,32], index: 5, kind: input, shape index: {}]
  %s6 = inlined_call_operand.hbm [shape: bf16[32,32], index: 6, kind: input, shape index: {}]
  %s7 = inlined_call_operand.hbm [shape: bf16[32,64], index: 7, kind: input, shape index: {}]
  %s8 = inlined_call_operand.hbm [shape: bf16[32,32], index: 8, kind: input, shape index: {}]
  %s9 = inlined_call_operand.vmem [shape: bf16[32,64], index: 9, kind: input, shape index: {}]
  %s10 = inlined_call_operand.vmem [shape: bf16[64,32], index: 10, kind: input, shape index: {}]
  %s11 = inlined_call_operand.hbm [shape: f32[16,128], index: 11, kind: input, shape index: {}]
  %s12 = inlined_call_operand.hbm [shape: f32[16,32], index: 12, kind: output, shape index: {}]
  %s13 = sld [smem:[#allocation0]]
  $region86: #{tpu_custom_call.1} parent=0
    _
  %s15 = ssub.s32 1, %s13
  %s16 = scalar_select 0, %s15, %s13
  $region1: #{tpu_custom_call.1} parent=0
    #allocation2 [shape = 'u8[4096]{0}', space=vmem, size = 0x1000, scoped, tag = 'input window, operand 1, single buffered']
    #allocation3 [shape = 's32[1]{0}', space=sflag, size = 0x4, scoped, tag = 'scoped memory for tpu_custom_call.1']
    #allocation4 [shape = 's32[1]{0}', space=sflag, size = 0x4, scoped, tag = 'scoped memory for tpu_custom_call.1']
    #allocation5 [shape = 'u8[2048]{0}', space=vmem, size = 0x800, scoped, tag = 'input window, operand 2, single buffered']
    #allocation6 [shape = 's32[1]{0}', space=sflag, size = 0x4, scoped, tag = 'scoped memory for tpu_custom_call.1']
    #allocation7 [shape = 'u8[2048]{0}', space=vmem, size = 0x800, scoped, tag = 'input window, operand 3, single buffered']
    #allocation8 [shape = 'u8[8192]{0}', space=vmem, size = 0x2000, scoped, tag = 'input window, operand 6, single buffered']
    #allocation9 [shape = 's32[1]{0}', space=sflag, size = 0x4, scoped, tag = 'scoped memory for tpu_custom_call.1']
    #allocation10 [shape = 'u8[8192]{0}', space=vmem, size = 0x2000, scoped, tag = 'input window, operand 7, single buffered']
    #allocation11 [shape = 'u8[8192]{0}', space=vmem, size = 0x2000, scoped, tag = 'input window, operand 8, single buffered']
    #allocation12 [shape = 's32[1]{0}', space=sflag, size = 0x4, scoped, tag = 'scoped memory for tpu_custom_call.1']
    #allocation13 [shape = 'u8[8192]{0}', space=vmem, size = 0x2000, scoped, tag = 'input window, operand 11, single buffered']
    #allocation14 [shape = 'u8[8192]{0}', space=vmem, size = 0x2000, scoped, tag = 'output window, operand 0, single buffered']
    %17 = vsyncpa [#allocation3], 0
    %18 = vsyncpa [#allocation6], 0
    %19 = vsyncpa [#allocation9], 0
    %20 = vsyncpa [#allocation12], 0
    %21 = vsyncpa [#allocation4], 0
    // Predicated region
    $region2: #{tpu_custom_call.1} parent=1 // pred_check
      _
    $region3: #{tpu_custom_call.1} parent=1 // pred_check_branch
      %23 = sbr.rel (0) target = $region5
    $region4: #{tpu_custom_call.1} parent=1 // pred_region
      _
    $region5: #{tpu_custom_call.1} parent=1 // pred_fallthru
      _
    // Predicated region
    $region6: #{tpu_custom_call.1} parent=1 // pred_check
      _
    $region7: #{tpu_custom_call.1} parent=1 // pred_check_branch
      %25 = sbr.rel (0) target = $region9
    $region8: #{tpu_custom_call.1} parent=1 // pred_region
      %s27 = ssub.s32 128, 128
      %28 = vsyncadd [#allocation3], %s27
      %s29 = sshll.u32 [#allocation2], 4
      %s30 = int_to_ptr.vmem [resolvable:$true] %s29
      %35 = dma.hbm_to_vmem [thread:$0]  %s1, 128, %s30, [#allocation3], 64, 64, 4
    $region9: #{tpu_custom_call.1} parent=1 // pred_fallthru
      _
    // Predicated region
    $region10: #{tpu_custom_call.1} parent=1 // pred_check
      _
    $region11: #{tpu_custom_call.1} parent=1 // pred_check_branch
      %37 = sbr.rel (0) target = $region13
    $region12: #{tpu_custom_call.1} parent=1 // pred_region
      %s39 = ssub.s32 64, 64
      %40 = vsyncadd [#allocation6], %s39
      %s41 = sshll.u32 [#allocation5], 4
      %s42 = int_to_ptr.vmem [resolvable:$true] %s41
      %47 = dma.hbm_to_vmem [thread:$0]  %s2, 64, %s42, [#allocation6], 32, 32, 2
    $region13: #{tpu_custom_call.1} parent=1 // pred_fallthru
      _
    // Predicated region
    $region14: #{tpu_custom_call.1} parent=1 // pred_check
      _
    $region15: #{tpu_custom_call.1} parent=1 // pred_check_branch
      %49 = sbr.rel (0) target = $region17
    $region16: #{tpu_custom_call.1} parent=1 // pred_region
      %s51 = ssub.s32 64, 64
      %52 = vsyncadd [#allocation6], %s51
      %s53 = sshll.u32 [#allocation7], 4
      %s54 = int_to_ptr.vmem [resolvable:$true] %s53
      %59 = dma.hbm_to_vmem [thread:$0]  %s3, 64, %s54, [#allocation6], 32, 32, 2
    $region17: #{tpu_custom_call.1} parent=1 // pred_fallthru
      _
    // Predicated region
    $region18: #{tpu_custom_call.1} parent=1 // pred_check
      _
    $region19: #{tpu_custom_call.1} parent=1 // pred_check_branch
      %61 = sbr.rel (0) target = $region21
    $region20: #{tpu_custom_call.1} parent=1 // pred_region
      _
    $region21: #{tpu_custom_call.1} parent=1 // pred_fallthru
      _
    // Predicated region
    $region22: #{tpu_custom_call.1} parent=1 // pred_check
      _
    $region23: #{tpu_custom_call.1} parent=1 // pred_check_branch
      %63 = sbr.rel (0) target = $region25
    $region24: #{tpu_custom_call.1} parent=1 // pred_region
      _
    $region25: #{tpu_custom_call.1} parent=1 // pred_fallthru
      _
    // Predicated region
    $region26: #{tpu_custom_call.1} parent=1 // pred_check
      _
    $region27: #{tpu_custom_call.1} parent=1 // pred_check_branch
      %65 = sbr.rel (0) target = $region29
    $region28: #{tpu_custom_call.1} parent=1 // pred_region
      %s67 = ssub.s32 256, 256
      %68 = vsyncadd [#allocation9], %s67
      %s69 = sshll.u32 [#allocation8], 4
      %s70 = int_to_ptr.vmem [resolvable:$true] %s69
      %75 = dma.hbm_to_vmem [thread:$0]  %s6, 256, %s70, [#allocation9], 64, 64, 4
    $region29: #{tpu_custom_call.1} parent=1 // pred_fallthru
      _
    // Predicated region
    $region30: #{tpu_custom_call.1} parent=1 // pred_check
      _
    $region31: #{tpu_custom_call.1} parent=1 // pred_check_branch
      %77 = sbr.rel (0) target = $region33
    $region32: #{tpu_custom_call.1} parent=1 // pred_region
      %s79 = ssub.s32 256, 256
      %80 = vsyncadd [#allocation9], %s79
      %s81 = sshll.u32 [#allocation10], 4
      %s82 = int_to_ptr.vmem [resolvable:$true] %s81
      %87 = dma.hbm_to_vmem [thread:$0]  %s7, 256, %s82, [#allocation9], 64, 64, 4
    $region33: #{tpu_custom_call.1} parent=1 // pred_fallthru
      _
    // Predicated region
    $region34: #{tpu_custom_call.1} parent=1 // pred_check
      _
    $region35: #{tpu_custom_call.1} parent=1 // pred_check_branch
      %89 = sbr.rel (0) target = $region37
    $region36: #{tpu_custom_call.1} parent=1 // pred_region
      %s91 = ssub.s32 256, 256
      %92 = vsyncadd [#allocation12], %s91
      %s93 = sshll.u32 [#allocation11], 4
      %s94 = int_to_ptr.vmem [resolvable:$true] %s93
      %99 = dma.hbm_to_vmem [thread:$0]  %s8, 256, %s94, [#allocation12], 64, 64, 4
    $region37: #{tpu_custom_call.1} parent=1 // pred_fallthru
      _
    // Predicated region
    $region38: #{tpu_custom_call.1} parent=1 // pred_check
      _
    $region39: #{tpu_custom_call.1} parent=1 // pred_check_branch
      %101 = sbr.rel (0) target = $region41
    $region40: #{tpu_custom_call.1} parent=1 // pred_region
      _
    $region41: #{tpu_custom_call.1} parent=1 // pred_fallthru
      _
    // Predicated region
    $region42: #{tpu_custom_call.1} parent=1 // pred_check
      _
    $region43: #{tpu_custom_call.1} parent=1 // pred_check_branch
      %103 = sbr.rel (0) target = $region45
    $region44: #{tpu_custom_call.1} parent=1 // pred_region
      _
    $region45: #{tpu_custom_call.1} parent=1 // pred_fallthru
      _
    // Predicated region
    $region46: #{tpu_custom_call.1} parent=1 // pred_check
      _
    $region47: #{tpu_custom_call.1} parent=1 // pred_check_branch
      %105 = sbr.rel (0) target = $region49
    $region48: #{tpu_custom_call.1} parent=1 // pred_region
      %s107 = ssub.s32 256, 256
      %108 = vsyncadd [#allocation12], %s107
      %s109 = sshll.u32 [#allocation13], 4
      %s110 = int_to_ptr.vmem [resolvable:$true] %s109
      %115 = dma.hbm_to_vmem [thread:$0]  %s11, 256, %s110, [#allocation12], 128, 128, 8
    $region49: #{tpu_custom_call.1} parent=1 // pred_fallthru
      _
    // Predicated region
    $region50: #{tpu_custom_call.1} parent=1 // pred_check
      _
    $region51: #{tpu_custom_call.1} parent=1 // pred_check_branch
      %117 = sbr.rel (0) target = $region53
    $region52: #{tpu_custom_call.1} parent=1 // pred_region
      %118 = dma.done [#allocation3], 128
    $region53: #{tpu_custom_call.1} parent=1 // pred_fallthru
      _
    // Predicated region
    $region54: #{tpu_custom_call.1} parent=1 // pred_check
      _
    $region55: #{tpu_custom_call.1} parent=1 // pred_check_branch
      %120 = sbr.rel (0) target = $region57
    $region56: #{tpu_custom_call.1} parent=1 // pred_region
      %121 = dma.done [#allocation6], 64
    $region57: #{tpu_custom_call.1} parent=1 // pred_fallthru
      _
    // Predicated region
    $region58: #{tpu_custom_call.1} parent=1 // pred_check
      _
    $region59: #{tpu_custom_call.1} parent=1 // pred_check_branch
      %123 = sbr.rel (0) target = $region61
    $region60: #{tpu_custom_call.1} parent=1 // pred_region
      %124 = dma.done [#allocation6], 64
    $region61: #{tpu_custom_call.1} parent=1 // pred_fallthru
      _
    // Predicated region
    $region62: #{tpu_custom_call.1} parent=1 // pred_check
      _
    $region63: #{tpu_custom_call.1} parent=1 // pred_check_branch
      %126 = sbr.rel (0) target = $region65
    $region64: #{tpu_custom_call.1} parent=1 // pred_region
      %127 = dma.done [#allocation9], 256
    $region65: #{tpu_custom_call.1} parent=1 // pred_fallthru
      _
    // Predicated region
    $region66: #{tpu_custom_call.1} parent=1 // pred_check
      _
    $region67: #{tpu_custom_call.1} parent=1 // pred_check_branch
      %129 = sbr.rel (0) target = $region69
    $region68: #{tpu_custom_call.1} parent=1 // pred_region
      %130 = dma.done [#allocation9], 256
    $region69: #{tpu_custom_call.1} parent=1 // pred_fallthru
      _
    // Predicated region
    $region70: #{tpu_custom_call.1} parent=1 // pred_check
      _
    $region71: #{tpu_custom_call.1} parent=1 // pred_check_branch
      %132 = sbr.rel (0) target = $region73
    $region72: #{tpu_custom_call.1} parent=1 // pred_region
      %133 = dma.done [#allocation12], 256
    $region73: #{tpu_custom_call.1} parent=1 // pred_fallthru
      _
    // Predicated region
    $region74: #{tpu_custom_call.1} parent=1 // pred_check
      _
    $region75: #{tpu_custom_call.1} parent=1 // pred_check_branch
      %135 = sbr.rel (0) target = $region77
    $region76: #{tpu_custom_call.1} parent=1 // pred_region
      %136 = dma.done [#allocation12], 256
    $region77: #{tpu_custom_call.1} parent=1 // pred_fallthru
      _
    %v138 = vld [vmem:[%s0] sm:$0xff]
    %v139 = vld [vmem:[%s0 + $0x8] sm:$0xff]
    %v140 = vld [vmem:[#allocation2] sm:$0xf]
    %v141 = vld [vmem:[#allocation2 + $0x4] sm:$0xf]
    %v142 = vld [vmem:[#allocation5] sm:$0x3]
    %v143 = vld [vmem:[#allocation5 + $0x2] sm:$0x3]
    %v144 = vunpack.c.0.s8 %v142
    %v145 = vunpack.c.0.s8 %v143
    %v146 = vcvt.s32.f32 %v144
    %v147 = vcvt.s32.f32 %v145
    %vm148 = vcmp.eq.f32.partialorder %v146, 0.0
    %vm149 = vcmp.eq.f32.partialorder %v147, 0.0
    %v150 = vsel %vm148, -1e+09, 0.0
    %v151 = vsel %vm149, -1e+09, 0.0
    %v152 = vld [vmem:[#allocation7] sm:$0x3]
    %v153 = vld [vmem:[#allocation7 + $0x2] sm:$0x3]
    %v154 = vunpack.c.0.s8 %v152
    %v155 = vunpack.c.0.s8 %v153
    %v156 = vcvt.s32.f32 %v154
    %v157 = vcvt.s32.f32 %v155
    %vm158 = vcmp.eq.f32.partialorder %v156, 0.0
    %vm159 = vcmp.eq.f32.partialorder %v157, 0.0
    %v160 = vsel %vm158, -1e+09, 0.0
    %v161 = vsel %vm159, -1e+09, 0.0
    %v162 = vld [vmem:[#allocation13] sm:$0xff]
    %v163 = vld [vmem:[#allocation13 + $0x8] sm:$0xff]
    %v164 = vpack.c.bf16 %v139, %v138
    %v165 = vld [vmem:[%s4] sm:$0xf]
    %v166 = vld [vmem:[%s4 + $0x4] sm:$0xf]
    %v167 = vld [vmem:[%s4 + $0x8] sm:$0xf]
    %v168 = vld [vmem:[%s4 + $0xc] sm:$0xf]
    %v169 = vlaneseq
    %v170 = vshrl.u32 %v169, 7
    %v171 = vsub.s32 0, %v170
    %v172 = vrot.slane %v162, %v171
    %v177 = vunpack.c.l.b16 %v165
    %v178 = vunpack.c.l.b16 %v166
    %v179 = vunpack.c.l.b16 %v167
    %v180 = vunpack.c.l.b16 %v168
    %v181 = vpack.c.b16 %v178, %v177
    %v182 = vpack.c.b16 %v180, %v179
    %vm185 = vcmask 261120
    %v187 = vsel %vm185, %v164, 0
    %189 = vmatprep.subr.bf16.mxu0 0
    %190 = vmatpush1.bf16.msra.mxu0 %v181
    %191 = vmatprep.subr.bf16.mxu0 0
    %192 = vmatpush1.bf16.msra.mxu0 %v182
    %193 = vmatprep.subr.bf16.mxu0 0
    %194 = vmatpush1.bf16.msra.mxu0 0
    %195 = vmatprep.subr.bf16.mxu0 0
    %196 = vmatpush1.bf16.msra.mxu0 0
    %197 = vmatprep.subr.bf16.mxu0 0
    %198 = vmatpush1.bf16.msra.mxu0 0
    %199 = vmatprep.subr.bf16.mxu0 0
    %200 = vmatpush1.bf16.msra.mxu0 0
    %201 = vmatprep.subr.bf16.mxu0 0
    %202 = vmatpush1.bf16.msra.mxu0 0
    %203 = vmatprep.subr.bf16.mxu0 0
    %204 = vmatpush1.bf16.msra.mxu0 0
    %205 = vmatprep.subr.bf16.mxu0 0
    %206 = vmatpush1.bf16.msra.mxu0 0
    %207 = vmatprep.subr.bf16.mxu0 0
    %208 = vmatpush1.bf16.msra.mxu0 0
    %209 = vmatprep.subr.bf16.mxu0 0
    %210 = vmatpush1.bf16.msra.mxu0 0
    %211 = vmatprep.subr.bf16.mxu0 0
    %212 = vmatpush1.bf16.msra.mxu0 0
    %213 = vmatprep.subr.bf16.mxu0 0
    %214 = vmatpush1.bf16.msra.mxu0 0
    %215 = vmatprep.subr.bf16.mxu0 0
    %216 = vmatpush1.bf16.msra.mxu0 0
    %217 = vmatprep.subr.bf16.mxu0 0
    %218 = vmatpush1.bf16.msra.mxu0 0
    %219 = vmatprep.subr.bf16.mxu0 0
    %220 = vmatpush1.bf16.msra.mxu0 0
    %221 = vmatprep.mubr.bf16.mxu0 0
    %222 = vmatmul.mubr.bf16.gmra.mrb[0].mxu0 %v187
    %v223 = vpop.f32.mrb[0].mxu0
    %v224 = vadd.f32 %v172, %v223
    %v225 = vpop.f32.mrb[0].mxu0
    %v226 = vpop.f32.mrb[0].mxu0
    %v227 = vadd.f32 %v172, %v226
    %v228 = vpop.f32.mrb[0].mxu0
    %229 = vdwg.mxu0
    %v230 = vld [vmem:[%s5] sm:$0xf]
    %v231 = vld [vmem:[%s5 + $0x4] sm:$0xf]
    %v232 = vld [vmem:[%s5 + $0x8] sm:$0xf]
    %v233 = vld [vmem:[%s5 + $0xc] sm:$0xf]
    %v234 = vpack.c.bf16 %v224, %v224
    %v235 = vpack.c.bf16 %v227, %v227
    %237 = vrot.lane.b32.xlu0 %v234, 96
    %v238 = vpop.permute.xlu0 %237
    %vm239 = vcmask 64512
    %v241 = vsel %vm239, %v234, 0
    %v244 = vsel %vm239, %v238, 0
    %246 = vmatprep.subr.bf16.mxu0 0
    %247 = vmatpush1.bf16.xpose.msra.mxu0 %v244
    %248 = vmatprep.subr.bf16.mxu0 0
    %249 = vmatpush1.bf16.xpose.msra.mxu0 0
    %250 = vmatprep.subr.bf16.mxu0 0
    %251 = vmatpush1.bf16.xpose.msra.mxu0 0
    %252 = vmatprep.subr.bf16.mxu0 0
    %253 = vmatpush1.bf16.xpose.msra.mxu0 0
    %254 = vmatprep.subr.bf16.mxu0 0
    %255 = vmatpush1.bf16.xpose.msra.mxu0 0
    %256 = vmatprep.subr.bf16.mxu0 0
    %257 = vmatpush1.bf16.xpose.msra.mxu0 0
    %258 = vmatprep.subr.bf16.mxu0 0
    %259 = vmatpush1.bf16.xpose.msra.mxu0 0
    %260 = vmatprep.subr.bf16.mxu0 0
    %261 = vmatpush1.bf16.xpose.msra.mxu0 0
    %262 = vmatprep.subr.bf16.mxu0 0
    %263 = vmatpush1.bf16.xpose.msra.mxu0 0
    %264 = vmatprep.subr.bf16.mxu0 0
    %265 = vmatpush1.bf16.xpose.msra.mxu0 0
    %266 = vmatprep.subr.bf16.mxu0 0
    %267 = vmatpush1.bf16.xpose.msra.mxu0 0
    %268 = vmatprep.subr.bf16.mxu0 0
    %269 = vmatpush1.bf16.xpose.msra.mxu0 0
    %270 = vmatprep.subr.bf16.mxu0 0
    %271 = vmatpush1.bf16.xpose.msra.mxu0 0
    %272 = vmatprep.subr.bf16.mxu0 0
    %273 = vmatpush1.bf16.xpose.msra.mxu0 0
    %274 = vmatprep.subr.bf16.mxu0 0
    %275 = vmatpush1.bf16.xpose.msra.mxu0 0
    %276 = vmatprep.subr.bf16.mxu0 0
    %277 = vmatpush1.bf16.xpose.msra.mxu0 0
    %278 = vmatprep.mubr.bf16.mxu0 0
    %279 = vmatmul.mubr.bf16.gmra.mrb[0].mxu0 %v241
    %v280 = vpop.f32.mrb[0].mxu0
    %v281 = vadd.f32 %v150, %v280
    %v282 = vpop.f32.mrb[0].mxu0
    %v283 = vpop.f32.mrb[0].mxu0
    %v284 = vpop.f32.mrb[0].mxu0
    %285 = vdwg.mxu0
    %287 = vrot.lane.b32.xlu0 %v235, 96
    %v288 = vpop.permute.xlu0 %287
    %v290 = vsel %vm239, %v235, 0
    %v293 = vsel %vm239, %v288, 0
    %295 = vmatprep.subr.bf16.mxu0 0
    %296 = vmatpush1.bf16.xpose.msra.mxu0 %v293
    %297 = vmatprep.subr.bf16.mxu0 0
    %298 = vmatpush1.bf16.xpose.msra.mxu0 0
    %299 = vmatprep.subr.bf16.mxu0 0
    %300 = vmatpush1.bf16.xpose.msra.mxu0 0
    %301 = vmatprep.subr.bf16.mxu0 0
    %302 = vmatpush1.bf16.xpose.msra.mxu0 0
    %303 = vmatprep.subr.bf16.mxu0 0
    %304 = vmatpush1.bf16.xpose.msra.mxu0 0
    %305 = vmatprep.subr.bf16.mxu0 0
    %306 = vmatpush1.bf16.xpose.msra.mxu0 0
    %307 = vmatprep.subr.bf16.mxu0 0
    %308 = vmatpush1.bf16.xpose.msra.mxu0 0
    %309 = vmatprep.subr.bf16.mxu0 0
    %310 = vmatpush1.bf16.xpose.msra.mxu0 0
    %311 = vmatprep.subr.bf16.mxu0 0
    %312 = vmatpush1.bf16.xpose.msra.mxu0 0
    %313 = vmatprep.subr.bf16.mxu0 0
    %314 = vmatpush1.bf16.xpose.msra.mxu0 0
    %315 = vmatprep.subr.bf16.mxu0 0
    %316 = vmatpush1.bf16.xpose.msra.mxu0 0
    %317 = vmatprep.subr.bf16.mxu0 0
    %318 = vmatpush1.bf16.xpose.msra.mxu0 0
    %319 = vmatprep.subr.bf16.mxu0 0
    %320 = vmatpush1.bf16.xpose.msra.mxu0 0
    %321 = vmatprep.subr.bf16.mxu0 0
    %322 = vmatpush1.bf16.xpose.msra.mxu0 0
    %323 = vmatprep.subr.bf16.mxu0 0
    %324 = vmatpush1.bf16.xpose.msra.mxu0 0
    %325 = vmatprep.subr.bf16.mxu0 0
    %326 = vmatpush1.bf16.xpose.msra.mxu0 0
    %327 = vmatprep.mubr.bf16.mxu0 0
    %328 = vmatmul.mubr.bf16.gmra.mrb[0].mxu0 %v290
    %v329 = vpop.f32.mrb[0].mxu0
    %v330 = vadd.f32 %v151, %v329
    %v331 = vpop.f32.mrb[0].mxu0
    %v332 = vpop.f32.mrb[0].mxu0
    %v333 = vpop.f32.mrb[0].mxu0
    %334 = vdwg.mxu0
    %v335 = vsel %vm239, %v281, -inf
    %336 = vmax.xlane.f32.xlu0 %v335
    %v337 = vpop.xlane.xlu0 %336
    %v338 = vsel %vm239, %v330, -inf
    %339 = vmax.xlane.f32.xlu0 %v338
    %v340 = vpop.xlane.xlu0 %339
    %v341 = vsub.f32 %v281, %v337
    %v342 = vsub.f32 %v330, %v340
    %v343 = vmul.f32 %v341, 1.442695
    %v344 = vpow.pop %v343
    %v345 = vmul.f32 %v342, 1.442695
    %v346 = vpow.pop %v345
    %v347 = vsel %vm239, %v344, 0.0
    %348 = vadd.xlane.f32.xlu0 %v347
    %v349 = vpop.xlane.xlu0 %348
    %v350 = vsel %vm239, %v346, 0.0
    %351 = vadd.xlane.f32.xlu0 %v350
    %v352 = vpop.xlane.xlu0 %351
    %v353 = vrcp.pop %v349
    %v354 = vrcp.pop %v352
    %v355 = vmul.f32 %v344, %v353
    %v356 = vmul.f32 %v346, %v354
    %v357 = vpack.c.bf16 %v355, %v355
    %v358 = vpack.c.bf16 %v356, %v356
    %359 = vrot.lane.b32.xlu0 %v234, 64
    %v360 = vpop.permute.xlu0 %359
    %v362 = vsel %vm239, %v357, 0
    %vm364 = vcmask 1043456
    %v366 = vsel %vm364, %v360, 0
    %368 = vmatprep.subr.bf16.mxu0 0
    %369 = vmatpush1.bf16.msra.mxu0 %v366
    %370 = vmatprep.subr.bf16.mxu0 0
    %371 = vmatpush1.bf16.msra.mxu0 0
    %372 = vmatprep.subr.bf16.mxu0 0
    %373 = vmatpush1.bf16.msra.mxu0 0
    %374 = vmatprep.subr.bf16.mxu0 0
    %375 = vmatpush1.bf16.msra.mxu0 0
    %376 = vmatprep.subr.bf16.mxu0 0
    %377 = vmatpush1.bf16.msra.mxu0 0
    %378 = vmatprep.subr.bf16.mxu0 0
    %379 = vmatpush1.bf16.msra.mxu0 0
    %380 = vmatprep.subr.bf16.mxu0 0
    %381 = vmatpush1.bf16.msra.mxu0 0
    %382 = vmatprep.subr.bf16.mxu0 0
    %383 = vmatpush1.bf16.msra.mxu0 0
    %384 = vmatprep.subr.bf16.mxu0 0
    %385 = vmatpush1.bf16.msra.mxu0 0
    %386 = vmatprep.subr.bf16.mxu0 0
    %387 = vmatpush1.bf16.msra.mxu0 0
    %388 = vmatprep.subr.bf16.mxu0 0
    %389 = vmatpush1.bf16.msra.mxu0 0
    %390 = vmatprep.subr.bf16.mxu0 0
    %391 = vmatpush1.bf16.msra.mxu0 0
    %392 = vmatprep.subr.bf16.mxu0 0
    %393 = vmatpush1.bf16.msra.mxu0 0
    %394 = vmatprep.subr.bf16.mxu0 0
    %395 = vmatpush1.bf16.msra.mxu0 0
    %396 = vmatprep.subr.bf16.mxu0 0
    %397 = vmatpush1.bf16.msra.mxu0 0
    %398 = vmatprep.subr.bf16.mxu0 0
    %399 = vmatpush1.bf16.msra.mxu0 0
    %400 = vmatprep.mubr.bf16.mxu0 0
    %401 = vmatmul.mubr.bf16.gmra.mrb[0].mxu0 %v362
    %v402 = vpop.f32.mrb[0].mxu0
    %v403 = vadd.f32 0.0, %v402
    %v404 = vpop.f32.mrb[0].mxu0
    %v405 = vpop.f32.mrb[0].mxu0
    %v406 = vpop.f32.mrb[0].mxu0
    %407 = vdwg.mxu0
    %408 = vrot.lane.b32.xlu0 %v235, 64
    %v409 = vpop.permute.xlu0 %408
    %v411 = vsel %vm239, %v358, 0
    %v414 = vsel %vm364, %v409, 0
    %416 = vmatprep.subr.bf16.mxu0 0
    %417 = vmatpush1.bf16.msra.mxu0 %v414
    %418 = vmatprep.subr.bf16.mxu0 0
    %419 = vmatpush1.bf16.msra.mxu0 0
    %420 = vmatprep.subr.bf16.mxu0 0
    %421 = vmatpush1.bf16.msra.mxu0 0
    %422 = vmatprep.subr.bf16.mxu0 0
    %423 = vmatpush1.bf16.msra.mxu0 0
    %424 = vmatprep.subr.bf16.mxu0 0
    %425 = vmatpush1.bf16.msra.mxu0 0
    %426 = vmatprep.subr.bf16.mxu0 0
    %427 = vmatpush1.bf16.msra.mxu0 0
    %428 = vmatprep.subr.bf16.mxu0 0
    %429 = vmatpush1.bf16.msra.mxu0 0
    %430 = vmatprep.subr.bf16.mxu0 0
    %431 = vmatpush1.bf16.msra.mxu0 0
    %432 = vmatprep.subr.bf16.mxu0 0
    %433 = vmatpush1.bf16.msra.mxu0 0
    %434 = vmatprep.subr.bf16.mxu0 0
    %435 = vmatpush1.bf16.msra.mxu0 0
    %436 = vmatprep.subr.bf16.mxu0 0
    %437 = vmatpush1.bf16.msra.mxu0 0
    %438 = vmatprep.subr.bf16.mxu0 0
    %439 = vmatpush1.bf16.msra.mxu0 0
    %440 = vmatprep.subr.bf16.mxu0 0
    %441 = vmatpush1.bf16.msra.mxu0 0
    %442 = vmatprep.subr.bf16.mxu0 0
    %443 = vmatpush1.bf16.msra.mxu0 0
    %444 = vmatprep.subr.bf16.mxu0 0
    %445 = vmatpush1.bf16.msra.mxu0 0
    %446 = vmatprep.subr.bf16.mxu0 0
    %447 = vmatpush1.bf16.msra.mxu0 0
    %448 = vmatprep.mubr.bf16.mxu0 0
    %449 = vmatmul.mubr.bf16.gmra.mrb[0].mxu0 %v411
    %v450 = vpop.f32.mrb[0].mxu0
    %v451 = vadd.f32 0.0, %v450
    %v452 = vpop.f32.mrb[0].mxu0
    %v453 = vpop.f32.mrb[0].mxu0
    %v454 = vpop.f32.mrb[0].mxu0
    %455 = vdwg.mxu0
    %456 = vrot.lane.b32.xlu0 %v234, 120
    %v457 = vpop.permute.xlu0 %456
    %458 = vrot.lane.b32.xlu0 %v234, 88
    %v459 = vpop.permute.xlu0 %458
    %v461 = vsel %vm239, %v457, 0
    %v464 = vsel %vm239, %v459, 0
    %466 = vmatprep.subr.bf16.mxu0 0
    %467 = vmatpush1.bf16.xpose.msra.mxu0 %v464
    %468 = vmatprep.subr.bf16.mxu0 0
    %469 = vmatpush1.bf16.xpose.msra.mxu0 0
    %470 = vmatprep.subr.bf16.mxu0 0
    %471 = vmatpush1.bf16.xpose.msra.mxu0 0
    %472 = vmatprep.subr.bf16.mxu0 0
    %473 = vmatpush1.bf16.xpose.msra.mxu0 0
    %474 = vmatprep.subr.bf16.mxu0 0
    %475 = vmatpush1.bf16.xpose.msra.mxu0 0
    %476 = vmatprep.subr.bf16.mxu0 0
    %477 = vmatpush1.bf16.xpose.msra.mxu0 0
    %478 = vmatprep.subr.bf16.mxu0 0
    %479 = vmatpush1.bf16.xpose.msra.mxu0 0
    %480 = vmatprep.subr.bf16.mxu0 0
    %481 = vmatpush1.bf16.xpose.msra.mxu0 0
    %482 = vmatprep.subr.bf16.mxu0 0
    %483 = vmatpush1.bf16.xpose.msra.mxu0 0
    %484 = vmatprep.subr.bf16.mxu0 0
    %485 = vmatpush1.bf16.xpose.msra.mxu0 0
    %486 = vmatprep.subr.bf16.mxu0 0
    %487 = vmatpush1.bf16.xpose.msra.mxu0 0
    %488 = vmatprep.subr.bf16.mxu0 0
    %489 = vmatpush1.bf16.xpose.msra.mxu0 0
    %490 = vmatprep.subr.bf16.mxu0 0
    %491 = vmatpush1.bf16.xpose.msra.mxu0 0
    %492 = vmatprep.subr.bf16.mxu0 0
    %493 = vmatpush1.bf16.xpose.msra.mxu0 0
    %494 = vmatprep.subr.bf16.mxu0 0
    %495 = vmatpush1.bf16.xpose.msra.mxu0 0
    %496 = vmatprep.subr.bf16.mxu0 0
    %497 = vmatpush1.bf16.xpose.msra.mxu0 0
    %498 = vmatprep.mubr.bf16.mxu0 0
    %499 = vmatmul.mubr.bf16.gmra.mrb[0].mxu0 %v461
    %v500 = vpop.f32.mrb[0].mxu0
    %v501 = vadd.f32 %v150, %v500
    %v502 = vpop.f32.mrb[0].mxu0
    %v503 = vpop.f32.mrb[0].mxu0
    %v504 = vpop.f32.mrb[0].mxu0
    %505 = vdwg.mxu0
    %506 = vrot.lane.b32.xlu0 %v235, 120
    %v507 = vpop.permute.xlu0 %506
    %508 = vrot.lane.b32.xlu0 %v235, 88
    %v509 = vpop.permute.xlu0 %508
    %v511 = vsel %vm239, %v507, 0
    %v514 = vsel %vm239, %v509, 0
    %516 = vmatprep.subr.bf16.mxu0 0
    %517 = vmatpush1.bf16.xpose.msra.mxu0 %v514
    %518 = vmatprep.subr.bf16.mxu0 0
    %519 = vmatpush1.bf16.xpose.msra.mxu0 0
    %520 = vmatprep.subr.bf16.mxu0 0
    %521 = vmatpush1.bf16.xpose.msra.mxu0 0
    %522 = vmatprep.subr.bf16.mxu0 0
    %523 = vmatpush1.bf16.xpose.msra.mxu0 0
    %524 = vmatprep.subr.bf16.mxu0 0
    %525 = vmatpush1.bf16.xpose.msra.mxu0 0
    %526 = vmatprep.subr.bf16.mxu0 0
    %527 = vmatpush1.bf16.xpose.msra.mxu0 0
    %528 = vmatprep.subr.bf16.mxu0 0
    %529 = vmatpush1.bf16.xpose.msra.mxu0 0
    %530 = vmatprep.subr.bf16.mxu0 0
    %531 = vmatpush1.bf16.xpose.msra.mxu0 0
    %532 = vmatprep.subr.bf16.mxu0 0
    %533 = vmatpush1.bf16.xpose.msra.mxu0 0
    %534 = vmatprep.subr.bf16.mxu0 0
    %535 = vmatpush1.bf16.xpose.msra.mxu0 0
    %536 = vmatprep.subr.bf16.mxu0 0
    %537 = vmatpush1.bf16.xpose.msra.mxu0 0
    %538 = vmatprep.subr.bf16.mxu0 0
    %539 = vmatpush1.bf16.xpose.msra.mxu0 0
    %540 = vmatprep.subr.bf16.mxu0 0
    %541 = vmatpush1.bf16.xpose.msra.mxu0 0
    %542 = vmatprep.subr.bf16.mxu0 0
    %543 = vmatpush1.bf16.xpose.msra.mxu0 0
    %544 = vmatprep.subr.bf16.mxu0 0
    %545 = vmatpush1.bf16.xpose.msra.mxu0 0
    %546 = vmatprep.subr.bf16.mxu0 0
    %547 = vmatpush1.bf16.xpose.msra.mxu0 0
    %548 = vmatprep.mubr.bf16.mxu0 0
    %549 = vmatmul.mubr.bf16.gmra.mrb[0].mxu0 %v511
    %v550 = vpop.f32.mrb[0].mxu0
    %v551 = vadd.f32 %v151, %v550
    %v552 = vpop.f32.mrb[0].mxu0
    %v553 = vpop.f32.mrb[0].mxu0
    %v554 = vpop.f32.mrb[0].mxu0
    %555 = vdwg.mxu0
    %v556 = vsel %vm239, %v501, -inf
    %557 = vmax.xlane.f32.xlu0 %v556
    %v558 = vpop.xlane.xlu0 %557
    %v559 = vsel %vm239, %v551, -inf
    %560 = vmax.xlane.f32.xlu0 %v559
    %v561 = vpop.xlane.xlu0 %560
    %v562 = vsub.f32 %v501, %v558
    %v563 = vsub.f32 %v551, %v561
    %v564 = vmul.f32 %v562, 1.442695
    %v565 = vpow.pop %v564
    %v566 = vmul.f32 %v563, 1.442695
    %v567 = vpow.pop %v566
    %v568 = vsel %vm239, %v565, 0.0
    %569 = vadd.xlane.f32.xlu0 %v568
    %v570 = vpop.xlane.xlu0 %569
    %v571 = vsel %vm239, %v567, 0.0
    %572 = vadd.xlane.f32.xlu0 %v571
    %v573 = vpop.xlane.xlu0 %572
    %v574 = vrcp.pop %v570
    %v575 = vrcp.pop %v573
    %v576 = vmul.f32 %v565, %v574
    %v577 = vmul.f32 %v567, %v575
    %v578 = vpack.c.bf16 %v576, %v576
    %v579 = vpack.c.bf16 %v577, %v577
    %580 = vrot.lane.b32.xlu0 %v234, 56
    %v581 = vpop.permute.xlu0 %580
    %v583 = vsel %vm239, %v578, 0
    %v586 = vsel %vm364, %v581, 0
    %588 = vmatprep.subr.bf16.mxu0 0
    %589 = vmatpush1.bf16.msra.mxu0 %v586
    %590 = vmatprep.subr.bf16.mxu0 0
    %591 = vmatpush1.bf16.msra.mxu0 0
    %592 = vmatprep.subr.bf16.mxu0 0
    %593 = vmatpush1.bf16.msra.mxu0 0
    %594 = vmatprep.subr.bf16.mxu0 0
    %595 = vmatpush1.bf16.msra.mxu0 0
    %596 = vmatprep.subr.bf16.mxu0 0
    %597 = vmatpush1.bf16.msra.mxu0 0
    %598 = vmatprep.subr.bf16.mxu0 0
    %599 = vmatpush1.bf16.msra.mxu0 0
    %600 = vmatprep.subr.bf16.mxu0 0
    %601 = vmatpush1.bf16.msra.mxu0 0
    %602 = vmatprep.subr.bf16.mxu0 0
    %603 = vmatpush1.bf16.msra.mxu0 0
    %604 = vmatprep.subr.bf16.mxu0 0
    %605 = vmatpush1.bf16.msra.mxu0 0
    %606 = vmatprep.subr.bf16.mxu0 0
    %607 = vmatpush1.bf16.msra.mxu0 0
    %608 = vmatprep.subr.bf16.mxu0 0
    %609 = vmatpush1.bf16.msra.mxu0 0
    %610 = vmatprep.subr.bf16.mxu0 0
    %611 = vmatpush1.bf16.msra.mxu0 0
    %612 = vmatprep.subr.bf16.mxu0 0
    %613 = vmatpush1.bf16.msra.mxu0 0
    %614 = vmatprep.subr.bf16.mxu0 0
    %615 = vmatpush1.bf16.msra.mxu0 0
    %616 = vmatprep.subr.bf16.mxu0 0
    %617 = vmatpush1.bf16.msra.mxu0 0
    %618 = vmatprep.subr.bf16.mxu0 0
    %619 = vmatpush1.bf16.msra.mxu0 0
    %620 = vmatprep.mubr.bf16.mxu0 0
    %621 = vmatmul.mubr.bf16.gmra.mrb[0].mxu0 %v583
    %v622 = vpop.f32.mrb[0].mxu0
    %v623 = vadd.f32 0.0, %v622
    %v624 = vpop.f32.mrb[0].mxu0
    %v625 = vpop.f32.mrb[0].mxu0
    %v626 = vpop.f32.mrb[0].mxu0
    %627 = vdwg.mxu0
    %628 = vrot.lane.b32.xlu0 %v235, 56
    %v629 = vpop.permute.xlu0 %628
    %v631 = vsel %vm239, %v579, 0
    %v634 = vsel %vm364, %v629, 0
    %636 = vmatprep.subr.bf16.mxu0 0
    %637 = vmatpush1.bf16.msra.mxu0 %v634
    %638 = vmatprep.subr.bf16.mxu0 0
    %639 = vmatpush1.bf16.msra.mxu0 0
    %640 = vmatprep.subr.bf16.mxu0 0
    %641 = vmatpush1.bf16.msra.mxu0 0
    %642 = vmatprep.subr.bf16.mxu0 0
    %643 = vmatpush1.bf16.msra.mxu0 0
    %644 = vmatprep.subr.bf16.mxu0 0
    %645 = vmatpush1.bf16.msra.mxu0 0
    %646 = vmatprep.subr.bf16.mxu0 0
    %647 = vmatpush1.bf16.msra.mxu0 0
    %648 = vmatprep.subr.bf16.mxu0 0
    %649 = vmatpush1.bf16.msra.mxu0 0
    %650 = vmatprep.subr.bf16.mxu0 0
    %651 = vmatpush1.bf16.msra.mxu0 0
    %652 = vmatprep.subr.bf16.mxu0 0
    %653 = vmatpush1.bf16.msra.mxu0 0
    %654 = vmatprep.subr.bf16.mxu0 0
    %655 = vmatpush1.bf16.msra.mxu0 0
    %656 = vmatprep.subr.bf16.mxu0 0
    %657 = vmatpush1.bf16.msra.mxu0 0
    %658 = vmatprep.subr.bf16.mxu0 0
    %659 = vmatpush1.bf16.msra.mxu0 0
    %660 = vmatprep.subr.bf16.mxu0 0
    %661 = vmatpush1.bf16.msra.mxu0 0
    %662 = vmatprep.subr.bf16.mxu0 0
    %663 = vmatpush1.bf16.msra.mxu0 0
    %664 = vmatprep.subr.bf16.mxu0 0
    %665 = vmatpush1.bf16.msra.mxu0 0
    %666 = vmatprep.subr.bf16.mxu0 0
    %667 = vmatpush1.bf16.msra.mxu0 0
    %668 = vmatprep.mubr.bf16.mxu0 0
    %669 = vmatmul.mubr.bf16.gmra.mrb[0].mxu0 %v631
    %v670 = vpop.f32.mrb[0].mxu0
    %v671 = vadd.f32 0.0, %v670
    %v672 = vpop.f32.mrb[0].mxu0
    %v673 = vpop.f32.mrb[0].mxu0
    %v674 = vpop.f32.mrb[0].mxu0
    %675 = vdwg.mxu0
    %676 = vrot.lane.b32.xlu0 %v234, 112
    %v677 = vpop.permute.xlu0 %676
    %678 = vrot.lane.b32.xlu0 %v234, 80
    %v679 = vpop.permute.xlu0 %678
    %v681 = vsel %vm239, %v677, 0
    %v684 = vsel %vm239, %v679, 0
    %686 = vmatprep.subr.bf16.mxu0 0
    %687 = vmatpush1.bf16.xpose.msra.mxu0 %v684
    %688 = vmatprep.subr.bf16.mxu0 0
    %689 = vmatpush1.bf16.xpose.msra.mxu0 0
    %690 = vmatprep.subr.bf16.mxu0 0
    %691 = vmatpush1.bf16.xpose.msra.mxu0 0
    %692 = vmatprep.subr.bf16.mxu0 0
    %693 = vmatpush1.bf16.xpose.msra.mxu0 0
    %694 = vmatprep.subr.bf16.mxu0 0
    %695 = vmatpush1.bf16.xpose.msra.mxu0 0
    %696 = vmatprep.subr.bf16.mxu0 0
    %697 = vmatpush1.bf16.xpose.msra.mxu0 0
    %698 = vmatprep.subr.bf16.mxu0 0
    %699 = vmatpush1.bf16.xpose.msra.mxu0 0
    %700 = vmatprep.subr.bf16.mxu0 0
    %701 = vmatpush1.bf16.xpose.msra.mxu0 0
    %702 = vmatprep.subr.bf16.mxu0 0
    %703 = vmatpush1.bf16.xpose.msra.mxu0 0
    %704 = vmatprep.subr.bf16.mxu0 0
    %705 = vmatpush1.bf16.xpose.msra.mxu0 0
    %706 = vmatprep.subr.bf16.mxu0 0
    %707 = vmatpush1.bf16.xpose.msra.mxu0 0
    %708 = vmatprep.subr.bf16.mxu0 0
    %709 = vmatpush1.bf16.xpose.msra.mxu0 0
    %710 = vmatprep.subr.bf16.mxu0 0
    %711 = vmatpush1.bf16.xpose.msra.mxu0 0
    %712 = vmatprep.subr.bf16.mxu0 0
    %713 = vmatpush1.bf16.xpose.msra.mxu0 0
    %714 = vmatprep.subr.bf16.mxu0 0
    %715 = vmatpush1.bf16.xpose.msra.mxu0 0
    %716 = vmatprep.subr.bf16.mxu0 0
    %717 = vmatpush1.bf16.xpose.msra.mxu0 0
    %718 = vmatprep.mubr.bf16.mxu0 0
    %719 = vmatmul.mubr.bf16.gmra.mrb[0].mxu0 %v681
    %v720 = vpop.f32.mrb[0].mxu0
    %v721 = vadd.f32 %v150, %v720
    %v722 = vpop.f32.mrb[0].mxu0
    %v723 = vpop.f32.mrb[0].mxu0
    %v724 = vpop.f32.mrb[0].mxu0
    %725 = vdwg.mxu0
    %726 = vrot.lane.b32.xlu0 %v235, 112
    %v727 = vpop.permute.xlu0 %726
    %728 = vrot.lane.b32.xlu0 %v235, 80
    %v729 = vpop.permute.xlu0 %728
    %v731 = vsel %vm239, %v727, 0
    %v734 = vsel %vm239, %v729, 0
    %736 = vmatprep.subr.bf16.mxu0 0
    %737 = vmatpush1.bf16.xpose.msra.mxu0 %v734
    %738 = vmatprep.subr.bf16.mxu0 0
    %739 = vmatpush1.bf16.xpose.msra.mxu0 0
    %740 = vmatprep.subr.bf16.mxu0 0
    %741 = vmatpush1.bf16.xpose.msra.mxu0 0
    %742 = vmatprep.subr.bf16.mxu0 0
    %743 = vmatpush1.bf16.xpose.msra.mxu0 0
    %744 = vmatprep.subr.bf16.mxu0 0
    %745 = vmatpush1.bf16.xpose.msra.mxu0 0
    %746 = vmatprep.subr.bf16.mxu0 0
    %747 = vmatpush1.bf16.xpose.msra.mxu0 0
    %748 = vmatprep.subr.bf16.mxu0 0
    %749 = vmatpush1.bf16.xpose.msra.mxu0 0
    %750 = vmatprep.subr.bf16.mxu0 0
    %751 = vmatpush1.bf16.xpose.msra.mxu0 0
    %752 = vmatprep.subr.bf16.mxu0 0
    %753 = vmatpush1.bf16.xpose.msra.mxu0 0
    %754 = vmatprep.subr.bf16.mxu0 0
    %755 = vmatpush1.bf16.xpose.msra.mxu0 0
    %756 = vmatprep.subr.bf16.mxu0 0
    %757 = vmatpush1.bf16.xpose.msra.mxu0 0
    %758 = vmatprep.subr.bf16.mxu0 0
    %759 = vmatpush1.bf16.xpose.msra.mxu0 0
    %760 = vmatprep.subr.bf16.mxu0 0
    %761 = vmatpush1.bf16.xpose.msra.mxu0 0
    %762 = vmatprep.subr.bf16.mxu0 0
    %763 = vmatpush1.bf16.xpose.msra.mxu0 0
    %764 = vmatprep.subr.bf16.mxu0 0
    %765 = vmatpush1.bf16.xpose.msra.mxu0 0
    %766 = vmatprep.subr.bf16.mxu0 0
    %767 = vmatpush1.bf16.xpose.msra.mxu0 0
    %768 = vmatprep.mubr.bf16.mxu0 0
    %769 = vmatmul.mubr.bf16.gmra.mrb[0].mxu0 %v731
    %v770 = vpop.f32.mrb[0].mxu0
    %v771 = vadd.f32 %v151, %v770
    %v772 = vpop.f32.mrb[0].mxu0
    %v773 = vpop.f32.mrb[0].mxu0
    %v774 = vpop.f32.mrb[0].mxu0
    %775 = vdwg.mxu0
    %v776 = vsel %vm239, %v721, -inf
    %777 = vmax.xlane.f32.xlu0 %v776
    %v778 = vpop.xlane.xlu0 %777
    %v779 = vsel %vm239, %v771, -inf
    %780 = vmax.xlane.f32.xlu0 %v779
    %v781 = vpop.xlane.xlu0 %780
    %v782 = vsub.f32 %v721, %v778
    %v783 = vsub.f32 %v771, %v781
    %v784 = vmul.f32 %v782, 1.442695
    %v785 = vpow.pop %v784
    %v786 = vmul.f32 %v783, 1.442695
    %v787 = vpow.pop %v786
    %v788 = vsel %vm239, %v785, 0.0
    %789 = vadd.xlane.f32.xlu0 %v788
    %v790 = vpop.xlane.xlu0 %789
    %v791 = vsel %vm239, %v787, 0.0
    %792 = vadd.xlane.f32.xlu0 %v791
    %v793 = vpop.xlane.xlu0 %792
    %v794 = vrcp.pop %v790
    %v795 = vrcp.pop %v793
    %v796 = vmul.f32 %v785, %v794
    %v797 = vmul.f32 %v787, %v795
    %v798 = vpack.c.bf16 %v796, %v796
    %v799 = vpack.c.bf16 %v797, %v797
    %800 = vrot.lane.b32.xlu0 %v234, 48
    %v801 = vpop.permute.xlu0 %800
    %v803 = vsel %vm239, %v798, 0
    %v806 = vsel %vm364, %v801, 0
    %808 = vmatprep.subr.bf16.mxu0 0
    %809 = vmatpush1.bf16.msra.mxu0 %v806
    %810 = vmatprep.subr.bf16.mxu0 0
    %811 = vmatpush1.bf16.msra.mxu0 0
    %812 = vmatprep.subr.bf16.mxu0 0
    %813 = vmatpush1.bf16.msra.mxu0 0
    %814 = vmatprep.subr.bf16.mxu0 0
    %815 = vmatpush1.bf16.msra.mxu0 0
    %816 = vmatprep.subr.bf16.mxu0 0
    %817 = vmatpush1.bf16.msra.mxu0 0
    %818 = vmatprep.subr.bf16.mxu0 0
    %819 = vmatpush1.bf16.msra.mxu0 0
    %820 = vmatprep.subr.bf16.mxu0 0
    %821 = vmatpush1.bf16.msra.mxu0 0
    %822 = vmatprep.subr.bf16.mxu0 0
    %823 = vmatpush1.bf16.msra.mxu0 0
    %824 = vmatprep.subr.bf16.mxu0 0
    %825 = vmatpush1.bf16.msra.mxu0 0
    %826 = vmatprep.subr.bf16.mxu0 0
    %827 = vmatpush1.bf16.msra.mxu0 0
    %828 = vmatprep.subr.bf16.mxu0 0
    %829 = vmatpush1.bf16.msra.mxu0 0
    %830 = vmatprep.subr.bf16.mxu0 0
    %831 = vmatpush1.bf16.msra.mxu0 0
    %832 = vmatprep.subr.bf16.mxu0 0
    %833 = vmatpush1.bf16.msra.mxu0 0
    %834 = vmatprep.subr.bf16.mxu0 0
    %835 = vmatpush1.bf16.msra.mxu0 0
    %836 = vmatprep.subr.bf16.mxu0 0
    %837 = vmatpush1.bf16.msra.mxu0 0
    %838 = vmatprep.subr.bf16.mxu0 0
    %839 = vmatpush1.bf16.msra.mxu0 0
    %840 = vmatprep.mubr.bf16.mxu0 0
    %841 = vmatmul.mubr.bf16.gmra.mrb[0].mxu0 %v803
    %v842 = vpop.f32.mrb[0].mxu0
    %v843 = vadd.f32 0.0, %v842
    %v844 = vpop.f32.mrb[0].mxu0
    %v845 = vpop.f32.mrb[0].mxu0
    %v846 = vpop.f32.mrb[0].mxu0
    %847 = vdwg.mxu0
    %848 = vrot.lane.b32.xlu0 %v235, 48
    %v849 = vpop.permute.xlu0 %848
    %v851 = vsel %vm239, %v799, 0
    %v854 = vsel %vm364, %v849, 0
    %856 = vmatprep.subr.bf16.mxu0 0
    %857 = vmatpush1.bf16.msra.mxu0 %v854
    %858 = vmatprep.subr.bf16.mxu0 0
    %859 = vmatpush1.bf16.msra.mxu0 0
    %860 = vmatprep.subr.bf16.mxu0 0
    %861 = vmatpush1.bf16.msra.mxu0 0
    %862 = vmatprep.subr.bf16.mxu0 0
    %863 = vmatpush1.bf16.msra.mxu0 0
    %864 = vmatprep.subr.bf16.mxu0 0
    %865 = vmatpush1.bf16.msra.mxu0 0
    %866 = vmatprep.subr.bf16.mxu0 0
    %867 = vmatpush1.bf16.msra.mxu0 0
    %868 = vmatprep.subr.bf16.mxu0 0
    %869 = vmatpush1.bf16.msra.mxu0 0
    %870 = vmatprep.subr.bf16.mxu0 0
    %871 = vmatpush1.bf16.msra.mxu0 0
    %872 = vmatprep.subr.bf16.mxu0 0
    %873 = vmatpush1.bf16.msra.mxu0 0
    %874 = vmatprep.subr.bf16.mxu0 0
    %875 = vmatpush1.bf16.msra.mxu0 0
    %876 = vmatprep.subr.bf16.mxu0 0
    %877 = vmatpush1.bf16.msra.mxu0 0
    %878 = vmatprep.subr.bf16.mxu0 0
    %879 = vmatpush1.bf16.msra.mxu0 0
    %880 = vmatprep.subr.bf16.mxu0 0
    %881 = vmatpush1.bf16.msra.mxu0 0
    %882 = vmatprep.subr.bf16.mxu0 0
    %883 = vmatpush1.bf16.msra.mxu0 0
    %884 = vmatprep.subr.bf16.mxu0 0
    %885 = vmatpush1.bf16.msra.mxu0 0
    %886 = vmatprep.subr.bf16.mxu0 0
    %887 = vmatpush1.bf16.msra.mxu0 0
    %888 = vmatprep.mubr.bf16.mxu0 0
    %889 = vmatmul.mubr.bf16.gmra.mrb[0].mxu0 %v851
    %v890 = vpop.f32.mrb[0].mxu0
    %v891 = vadd.f32 0.0, %v890
    %v892 = vpop.f32.mrb[0].mxu0
    %v893 = vpop.f32.mrb[0].mxu0
    %v894 = vpop.f32.mrb[0].mxu0
    %895 = vdwg.mxu0
    %896 = vrot.lane.b32.xlu0 %v234, 104
    %v897 = vpop.permute.xlu0 %896
    %898 = vrot.lane.b32.xlu0 %v234, 72
    %v899 = vpop.permute.xlu0 %898
    %v901 = vsel %vm239, %v897, 0
    %v904 = vsel %vm239, %v899, 0
    %906 = vmatprep.subr.bf16.mxu0 0
    %907 = vmatpush1.bf16.xpose.msra.mxu0 %v904
    %908 = vmatprep.subr.bf16.mxu0 0
    %909 = vmatpush1.bf16.xpose.msra.mxu0 0
    %910 = vmatprep.subr.bf16.mxu0 0
    %911 = vmatpush1.bf16.xpose.msra.mxu0 0
    %912 = vmatprep.subr.bf16.mxu0 0
    %913 = vmatpush1.bf16.xpose.msra.mxu0 0
    %914 = vmatprep.subr.bf16.mxu0 0
    %915 = vmatpush1.bf16.xpose.msra.mxu0 0
    %916 = vmatprep.subr.bf16.mxu0 0
    %917 = vmatpush1.bf16.xpose.msra.mxu0 0
    %918 = vmatprep.subr.bf16.mxu0 0
    %919 = vmatpush1.bf16.xpose.msra.mxu0 0
    %920 = vmatprep.subr.bf16.mxu0 0
    %921 = vmatpush1.bf16.xpose.msra.mxu0 0
    %922 = vmatprep.subr.bf16.mxu0 0
    %923 = vmatpush1.bf16.xpose.msra.mxu0 0
    %924 = vmatprep.subr.bf16.mxu0 0
    %925 = vmatpush1.bf16.xpose.msra.mxu0 0
    %926 = vmatprep.subr.bf16.mxu0 0
    %927 = vmatpush1.bf16.xpose.msra.mxu0 0
    %928 = vmatprep.subr.bf16.mxu0 0
    %929 = vmatpush1.bf16.xpose.msra.mxu0 0
    %930 = vmatprep.subr.bf16.mxu0 0
    %931 = vmatpush1.bf16.xpose.msra.mxu0 0
    %932 = vmatprep.subr.bf16.mxu0 0
    %933 = vmatpush1.bf16.xpose.msra.mxu0 0
    %934 = vmatprep.subr.bf16.mxu0 0
    %935 = vmatpush1.bf16.xpose.msra.mxu0 0
    %936 = vmatprep.subr.bf16.mxu0 0
    %937 = vmatpush1.bf16.xpose.msra.mxu0 0
    %938 = vmatprep.mubr.bf16.mxu0 0
    %939 = vmatmul.mubr.bf16.gmra.mrb[0].mxu0 %v901
    %v940 = vpop.f32.mrb[0].mxu0
    %v941 = vadd.f32 %v150, %v940
    %v942 = vpop.f32.mrb[0].mxu0
    %v943 = vpop.f32.mrb[0].mxu0
    %v944 = vpop.f32.mrb[0].mxu0
    %945 = vdwg.mxu0
    %946 = vrot.lane.b32.xlu0 %v235, 104
    %v947 = vpop.permute.xlu0 %946
    %948 = vrot.lane.b32.xlu0 %v235, 72
    %v949 = vpop.permute.xlu0 %948
    %v951 = vsel %vm239, %v947, 0
    %v954 = vsel %vm239, %v949, 0
    %956 = vmatprep.subr.bf16.mxu0 0
    %957 = vmatpush1.bf16.xpose.msra.mxu0 %v954
    %958 = vmatprep.subr.bf16.mxu0 0
    %959 = vmatpush1.bf16.xpose.msra.mxu0 0
    %960 = vmatprep.subr.bf16.mxu0 0
    %961 = vmatpush1.bf16.xpose.msra.mxu0 0
    %962 = vmatprep.subr.bf16.mxu0 0
    %963 = vmatpush1.bf16.xpose.msra.mxu0 0
    %964 = vmatprep.subr.bf16.mxu0 0
    %965 = vmatpush1.bf16.xpose.msra.mxu0 0
    %966 = vmatprep.subr.bf16.mxu0 0
    %967 = vmatpush1.bf16.xpose.msra.mxu0 0
    %968 = vmatprep.subr.bf16.mxu0 0
    %969 = vmatpush1.bf16.xpose.msra.mxu0 0
    %970 = vmatprep.subr.bf16.mxu0 0
    %971 = vmatpush1.bf16.xpose.msra.mxu0 0
    %972 = vmatprep.subr.bf16.mxu0 0
    %973 = vmatpush1.bf16.xpose.msra.mxu0 0
    %974 = vmatprep.subr.bf16.mxu0 0
    %975 = vmatpush1.bf16.xpose.msra.mxu0 0
    %976 = vmatprep.subr.bf16.mxu0 0
    %977 = vmatpush1.bf16.xpose.msra.mxu0 0
    %978 = vmatprep.subr.bf16.mxu0 0
    %979 = vmatpush1.bf16.xpose.msra.mxu0 0
    %980 = vmatprep.subr.bf16.mxu0 0
    %981 = vmatpush1.bf16.xpose.msra.mxu0 0
    %982 = vmatprep.subr.bf16.mxu0 0
    %983 = vmatpush1.bf16.xpose.msra.mxu0 0
    %984 = vmatprep.subr.bf16.mxu0 0
    %985 = vmatpush1.bf16.xpose.msra.mxu0 0
    %986 = vmatprep.subr.bf16.mxu0 0
    %987 = vmatpush1.bf16.xpose.msra.mxu0 0
    %988 = vmatprep.mubr.bf16.mxu0 0
    %989 = vmatmul.mubr.bf16.gmra.mrb[0].mxu0 %v951
    %v990 = vpop.f32.mrb[0].mxu0
    %v991 = vadd.f32 %v151, %v990
    %v992 = vpop.f32.mrb[0].mxu0
    %v993 = vpop.f32.mrb[0].mxu0
    %v994 = vpop.f32.mrb[0].mxu0
    %995 = vdwg.mxu0
    %v996 = vsel %vm239, %v941, -inf
    %997 = vmax.xlane.f32.xlu0 %v996
    %v998 = vpop.xlane.xlu0 %997
    %v999 = vsel %vm239, %v991, -inf
    %1000 = vmax.xlane.f32.xlu0 %v999
    %v1001 = vpop.xlane.xlu0 %1000
    %v1002 = vsub.f32 %v941, %v998
    %v1003 = vsub.f32 %v991, %v1001
    %v1004 = vmul.f32 %v1002, 1.442695
    %v1005 = vpow.pop %v1004
    %v1006 = vmul.f32 %v1003, 1.442695
    %v1007 = vpow.pop %v1006
    %v1008 = vsel %vm239, %v1005, 0.0
    %1009 = vadd.xlane.f32.xlu0 %v1008
    %v1010 = vpop.xlane.xlu0 %1009
    %v1011 = vsel %vm239, %v1007, 0.0
    %1012 = vadd.xlane.f32.xlu0 %v1011
    %v1013 = vpop.xlane.xlu0 %1012
    %v1014 = vrcp.pop %v1010
    %v1015 = vrcp.pop %v1013
    %v1016 = vmul.f32 %v1005, %v1014
    %v1017 = vmul.f32 %v1007, %v1015
    %v1018 = vpack.c.bf16 %v1016, %v1016
    %v1019 = vpack.c.bf16 %v1017, %v1017
    %1020 = vrot.lane.b32.xlu0 %v234, 40
    %v1021 = vpop.permute.xlu0 %1020
    %v1023 = vsel %vm239, %v1018, 0
    %v1026 = vsel %vm364, %v1021, 0
    %1028 = vmatprep.subr.bf16.mxu0 0
    %1029 = vmatpush1.bf16.msra.mxu0 %v1026
    %1030 = vmatprep.subr.bf16.mxu0 0
    %1031 = vmatpush1.bf16.msra.mxu0 0
    %1032 = vmatprep.subr.bf16.mxu0 0
    %1033 = vmatpush1.bf16.msra.mxu0 0
    %1034 = vmatprep.subr.bf16.mxu0 0
    %1035 = vmatpush1.bf16.msra.mxu0 0
    %1036 = vmatprep.subr.bf16.mxu0 0
    %1037 = vmatpush1.bf16.msra.mxu0 0
    %1038 = vmatprep.subr.bf16.mxu0 0
    %1039 = vmatpush1.bf16.msra.mxu0 0
    %1040 = vmatprep.subr.bf16.mxu0 0
    %1041 = vmatpush1.bf16.msra.mxu0 0
    %1042 = vmatprep.subr.bf16.mxu0 0
    %1043 = vmatpush1.bf16.msra.mxu0 0
    %1044 = vmatprep.subr.bf16.mxu0 0
    %1045 = vmatpush1.bf16.msra.mxu0 0
    %1046 = vmatprep.subr.bf16.mxu0 0
    %1047 = vmatpush1.bf16.msra.mxu0 0
    %1048 = vmatprep.subr.bf16.mxu0 0
    %1049 = vmatpush1.bf16.msra.mxu0 0
    %1050 = vmatprep.subr.bf16.mxu0 0
    %1051 = vmatpush1.bf16.msra.mxu0 0
    %1052 = vmatprep.subr.bf16.mxu0 0
    %1053 = vmatpush1.bf16.msra.mxu0 0
    %1054 = vmatprep.subr.bf16.mxu0 0
    %1055 = vmatpush1.bf16.msra.mxu0 0
    %1056 = vmatprep.subr.bf16.mxu0 0
    %1057 = vmatpush1.bf16.msra.mxu0 0
    %1058 = vmatprep.subr.bf16.mxu0 0
    %1059 = vmatpush1.bf16.msra.mxu0 0
    %1060 = vmatprep.mubr.bf16.mxu0 0
    %1061 = vmatmul.mubr.bf16.gmra.mrb[0].mxu0 %v1023
    %v1062 = vpop.f32.mrb[0].mxu0
    %v1063 = vadd.f32 0.0, %v1062
    %v1064 = vpop.f32.mrb[0].mxu0
    %v1065 = vpop.f32.mrb[0].mxu0
    %v1066 = vpop.f32.mrb[0].mxu0
    %1067 = vdwg.mxu0
    %1068 = vrot.lane.b32.xlu0 %v235, 40
    %v1069 = vpop.permute.xlu0 %1068
    %v1071 = vsel %vm239, %v1019, 0
    %v1074 = vsel %vm364, %v1069, 0
    %1076 = vmatprep.subr.bf16.mxu0 0
    %1077 = vmatpush1.bf16.msra.mxu0 %v1074
    %1078 = vmatprep.subr.bf16.mxu0 0
    %1079 = vmatpush1.bf16.msra.mxu0 0
    %1080 = vmatprep.subr.bf16.mxu0 0
    %1081 = vmatpush1.bf16.msra.mxu0 0
    %1082 = vmatprep.subr.bf16.mxu0 0
    %1083 = vmatpush1.bf16.msra.mxu0 0
    %1084 = vmatprep.subr.bf16.mxu0 0
    %1085 = vmatpush1.bf16.msra.mxu0 0
    %1086 = vmatprep.subr.bf16.mxu0 0
    %1087 = vmatpush1.bf16.msra.mxu0 0
    %1088 = vmatprep.subr.bf16.mxu0 0
    %1089 = vmatpush1.bf16.msra.mxu0 0
    %1090 = vmatprep.subr.bf16.mxu0 0
    %1091 = vmatpush1.bf16.msra.mxu0 0
    %1092 = vmatprep.subr.bf16.mxu0 0
    %1093 = vmatpush1.bf16.msra.mxu0 0
    %1094 = vmatprep.subr.bf16.mxu0 0
    %1095 = vmatpush1.bf16.msra.mxu0 0
    %1096 = vmatprep.subr.bf16.mxu0 0
    %1097 = vmatpush1.bf16.msra.mxu0 0
    %1098 = vmatprep.subr.bf16.mxu0 0
    %1099 = vmatpush1.bf16.msra.mxu0 0
    %1100 = vmatprep.subr.bf16.mxu0 0
    %1101 = vmatpush1.bf16.msra.mxu0 0
    %1102 = vmatprep.subr.bf16.mxu0 0
    %1103 = vmatpush1.bf16.msra.mxu0 0
    %1104 = vmatprep.subr.bf16.mxu0 0
    %1105 = vmatpush1.bf16.msra.mxu0 0
    %1106 = vmatprep.subr.bf16.mxu0 0
    %1107 = vmatpush1.bf16.msra.mxu0 0
    %1108 = vmatprep.mubr.bf16.mxu0 0
    %1109 = vmatmul.mubr.bf16.gmra.mrb[0].mxu0 %v1071
    %v1110 = vpop.f32.mrb[0].mxu0
    %v1111 = vadd.f32 0.0, %v1110
    %v1112 = vpop.f32.mrb[0].mxu0
    %v1113 = vpop.f32.mrb[0].mxu0
    %v1114 = vpop.f32.mrb[0].mxu0
    %1115 = vdwg.mxu0
    %1118 = vrot.lane.b32.xlu0 %v623, 8
    %v1119 = vpop.permute.xlu0 %1118
    %1120 = vrot.lane.b32.xlu0 %v671, 8
    %v1121 = vpop.permute.xlu0 %1120
    %1126 = vrot.lane.b32.xlu0 %v843, 16
    %v1127 = vpop.permute.xlu0 %1126
    %1128 = vrot.lane.b32.xlu0 %v891, 16
    %v1129 = vpop.permute.xlu0 %1128
    %1134 = vrot.lane.b32.xlu0 %v1063, 24
    %v1135 = vpop.permute.xlu0 %1134
    %1136 = vrot.lane.b32.xlu0 %v1111, 24
    %v1137 = vpop.permute.xlu0 %1136
    %v1140 = vsel %vm239, %v403, %v1119
    %v1141 = vsel %vm239, %v451, %v1121
    %vm1142 = vcmask 130048
    %v1143 = vsel %vm1142, %v1140, %v1127
    %v1144 = vsel %vm1142, %v1141, %v1129
    %vm1145 = vcmask 195584
    %v1146 = vsel %vm1145, %v1143, %v1135
    %v1147 = vsel %vm1145, %v1144, %v1137
    %v1148 = vpack.c.bf16 %v1147, %v1146
    %v1149 = vlaneseq
    %v1150 = vshrl.u32 %v1149, 7
    %v1151 = vsub.s32 1, %v1150
    %v1152 = vrot.slane %v162, %v1151
    %v1157 = vunpack.c.l.b16 %v230
    %v1158 = vunpack.c.l.b16 %v231
    %v1159 = vunpack.c.l.b16 %v232
    %v1160 = vunpack.c.l.b16 %v233
    %v1161 = vpack.c.b16 %v1158, %v1157
    %v1162 = vpack.c.b16 %v1160, %v1159
    %v1166 = vsel %vm185, %v1148, 0
    %1168 = vmatprep.subr.bf16.mxu0 0
    %1169 = vmatpush1.bf16.msra.mxu0 %v1161
    %1170 = vmatprep.subr.bf16.mxu0 0
    %1171 = vmatpush1.bf16.msra.mxu0 %v1162
    %1172 = vmatprep.subr.bf16.mxu0 0
    %1173 = vmatpush1.bf16.msra.mxu0 0
    %1174 = vmatprep.subr.bf16.mxu0 0
    %1175 = vmatpush1.bf16.msra.mxu0 0
    %1176 = vmatprep.subr.bf16.mxu0 0
    %1177 = vmatpush1.bf16.msra.mxu0 0
    %1178 = vmatprep.subr.bf16.mxu0 0
    %1179 = vmatpush1.bf16.msra.mxu0 0
    %1180 = vmatprep.subr.bf16.mxu0 0
    %1181 = vmatpush1.bf16.msra.mxu0 0
    %1182 = vmatprep.subr.bf16.mxu0 0
    %1183 = vmatpush1.bf16.msra.mxu0 0
    %1184 = vmatprep.subr.bf16.mxu0 0
    %1185 = vmatpush1.bf16.msra.mxu0 0
    %1186 = vmatprep.subr.bf16.mxu0 0
    %1187 = vmatpush1.bf16.msra.mxu0 0
    %1188 = vmatprep.subr.bf16.mxu0 0
    %1189 = vmatpush1.bf16.msra.mxu0 0
    %1190 = vmatprep.subr.bf16.mxu0 0
    %1191 = vmatpush1.bf16.msra.mxu0 0
    %1192 = vmatprep.subr.bf16.mxu0 0
    %1193 = vmatpush1.bf16.msra.mxu0 0
    %1194 = vmatprep.subr.bf16.mxu0 0
    %1195 = vmatpush1.bf16.msra.mxu0 0
    %1196 = vmatprep.subr.bf16.mxu0 0
    %1197 = vmatpush1.bf16.msra.mxu0 0
    %1198 = vmatprep.subr.bf16.mxu0 0
    %1199 = vmatpush1.bf16.msra.mxu0 0
    %1200 = vmatprep.mubr.bf16.mxu0 0
    %1201 = vmatmul.mubr.bf16.gmra.mrb[0].mxu0 %v1166
    %v1202 = vpop.f32.mrb[0].mxu0
    %v1203 = vadd.f32 %v1152, %v1202
    %v1204 = vpop.f32.mrb[0].mxu0
    %v1205 = vpop.f32.mrb[0].mxu0
    %v1206 = vadd.f32 %v1152, %v1205
    %v1207 = vpop.f32.mrb[0].mxu0
    %1208 = vdwg.mxu0
    %v1209 = vadd.f32 %v138, %v1203
    %v1210 = vadd.f32 %v139, %v1206
    %v1211 = vsel %vm185, %v1209, 0.0
    %1212 = vadd.xlane.f32.xlu0 %v1211
    %v1213 = vpop.xlane.xlu0 %1212
    %v1214 = vsel %vm185, %v1210, 0.0
    %1215 = vadd.xlane.f32.xlu0 %v1214
    %v1216 = vpop.xlane.xlu0 %1215
    %v1217 = vrcp.pop 32.0
    %v1218 = vmul.f32 %v1213, %v1217
    %v1219 = vmul.f32 %v1216, %v1217
    %v1220 = vsub.f32 %v1209, %v1218
    %v1221 = vsub.f32 %v1210, %v1219
    %v1222 = vmul.f32 %v1220, %v1220
    %v1223 = vmul.f32 %v1221, %v1221
    %v1224 = vsel %vm185, %v1222, 0.0
    %1225 = vadd.xlane.f32.xlu0 %v1224
    %v1226 = vpop.xlane.xlu0 %1225
    %v1227 = vsel %vm185, %v1223, 0.0
    %1228 = vadd.xlane.f32.xlu0 %v1227
    %v1229 = vpop.xlane.xlu0 %1228
    %v1230 = vmul.f32 %v1226, %v1217
    %v1231 = vmul.f32 %v1229, %v1217
    %v1232 = vadd.f32 %v1230, 1e-05
    %v1233 = vadd.f32 %v1231, 1e-05
    %v1234 = vrsqrt.pop %v1232
    %v1235 = vrsqrt.pop %v1233
    %v1236 = vmul.f32 %v1220, %v1234
    %v1237 = vmul.f32 %v1221, %v1235
    %v1238 = vlaneseq
    %v1239 = vshrl.u32 %v1238, 7
    %v1240 = vsub.s32 7, %v1239
    %v1241 = vrot.slane %v162, %v1240
    %v1242 = vmul.f32 %v1236, %v1241
    %v1243 = vmul.f32 %v1237, %v1241
    %v1244 = vlaneseq
    %v1245 = vshrl.u32 %v1244, 7
    %v1246 = vsub.s32 0, %v1245
    %v1247 = vrot.slane %v163, %v1246
    %v1248 = vadd.f32 %v1242, %v1247
    %v1249 = vadd.f32 %v1243, %v1247
    %v1250 = vpack.c.bf16 %v1249, %v1248
    %v1251 = vld [vmem:[#allocation8] sm:$0xf]
    %v1252 = vld [vmem:[#allocation8 + $0x4] sm:$0xf]
    %v1253 = vld [vmem:[#allocation8 + $0x8] sm:$0xf]
    %v1254 = vld [vmem:[#allocation8 + $0xc] sm:$0xf]
    %v1255 = vlaneseq
    %v1256 = vshrl.u32 %v1255, 7
    %v1257 = vsub.s32 2, %v1256
    %v1258 = vrot.slane %v162, %v1257
    %v1263 = vunpack.c.l.b16 %v1251
    %v1264 = vunpack.c.l.b16 %v1252
    %v1265 = vunpack.c.l.b16 %v1253
    %v1266 = vunpack.c.l.b16 %v1254
    %v1267 = vpack.c.b16 %v1264, %v1263
    %v1268 = vpack.c.b16 %v1266, %v1265
    %v1272 = vsel %vm185, %v1250, 0
    %1274 = vmatprep.subr.bf16.mxu0 0
    %1275 = vmatpush1.bf16.msra.mxu0 %v1267
    %1276 = vmatprep.subr.bf16.mxu0 0
    %1277 = vmatpush1.bf16.msra.mxu0 %v1268
    %1278 = vmatprep.subr.bf16.mxu0 0
    %1279 = vmatpush1.bf16.msra.mxu0 0
    %1280 = vmatprep.subr.bf16.mxu0 0
    %1281 = vmatpush1.bf16.msra.mxu0 0
    %1282 = vmatprep.subr.bf16.mxu0 0
    %1283 = vmatpush1.bf16.msra.mxu0 0
    %1284 = vmatprep.subr.bf16.mxu0 0
    %1285 = vmatpush1.bf16.msra.mxu0 0
    %1286 = vmatprep.subr.bf16.mxu0 0
    %1287 = vmatpush1.bf16.msra.mxu0 0
    %1288 = vmatprep.subr.bf16.mxu0 0
    %1289 = vmatpush1.bf16.msra.mxu0 0
    %1290 = vmatprep.subr.bf16.mxu0 0
    %1291 = vmatpush1.bf16.msra.mxu0 0
    %1292 = vmatprep.subr.bf16.mxu0 0
    %1293 = vmatpush1.bf16.msra.mxu0 0
    %1294 = vmatprep.subr.bf16.mxu0 0
    %1295 = vmatpush1.bf16.msra.mxu0 0
    %1296 = vmatprep.subr.bf16.mxu0 0
    %1297 = vmatpush1.bf16.msra.mxu0 0
    %1298 = vmatprep.subr.bf16.mxu0 0
    %1299 = vmatpush1.bf16.msra.mxu0 0
    %1300 = vmatprep.subr.bf16.mxu0 0
    %1301 = vmatpush1.bf16.msra.mxu0 0
    %1302 = vmatprep.subr.bf16.mxu0 0
    %1303 = vmatpush1.bf16.msra.mxu0 0
    %1304 = vmatprep.subr.bf16.mxu0 0
    %1305 = vmatpush1.bf16.msra.mxu0 0
    %1306 = vmatprep.mubr.bf16.mxu0 0
    %1307 = vmatmul.mubr.bf16.gmra.mrb[0].mxu0 %v1272
    %v1308 = vpop.f32.mrb[0].mxu0
    %v1309 = vadd.f32 %v1258, %v1308
    %v1310 = vpop.f32.mrb[0].mxu0
    %v1311 = vpop.f32.mrb[0].mxu0
    %v1312 = vadd.f32 %v1258, %v1311
    %v1313 = vpop.f32.mrb[0].mxu0
    %1314 = vdwg.mxu0
    %v1315 = vld [vmem:[#allocation10] sm:$0xf]
    %v1316 = vld [vmem:[#allocation10 + $0x4] sm:$0xf]
    %v1317 = vld [vmem:[#allocation10 + $0x8] sm:$0xf]
    %v1318 = vld [vmem:[#allocation10 + $0xc] sm:$0xf]
    %v1319 = vlaneseq
    %v1320 = vshrl.u32 %v1319, 7
    %v1321 = vsub.s32 3, %v1320
    %v1322 = vrot.slane %v162, %v1321
    %v1325 = vunpack.c.l.b16 %v140
    %v1326 = vunpack.c.l.b16 %v141
    %v1327 = vpack.c.b16 %v1326, %v1325
    %v1332 = vunpack.c.l.b16 %v1315
    %v1333 = vunpack.c.l.b16 %v1316
    %v1334 = vunpack.c.l.b16 %v1317
    %v1335 = vunpack.c.l.b16 %v1318
    %v1336 = vpack.c.b16 %v1333, %v1332
    %v1337 = vpack.c.b16 %v1335, %v1334
    %v1341 = vsel %vm185, %v1327, 0
    %1343 = vmatprep.subr.bf16.mxu0 0
    %1344 = vmatpush1.bf16.msra.mxu0 %v1336
    %1345 = vmatprep.subr.bf16.mxu0 0
    %1346 = vmatpush1.bf16.msra.mxu0 %v1337
    %1347 = vmatprep.subr.bf16.mxu0 0
    %1348 = vmatpush1.bf16.msra.mxu0 0
    %1349 = vmatprep.subr.bf16.mxu0 0
    %1350 = vmatpush1.bf16.msra.mxu0 0
    %1351 = vmatprep.subr.bf16.mxu0 0
    %1352 = vmatpush1.bf16.msra.mxu0 0
    %1353 = vmatprep.subr.bf16.mxu0 0
    %1354 = vmatpush1.bf16.msra.mxu0 0
    %1355 = vmatprep.subr.bf16.mxu0 0
    %1356 = vmatpush1.bf16.msra.mxu0 0
    %1357 = vmatprep.subr.bf16.mxu0 0
    %1358 = vmatpush1.bf16.msra.mxu0 0
    %1359 = vmatprep.subr.bf16.mxu0 0
    %1360 = vmatpush1.bf16.msra.mxu0 0
    %1361 = vmatprep.subr.bf16.mxu0 0
    %1362 = vmatpush1.bf16.msra.mxu0 0
    %1363 = vmatprep.subr.bf16.mxu0 0
    %1364 = vmatpush1.bf16.msra.mxu0 0
    %1365 = vmatprep.subr.bf16.mxu0 0
    %1366 = vmatpush1.bf16.msra.mxu0 0
    %1367 = vmatprep.subr.bf16.mxu0 0
    %1368 = vmatpush1.bf16.msra.mxu0 0
    %1369 = vmatprep.subr.bf16.mxu0 0
    %1370 = vmatpush1.bf16.msra.mxu0 0
    %1371 = vmatprep.subr.bf16.mxu0 0
    %1372 = vmatpush1.bf16.msra.mxu0 0
    %1373 = vmatprep.subr.bf16.mxu0 0
    %1374 = vmatpush1.bf16.msra.mxu0 0
    %1375 = vmatprep.mubr.bf16.mxu0 0
    %1376 = vmatmul.mubr.bf16.gmra.mrb[0].mxu0 %v1341
    %v1377 = vpop.f32.mrb[0].mxu0
    %v1378 = vadd.f32 %v1322, %v1377
    %v1379 = vpop.f32.mrb[0].mxu0
    %v1380 = vpop.f32.mrb[0].mxu0
    %v1381 = vadd.f32 %v1322, %v1380
    %v1382 = vpop.f32.mrb[0].mxu0
    %1383 = vdwg.mxu0
    %v1384 = vld [vmem:[#allocation11] sm:$0xf]
    %v1385 = vld [vmem:[#allocation11 + $0x4] sm:$0xf]
    %v1386 = vld [vmem:[#allocation11 + $0x8] sm:$0xf]
    %v1387 = vld [vmem:[#allocation11 + $0xc] sm:$0xf]
    %v1388 = vpack.c.bf16 %v1309, %v1309
    %v1389 = vpack.c.bf16 %v1312, %v1312
    %v1390 = vpack.c.bf16 %v1378, %v1378
    %v1391 = vpack.c.bf16 %v1381, %v1381
    %v1393 = vsel %vm239, %v1388, 0
    %v1396 = vsel %vm239, %v1390, 0
    %1398 = vmatprep.subr.bf16.mxu0 0
    %1399 = vmatpush1.bf16.xpose.msra.mxu0 %v1396
    %1400 = vmatprep.subr.bf16.mxu0 0
    %1401 = vmatpush1.bf16.xpose.msra.mxu0 0
    %1402 = vmatprep.subr.bf16.mxu0 0
    %1403 = vmatpush1.bf16.xpose.msra.mxu0 0
    %1404 = vmatprep.subr.bf16.mxu0 0
    %1405 = vmatpush1.bf16.xpose.msra.mxu0 0
    %1406 = vmatprep.subr.bf16.mxu0 0
    %1407 = vmatpush1.bf16.xpose.msra.mxu0 0
    %1408 = vmatprep.subr.bf16.mxu0 0
    %1409 = vmatpush1.bf16.xpose.msra.mxu0 0
    %1410 = vmatprep.subr.bf16.mxu0 0
    %1411 = vmatpush1.bf16.xpose.msra.mxu0 0
    %1412 = vmatprep.subr.bf16.mxu0 0
    %1413 = vmatpush1.bf16.xpose.msra.mxu0 0
    %1414 = vmatprep.subr.bf16.mxu0 0
    %1415 = vmatpush1.bf16.xpose.msra.mxu0 0
    %1416 = vmatprep.subr.bf16.mxu0 0
    %1417 = vmatpush1.bf16.xpose.msra.mxu0 0
    %1418 = vmatprep.subr.bf16.mxu0 0
    %1419 = vmatpush1.bf16.xpose.msra.mxu0 0
    %1420 = vmatprep.subr.bf16.mxu0 0
    %1421 = vmatpush1.bf16.xpose.msra.mxu0 0
    %1422 = vmatprep.subr.bf16.mxu0 0
    %1423 = vmatpush1.bf16.xpose.msra.mxu0 0
    %1424 = vmatprep.subr.bf16.mxu0 0
    %1425 = vmatpush1.bf16.xpose.msra.mxu0 0
    %1426 = vmatprep.subr.bf16.mxu0 0
    %1427 = vmatpush1.bf16.xpose.msra.mxu0 0
    %1428 = vmatprep.subr.bf16.mxu0 0
    %1429 = vmatpush1.bf16.xpose.msra.mxu0 0
    %1430 = vmatprep.mubr.bf16.mxu0 0
    %1431 = vmatmul.mubr.bf16.gmra.mrb[0].mxu0 %v1393
    %v1432 = vpop.f32.mrb[0].mxu0
    %v1433 = vadd.f32 %v160, %v1432
    %v1434 = vpop.f32.mrb[0].mxu0
    %v1435 = vpop.f32.mrb[0].mxu0
    %v1436 = vpop.f32.mrb[0].mxu0
    %1437 = vdwg.mxu0
    %v1439 = vsel %vm239, %v1389, 0
    %v1442 = vsel %vm239, %v1391, 0
    %1444 = vmatprep.subr.bf16.mxu0 0
    %1445 = vmatpush1.bf16.xpose.msra.mxu0 %v1442
    %1446 = vmatprep.subr.bf16.mxu0 0
    %1447 = vmatpush1.bf16.xpose.msra.mxu0 0
    %1448 = vmatprep.subr.bf16.mxu0 0
    %1449 = vmatpush1.bf16.xpose.msra.mxu0 0
    %1450 = vmatprep.subr.bf16.mxu0 0
    %1451 = vmatpush1.bf16.xpose.msra.mxu0 0
    %1452 = vmatprep.subr.bf16.mxu0 0
    %1453 = vmatpush1.bf16.xpose.msra.mxu0 0
    %1454 = vmatprep.subr.bf16.mxu0 0
    %1455 = vmatpush1.bf16.xpose.msra.mxu0 0
    %1456 = vmatprep.subr.bf16.mxu0 0
    %1457 = vmatpush1.bf16.xpose.msra.mxu0 0
    %1458 = vmatprep.subr.bf16.mxu0 0
    %1459 = vmatpush1.bf16.xpose.msra.mxu0 0
    %1460 = vmatprep.subr.bf16.mxu0 0
    %1461 = vmatpush1.bf16.xpose.msra.mxu0 0
    %1462 = vmatprep.subr.bf16.mxu0 0
    %1463 = vmatpush1.bf16.xpose.msra.mxu0 0
    %1464 = vmatprep.subr.bf16.mxu0 0
    %1465 = vmatpush1.bf16.xpose.msra.mxu0 0
    %1466 = vmatprep.subr.bf16.mxu0 0
    %1467 = vmatpush1.bf16.xpose.msra.mxu0 0
    %1468 = vmatprep.subr.bf16.mxu0 0
    %1469 = vmatpush1.bf16.xpose.msra.mxu0 0
    %1470 = vmatprep.subr.bf16.mxu0 0
    %1471 = vmatpush1.bf16.xpose.msra.mxu0 0
    %1472 = vmatprep.subr.bf16.mxu0 0
    %1473 = vmatpush1.bf16.xpose.msra.mxu0 0
    %1474 = vmatprep.subr.bf16.mxu0 0
    %1475 = vmatpush1.bf16.xpose.msra.mxu0 0
    %1476 = vmatprep.mubr.bf16.mxu0 0
    %1477 = vmatmul.mubr.bf16.gmra.mrb[0].mxu0 %v1439
    %v1478 = vpop.f32.mrb[0].mxu0
    %v1479 = vadd.f32 %v161, %v1478
    %v1480 = vpop.f32.mrb[0].mxu0
    %v1481 = vpop.f32.mrb[0].mxu0
    %v1482 = vpop.f32.mrb[0].mxu0
    %1483 = vdwg.mxu0
    %v1484 = vsel %vm239, %v1433, -inf
    %1485 = vmax.xlane.f32.xlu0 %v1484
    %v1486 = vpop.xlane.xlu0 %1485
    %v1487 = vsel %vm239, %v1479, -inf
    %1488 = vmax.xlane.f32.xlu0 %v1487
    %v1489 = vpop.xlane.xlu0 %1488
    %v1490 = vsub.f32 %v1433, %v1486
    %v1491 = vsub.f32 %v1479, %v1489
    %v1492 = vmul.f32 %v1490, 1.442695
    %v1493 = vpow.pop %v1492
    %v1494 = vmul.f32 %v1491, 1.442695
    %v1495 = vpow.pop %v1494
    %v1496 = vsel %vm239, %v1493, 0.0
    %1497 = vadd.xlane.f32.xlu0 %v1496
    %v1498 = vpop.xlane.xlu0 %1497
    %v1499 = vsel %vm239, %v1495, 0.0
    %1500 = vadd.xlane.f32.xlu0 %v1499
    %v1501 = vpop.xlane.xlu0 %1500
    %v1502 = vrcp.pop %v1498
    %v1503 = vrcp.pop %v1501
    %v1504 = vmul.f32 %v1493, %v1502
    %v1505 = vmul.f32 %v1495, %v1503
    %v1506 = vpack.c.bf16 %v1504, %v1504
    %v1507 = vpack.c.bf16 %v1505, %v1505
    %1509 = vrot.lane.b32.xlu0 %v1390, 96
    %v1510 = vpop.permute.xlu0 %1509
    %v1512 = vsel %vm239, %v1506, 0
    %v1515 = vsel %vm364, %v1510, 0
    %1517 = vmatprep.subr.bf16.mxu0 0
    %1518 = vmatpush1.bf16.msra.mxu0 %v1515
    %1519 = vmatprep.subr.bf16.mxu0 0
    %1520 = vmatpush1.bf16.msra.mxu0 0
    %1521 = vmatprep.subr.bf16.mxu0 0
    %1522 = vmatpush1.bf16.msra.mxu0 0
    %1523 = vmatprep.subr.bf16.mxu0 0
    %1524 = vmatpush1.bf16.msra.mxu0 0
    %1525 = vmatprep.subr.bf16.mxu0 0
    %1526 = vmatpush1.bf16.msra.mxu0 0
    %1527 = vmatprep.subr.bf16.mxu0 0
    %1528 = vmatpush1.bf16.msra.mxu0 0
    %1529 = vmatprep.subr.bf16.mxu0 0
    %1530 = vmatpush1.bf16.msra.mxu0 0
    %1531 = vmatprep.subr.bf16.mxu0 0
    %1532 = vmatpush1.bf16.msra.mxu0 0
    %1533 = vmatprep.subr.bf16.mxu0 0
    %1534 = vmatpush1.bf16.msra.mxu0 0
    %1535 = vmatprep.subr.bf16.mxu0 0
    %1536 = vmatpush1.bf16.msra.mxu0 0
    %1537 = vmatprep.subr.bf16.mxu0 0
    %1538 = vmatpush1.bf16.msra.mxu0 0
    %1539 = vmatprep.subr.bf16.mxu0 0
    %1540 = vmatpush1.bf16.msra.mxu0 0
    %1541 = vmatprep.subr.bf16.mxu0 0
    %1542 = vmatpush1.bf16.msra.mxu0 0
    %1543 = vmatprep.subr.bf16.mxu0 0
    %1544 = vmatpush1.bf16.msra.mxu0 0
    %1545 = vmatprep.subr.bf16.mxu0 0
    %1546 = vmatpush1.bf16.msra.mxu0 0
    %1547 = vmatprep.subr.bf16.mxu0 0
    %1548 = vmatpush1.bf16.msra.mxu0 0
    %1549 = vmatprep.mubr.bf16.mxu0 0
    %1550 = vmatmul.mubr.bf16.gmra.mrb[0].mxu0 %v1512
    %v1551 = vpop.f32.mrb[0].mxu0
    %v1552 = vadd.f32 0.0, %v1551
    %v1553 = vpop.f32.mrb[0].mxu0
    %v1554 = vpop.f32.mrb[0].mxu0
    %v1555 = vpop.f32.mrb[0].mxu0
    %1556 = vdwg.mxu0
    %1558 = vrot.lane.b32.xlu0 %v1391, 96
    %v1559 = vpop.permute.xlu0 %1558
    %v1561 = vsel %vm239, %v1507, 0
    %v1564 = vsel %vm364, %v1559, 0
    %1566 = vmatprep.subr.bf16.mxu0 0
    %1567 = vmatpush1.bf16.msra.mxu0 %v1564
    %1568 = vmatprep.subr.bf16.mxu0 0
    %1569 = vmatpush1.bf16.msra.mxu0 0
    %1570 = vmatprep.subr.bf16.mxu0 0
    %1571 = vmatpush1.bf16.msra.mxu0 0
    %1572 = vmatprep.subr.bf16.mxu0 0
    %1573 = vmatpush1.bf16.msra.mxu0 0
    %1574 = vmatprep.subr.bf16.mxu0 0
    %1575 = vmatpush1.bf16.msra.mxu0 0
    %1576 = vmatprep.subr.bf16.mxu0 0
    %1577 = vmatpush1.bf16.msra.mxu0 0
    %1578 = vmatprep.subr.bf16.mxu0 0
    %1579 = vmatpush1.bf16.msra.mxu0 0
    %1580 = vmatprep.subr.bf16.mxu0 0
    %1581 = vmatpush1.bf16.msra.mxu0 0
    %1582 = vmatprep.subr.bf16.mxu0 0
    %1583 = vmatpush1.bf16.msra.mxu0 0
    %1584 = vmatprep.subr.bf16.mxu0 0
    %1585 = vmatpush1.bf16.msra.mxu0 0
    %1586 = vmatprep.subr.bf16.mxu0 0
    %1587 = vmatpush1.bf16.msra.mxu0 0
    %1588 = vmatprep.subr.bf16.mxu0 0
    %1589 = vmatpush1.bf16.msra.mxu0 0
    %1590 = vmatprep.subr.bf16.mxu0 0
    %1591 = vmatpush1.bf16.msra.mxu0 0
    %1592 = vmatprep.subr.bf16.mxu0 0
    %1593 = vmatpush1.bf16.msra.mxu0 0
    %1594 = vmatprep.subr.bf16.mxu0 0
    %1595 = vmatpush1.bf16.msra.mxu0 0
    %1596 = vmatprep.subr.bf16.mxu0 0
    %1597 = vmatpush1.bf16.msra.mxu0 0
    %1598 = vmatprep.mubr.bf16.mxu0 0
    %1599 = vmatmul.mubr.bf16.gmra.mrb[0].mxu0 %v1561
    %v1600 = vpop.f32.mrb[0].mxu0
    %v1601 = vadd.f32 0.0, %v1600
    %v1602 = vpop.f32.mrb[0].mxu0
    %v1603 = vpop.f32.mrb[0].mxu0
    %v1604 = vpop.f32.mrb[0].mxu0
    %1605 = vdwg.mxu0
    %1607 = vrot.lane.b32.xlu0 %v1388, 120
    %v1608 = vpop.permute.xlu0 %1607
    %1609 = vrot.lane.b32.xlu0 %v1390, 120
    %v1610 = vpop.permute.xlu0 %1609
    %v1612 = vsel %vm239, %v1608, 0
    %v1615 = vsel %vm239, %v1610, 0
    %1617 = vmatprep.subr.bf16.mxu0 0
    %1618 = vmatpush1.bf16.xpose.msra.mxu0 %v1615
    %1619 = vmatprep.subr.bf16.mxu0 0
    %1620 = vmatpush1.bf16.xpose.msra.mxu0 0
    %1621 = vmatprep.subr.bf16.mxu0 0
    %1622 = vmatpush1.bf16.xpose.msra.mxu0 0
    %1623 = vmatprep.subr.bf16.mxu0 0
    %1624 = vmatpush1.bf16.xpose.msra.mxu0 0
    %1625 = vmatprep.subr.bf16.mxu0 0
    %1626 = vmatpush1.bf16.xpose.msra.mxu0 0
    %1627 = vmatprep.subr.bf16.mxu0 0
    %1628 = vmatpush1.bf16.xpose.msra.mxu0 0
    %1629 = vmatprep.subr.bf16.mxu0 0
    %1630 = vmatpush1.bf16.xpose.msra.mxu0 0
    %1631 = vmatprep.subr.bf16.mxu0 0
    %1632 = vmatpush1.bf16.xpose.msra.mxu0 0
    %1633 = vmatprep.subr.bf16.mxu0 0
    %1634 = vmatpush1.bf16.xpose.msra.mxu0 0
    %1635 = vmatprep.subr.bf16.mxu0 0
    %1636 = vmatpush1.bf16.xpose.msra.mxu0 0
    %1637 = vmatprep.subr.bf16.mxu0 0
    %1638 = vmatpush1.bf16.xpose.msra.mxu0 0
    %1639 = vmatprep.subr.bf16.mxu0 0
    %1640 = vmatpush1.bf16.xpose.msra.mxu0 0
    %1641 = vmatprep.subr.bf16.mxu0 0
    %1642 = vmatpush1.bf16.xpose.msra.mxu0 0
    %1643 = vmatprep.subr.bf16.mxu0 0
    %1644 = vmatpush1.bf16.xpose.msra.mxu0 0
    %1645 = vmatprep.subr.bf16.mxu0 0
    %1646 = vmatpush1.bf16.xpose.msra.mxu0 0
    %1647 = vmatprep.subr.bf16.mxu0 0
    %1648 = vmatpush1.bf16.xpose.msra.mxu0 0
    %1649 = vmatprep.mubr.bf16.mxu0 0
    %1650 = vmatmul.mubr.bf16.gmra.mrb[0].mxu0 %v1612
    %v1651 = vpop.f32.mrb[0].mxu0
    %v1652 = vadd.f32 %v160, %v1651
    %v1653 = vpop.f32.mrb[0].mxu0
    %v1654 = vpop.f32.mrb[0].mxu0
    %v1655 = vpop.f32.mrb[0].mxu0
    %1656 = vdwg.mxu0
    %1658 = vrot.lane.b32.xlu0 %v1389, 120
    %v1659 = vpop.permute.xlu0 %1658
    %1660 = vrot.lane.b32.xlu0 %v1391, 120
    %v1661 = vpop.permute.xlu0 %1660
    %v1663 = vsel %vm239, %v1659, 0
    %v1666 = vsel %vm239, %v1661, 0
    %1668 = vmatprep.subr.bf16.mxu0 0
    %1669 = vmatpush1.bf16.xpose.msra.mxu0 %v1666
    %1670 = vmatprep.subr.bf16.mxu0 0
    %1671 = vmatpush1.bf16.xpose.msra.mxu0 0
    %1672 = vmatprep.subr.bf16.mxu0 0
    %1673 = vmatpush1.bf16.xpose.msra.mxu0 0
    %1674 = vmatprep.subr.bf16.mxu0 0
    %1675 = vmatpush1.bf16.xpose.msra.mxu0 0
    %1676 = vmatprep.subr.bf16.mxu0 0
    %1677 = vmatpush1.bf16.xpose.msra.mxu0 0
    %1678 = vmatprep.subr.bf16.mxu0 0
    %1679 = vmatpush1.bf16.xpose.msra.mxu0 0
    %1680 = vmatprep.subr.bf16.mxu0 0
    %1681 = vmatpush1.bf16.xpose.msra.mxu0 0
    %1682 = vmatprep.subr.bf16.mxu0 0
    %1683 = vmatpush1.bf16.xpose.msra.mxu0 0
    %1684 = vmatprep.subr.bf16.mxu0 0
    %1685 = vmatpush1.bf16.xpose.msra.mxu0 0
    %1686 = vmatprep.subr.bf16.mxu0 0
    %1687 = vmatpush1.bf16.xpose.msra.mxu0 0
    %1688 = vmatprep.subr.bf16.mxu0 0
    %1689 = vmatpush1.bf16.xpose.msra.mxu0 0
    %1690 = vmatprep.subr.bf16.mxu0 0
    %1691 = vmatpush1.bf16.xpose.msra.mxu0 0
    %1692 = vmatprep.subr.bf16.mxu0 0
    %1693 = vmatpush1.bf16.xpose.msra.mxu0 0
    %1694 = vmatprep.subr.bf16.mxu0 0
    %1695 = vmatpush1.bf16.xpose.msra.mxu0 0
    %1696 = vmatprep.subr.bf16.mxu0 0
    %1697 = vmatpush1.bf16.xpose.msra.mxu0 0
    %1698 = vmatprep.subr.bf16.mxu0 0
    %1699 = vmatpush1.bf16.xpose.msra.mxu0 0
    %1700 = vmatprep.mubr.bf16.mxu0 0
    %1701 = vmatmul.mubr.bf16.gmra.mrb[0].mxu0 %v1663
    %v1702 = vpop.f32.mrb[0].mxu0
    %v1703 = vadd.f32 %v161, %v1702
    %v1704 = vpop.f32.mrb[0].mxu0
    %v1705 = vpop.f32.mrb[0].mxu0
    %v1706 = vpop.f32.mrb[0].mxu0
    %1707 = vdwg.mxu0
    %v1708 = vsel %vm239, %v1652, -inf
    %1709 = vmax.xlane.f32.xlu0 %v1708
    %v1710 = vpop.xlane.xlu0 %1709
    %v1711 = vsel %vm239, %v1703, -inf
    %1712 = vmax.xlane.f32.xlu0 %v1711
    %v1713 = vpop.xlane.xlu0 %1712
    %v1714 = vsub.f32 %v1652, %v1710
    %v1715 = vsub.f32 %v1703, %v1713
    %v1716 = vmul.f32 %v1714, 1.442695
    %v1717 = vpow.pop %v1716
    %v1718 = vmul.f32 %v1715, 1.442695
    %v1719 = vpow.pop %v1718
    %v1720 = vsel %vm239, %v1717, 0.0
    %1721 = vadd.xlane.f32.xlu0 %v1720
    %v1722 = vpop.xlane.xlu0 %1721
    %v1723 = vsel %vm239, %v1719, 0.0
    %1724 = vadd.xlane.f32.xlu0 %v1723
    %v1725 = vpop.xlane.xlu0 %1724
    %v1726 = vrcp.pop %v1722
    %v1727 = vrcp.pop %v1725
    %v1728 = vmul.f32 %v1717, %v1726
    %v1729 = vmul.f32 %v1719, %v1727
    %v1730 = vpack.c.bf16 %v1728, %v1728
    %v1731 = vpack.c.bf16 %v1729, %v1729
    %1732 = vrot.lane.b32.xlu0 %v1390, 88
    %v1733 = vpop.permute.xlu0 %1732
    %v1735 = vsel %vm239, %v1730, 0
    %v1738 = vsel %vm364, %v1733, 0
    %1740 = vmatprep.subr.bf16.mxu0 0
    %1741 = vmatpush1.bf16.msra.mxu0 %v1738
    %1742 = vmatprep.subr.bf16.mxu0 0
    %1743 = vmatpush1.bf16.msra.mxu0 0
    %1744 = vmatprep.subr.bf16.mxu0 0
    %1745 = vmatpush1.bf16.msra.mxu0 0
    %1746 = vmatprep.subr.bf16.mxu0 0
    %1747 = vmatpush1.bf16.msra.mxu0 0
    %1748 = vmatprep.subr.bf16.mxu0 0
    %1749 = vmatpush1.bf16.msra.mxu0 0
    %1750 = vmatprep.subr.bf16.mxu0 0
    %1751 = vmatpush1.bf16.msra.mxu0 0
    %1752 = vmatprep.subr.bf16.mxu0 0
    %1753 = vmatpush1.bf16.msra.mxu0 0
    %1754 = vmatprep.subr.bf16.mxu0 0
    %1755 = vmatpush1.bf16.msra.mxu0 0
    %1756 = vmatprep.subr.bf16.mxu0 0
    %1757 = vmatpush1.bf16.msra.mxu0 0
    %1758 = vmatprep.subr.bf16.mxu0 0
    %1759 = vmatpush1.bf16.msra.mxu0 0
    %1760 = vmatprep.subr.bf16.mxu0 0
    %1761 = vmatpush1.bf16.msra.mxu0 0
    %1762 = vmatprep.subr.bf16.mxu0 0
    %1763 = vmatpush1.bf16.msra.mxu0 0
    %1764 = vmatprep.subr.bf16.mxu0 0
    %1765 = vmatpush1.bf16.msra.mxu0 0
    %1766 = vmatprep.subr.bf16.mxu0 0
    %1767 = vmatpush1.bf16.msra.mxu0 0
    %1768 = vmatprep.subr.bf16.mxu0 0
    %1769 = vmatpush1.bf16.msra.mxu0 0
    %1770 = vmatprep.subr.bf16.mxu0 0
    %1771 = vmatpush1.bf16.msra.mxu0 0
    %1772 = vmatprep.mubr.bf16.mxu0 0
    %1773 = vmatmul.mubr.bf16.gmra.mrb[0].mxu0 %v1735
    %v1774 = vpop.f32.mrb[0].mxu0
    %v1775 = vadd.f32 0.0, %v1774
    %v1776 = vpop.f32.mrb[0].mxu0
    %v1777 = vpop.f32.mrb[0].mxu0
    %v1778 = vpop.f32.mrb[0].mxu0
    %1779 = vdwg.mxu0
    %1780 = vrot.lane.b32.xlu0 %v1391, 88
    %v1781 = vpop.permute.xlu0 %1780
    %v1783 = vsel %vm239, %v1731, 0
    %v1786 = vsel %vm364, %v1781, 0
    %1788 = vmatprep.subr.bf16.mxu0 0
    %1789 = vmatpush1.bf16.msra.mxu0 %v1786
    %1790 = vmatprep.subr.bf16.mxu0 0
    %1791 = vmatpush1.bf16.msra.mxu0 0
    %1792 = vmatprep.subr.bf16.mxu0 0
    %1793 = vmatpush1.bf16.msra.mxu0 0
    %1794 = vmatprep.subr.bf16.mxu0 0
    %1795 = vmatpush1.bf16.msra.mxu0 0
    %1796 = vmatprep.subr.bf16.mxu0 0
    %1797 = vmatpush1.bf16.msra.mxu0 0
    %1798 = vmatprep.subr.bf16.mxu0 0
    %1799 = vmatpush1.bf16.msra.mxu0 0
    %1800 = vmatprep.subr.bf16.mxu0 0
    %1801 = vmatpush1.bf16.msra.mxu0 0
    %1802 = vmatprep.subr.bf16.mxu0 0
    %1803 = vmatpush1.bf16.msra.mxu0 0
    %1804 = vmatprep.subr.bf16.mxu0 0
    %1805 = vmatpush1.bf16.msra.mxu0 0
    %1806 = vmatprep.subr.bf16.mxu0 0
    %1807 = vmatpush1.bf16.msra.mxu0 0
    %1808 = vmatprep.subr.bf16.mxu0 0
    %1809 = vmatpush1.bf16.msra.mxu0 0
    %1810 = vmatprep.subr.bf16.mxu0 0
    %1811 = vmatpush1.bf16.msra.mxu0 0
    %1812 = vmatprep.subr.bf16.mxu0 0
    %1813 = vmatpush1.bf16.msra.mxu0 0
    %1814 = vmatprep.subr.bf16.mxu0 0
    %1815 = vmatpush1.bf16.msra.mxu0 0
    %1816 = vmatprep.subr.bf16.mxu0 0
    %1817 = vmatpush1.bf16.msra.mxu0 0
    %1818 = vmatprep.subr.bf16.mxu0 0
    %1819 = vmatpush1.bf16.msra.mxu0 0
    %1820 = vmatprep.mubr.bf16.mxu0 0
    %1821 = vmatmul.mubr.bf16.gmra.mrb[0].mxu0 %v1783
    %v1822 = vpop.f32.mrb[0].mxu0
    %v1823 = vadd.f32 0.0, %v1822
    %v1824 = vpop.f32.mrb[0].mxu0
    %v1825 = vpop.f32.mrb[0].mxu0
    %v1826 = vpop.f32.mrb[0].mxu0
    %1827 = vdwg.mxu0
    %1828 = vrot.lane.b32.xlu0 %v1388, 112
    %v1829 = vpop.permute.xlu0 %1828
    %1830 = vrot.lane.b32.xlu0 %v1390, 112
    %v1831 = vpop.permute.xlu0 %1830
    %v1833 = vsel %vm239, %v1829, 0
    %v1836 = vsel %vm239, %v1831, 0
    %1838 = vmatprep.subr.bf16.mxu0 0
    %1839 = vmatpush1.bf16.xpose.msra.mxu0 %v1836
    %1840 = vmatprep.subr.bf16.mxu0 0
    %1841 = vmatpush1.bf16.xpose.msra.mxu0 0
    %1842 = vmatprep.subr.bf16.mxu0 0
    %1843 = vmatpush1.bf16.xpose.msra.mxu0 0
    %1844 = vmatprep.subr.bf16.mxu0 0
    %1845 = vmatpush1.bf16.xpose.msra.mxu0 0
    %1846 = vmatprep.subr.bf16.mxu0 0
    %1847 = vmatpush1.bf16.xpose.msra.mxu0 0
    %1848 = vmatprep.subr.bf16.mxu0 0
    %1849 = vmatpush1.bf16.xpose.msra.mxu0 0
    %1850 = vmatprep.subr.bf16.mxu0 0
    %1851 = vmatpush1.bf16.xpose.msra.mxu0 0
    %1852 = vmatprep.subr.bf16.mxu0 0
    %1853 = vmatpush1.bf16.xpose.msra.mxu0 0
    %1854 = vmatprep.subr.bf16.mxu0 0
    %1855 = vmatpush1.bf16.xpose.msra.mxu0 0
    %1856 = vmatprep.subr.bf16.mxu0 0
    %1857 = vmatpush1.bf16.xpose.msra.mxu0 0
    %1858 = vmatprep.subr.bf16.mxu0 0
    %1859 = vmatpush1.bf16.xpose.msra.mxu0 0
    %1860 = vmatprep.subr.bf16.mxu0 0
    %1861 = vmatpush1.bf16.xpose.msra.mxu0 0
    %1862 = vmatprep.subr.bf16.mxu0 0
    %1863 = vmatpush1.bf16.xpose.msra.mxu0 0
    %1864 = vmatprep.subr.bf16.mxu0 0
    %1865 = vmatpush1.bf16.xpose.msra.mxu0 0
    %1866 = vmatprep.subr.bf16.mxu0 0
    %1867 = vmatpush1.bf16.xpose.msra.mxu0 0
    %1868 = vmatprep.subr.bf16.mxu0 0
    %1869 = vmatpush1.bf16.xpose.msra.mxu0 0
    %1870 = vmatprep.mubr.bf16.mxu0 0
    %1871 = vmatmul.mubr.bf16.gmra.mrb[0].mxu0 %v1833
    %v1872 = vpop.f32.mrb[0].mxu0
    %v1873 = vadd.f32 %v160, %v1872
    %v1874 = vpop.f32.mrb[0].mxu0
    %v1875 = vpop.f32.mrb[0].mxu0
    %v1876 = vpop.f32.mrb[0].mxu0
    %1877 = vdwg.mxu0
    %1878 = vrot.lane.b32.xlu0 %v1389, 112
    %v1879 = vpop.permute.xlu0 %1878
    %1880 = vrot.lane.b32.xlu0 %v1391, 112
    %v1881 = vpop.permute.xlu0 %1880
    %v1883 = vsel %vm239, %v1879, 0
    %v1886 = vsel %vm239, %v1881, 0
    %1888 = vmatprep.subr.bf16.mxu0 0
    %1889 = vmatpush1.bf16.xpose.msra.mxu0 %v1886
    %1890 = vmatprep.subr.bf16.mxu0 0
    %1891 = vmatpush1.bf16.xpose.msra.mxu0 0
    %1892 = vmatprep.subr.bf16.mxu0 0
    %1893 = vmatpush1.bf16.xpose.msra.mxu0 0
    %1894 = vmatprep.subr.bf16.mxu0 0
    %1895 = vmatpush1.bf16.xpose.msra.mxu0 0
    %1896 = vmatprep.subr.bf16.mxu0 0
    %1897 = vmatpush1.bf16.xpose.msra.mxu0 0
    %1898 = vmatprep.subr.bf16.mxu0 0
    %1899 = vmatpush1.bf16.xpose.msra.mxu0 0
    %1900 = vmatprep.subr.bf16.mxu0 0
    %1901 = vmatpush1.bf16.xpose.msra.mxu0 0
    %1902 = vmatprep.subr.bf16.mxu0 0
    %1903 = vmatpush1.bf16.xpose.msra.mxu0 0
    %1904 = vmatprep.subr.bf16.mxu0 0
    %1905 = vmatpush1.bf16.xpose.msra.mxu0 0
    %1906 = vmatprep.subr.bf16.mxu0 0
    %1907 = vmatpush1.bf16.xpose.msra.mxu0 0
    %1908 = vmatprep.subr.bf16.mxu0 0
    %1909 = vmatpush1.bf16.xpose.msra.mxu0 0
    %1910 = vmatprep.subr.bf16.mxu0 0
    %1911 = vmatpush1.bf16.xpose.msra.mxu0 0
    %1912 = vmatprep.subr.bf16.mxu0 0
    %1913 = vmatpush1.bf16.xpose.msra.mxu0 0
    %1914 = vmatprep.subr.bf16.mxu0 0
    %1915 = vmatpush1.bf16.xpose.msra.mxu0 0
    %1916 = vmatprep.subr.bf16.mxu0 0
    %1917 = vmatpush1.bf16.xpose.msra.mxu0 0
    %1918 = vmatprep.subr.bf16.mxu0 0
    %1919 = vmatpush1.bf16.xpose.msra.mxu0 0
    %1920 = vmatprep.mubr.bf16.mxu0 0
    %1921 = vmatmul.mubr.bf16.gmra.mrb[0].mxu0 %v1883
    %v1922 = vpop.f32.mrb[0].mxu0
    %v1923 = vadd.f32 %v161, %v1922
    %v1924 = vpop.f32.mrb[0].mxu0
    %v1925 = vpop.f32.mrb[0].mxu0
    %v1926 = vpop.f32.mrb[0].mxu0
    %1927 = vdwg.mxu0
    %v1928 = vsel %vm239, %v1873, -inf
    %1929 = vmax.xlane.f32.xlu0 %v1928
    %v1930 = vpop.xlane.xlu0 %1929
    %v1931 = vsel %vm239, %v1923, -inf
    %1932 = vmax.xlane.f32.xlu0 %v1931
    %v1933 = vpop.xlane.xlu0 %1932
    %v1934 = vsub.f32 %v1873, %v1930
    %v1935 = vsub.f32 %v1923, %v1933
    %v1936 = vmul.f32 %v1934, 1.442695
    %v1937 = vpow.pop %v1936
    %v1938 = vmul.f32 %v1935, 1.442695
    %v1939 = vpow.pop %v1938
    %v1940 = vsel %vm239, %v1937, 0.0
    %1941 = vadd.xlane.f32.xlu0 %v1940
    %v1942 = vpop.xlane.xlu0 %1941
    %v1943 = vsel %vm239, %v1939, 0.0
    %1944 = vadd.xlane.f32.xlu0 %v1943
    %v1945 = vpop.xlane.xlu0 %1944
    %v1946 = vrcp.pop %v1942
    %v1947 = vrcp.pop %v1945
    %v1948 = vmul.f32 %v1937, %v1946
    %v1949 = vmul.f32 %v1939, %v1947
    %v1950 = vpack.c.bf16 %v1948, %v1948
    %v1951 = vpack.c.bf16 %v1949, %v1949
    %1952 = vrot.lane.b32.xlu0 %v1390, 80
    %v1953 = vpop.permute.xlu0 %1952
    %v1955 = vsel %vm239, %v1950, 0
    %v1958 = vsel %vm364, %v1953, 0
    %1960 = vmatprep.subr.bf16.mxu0 0
    %1961 = vmatpush1.bf16.msra.mxu0 %v1958
    %1962 = vmatprep.subr.bf16.mxu0 0
    %1963 = vmatpush1.bf16.msra.mxu0 0
    %1964 = vmatprep.subr.bf16.mxu0 0
    %1965 = vmatpush1.bf16.msra.mxu0 0
    %1966 = vmatprep.subr.bf16.mxu0 0
    %1967 = vmatpush1.bf16.msra.mxu0 0
    %1968 = vmatprep.subr.bf16.mxu0 0
    %1969 = vmatpush1.bf16.msra.mxu0 0
    %1970 = vmatprep.subr.bf16.mxu0 0
    %1971 = vmatpush1.bf16.msra.mxu0 0
    %1972 = vmatprep.subr.bf16.mxu0 0
    %1973 = vmatpush1.bf16.msra.mxu0 0
    %1974 = vmatprep.subr.bf16.mxu0 0
    %1975 = vmatpush1.bf16.msra.mxu0 0
    %1976 = vmatprep.subr.bf16.mxu0 0
    %1977 = vmatpush1.bf16.msra.mxu0 0
    %1978 = vmatprep.subr.bf16.mxu0 0
    %1979 = vmatpush1.bf16.msra.mxu0 0
    %1980 = vmatprep.subr.bf16.mxu0 0
    %1981 = vmatpush1.bf16.msra.mxu0 0
    %1982 = vmatprep.subr.bf16.mxu0 0
    %1983 = vmatpush1.bf16.msra.mxu0 0
    %1984 = vmatprep.subr.bf16.mxu0 0
    %1985 = vmatpush1.bf16.msra.mxu0 0
    %1986 = vmatprep.subr.bf16.mxu0 0
    %1987 = vmatpush1.bf16.msra.mxu0 0
    %1988 = vmatprep.subr.bf16.mxu0 0
    %1989 = vmatpush1.bf16.msra.mxu0 0
    %1990 = vmatprep.subr.bf16.mxu0 0
    %1991 = vmatpush1.bf16.msra.mxu0 0
    %1992 = vmatprep.mubr.bf16.mxu0 0
    %1993 = vmatmul.mubr.bf16.gmra.mrb[0].mxu0 %v1955
    %v1994 = vpop.f32.mrb[0].mxu0
    %v1995 = vadd.f32 0.0, %v1994
    %v1996 = vpop.f32.mrb[0].mxu0
    %v1997 = vpop.f32.mrb[0].mxu0
    %v1998 = vpop.f32.mrb[0].mxu0
    %1999 = vdwg.mxu0
    %2000 = vrot.lane.b32.xlu0 %v1391, 80
    %v2001 = vpop.permute.xlu0 %2000
    %v2003 = vsel %vm239, %v1951, 0
    %v2006 = vsel %vm364, %v2001, 0
    %2008 = vmatprep.subr.bf16.mxu0 0
    %2009 = vmatpush1.bf16.msra.mxu0 %v2006
    %2010 = vmatprep.subr.bf16.mxu0 0
    %2011 = vmatpush1.bf16.msra.mxu0 0
    %2012 = vmatprep.subr.bf16.mxu0 0
    %2013 = vmatpush1.bf16.msra.mxu0 0
    %2014 = vmatprep.subr.bf16.mxu0 0
    %2015 = vmatpush1.bf16.msra.mxu0 0
    %2016 = vmatprep.subr.bf16.mxu0 0
    %2017 = vmatpush1.bf16.msra.mxu0 0
    %2018 = vmatprep.subr.bf16.mxu0 0
    %2019 = vmatpush1.bf16.msra.mxu0 0
    %2020 = vmatprep.subr.bf16.mxu0 0
    %2021 = vmatpush1.bf16.msra.mxu0 0
    %2022 = vmatprep.subr.bf16.mxu0 0
    %2023 = vmatpush1.bf16.msra.mxu0 0
    %2024 = vmatprep.subr.bf16.mxu0 0
    %2025 = vmatpush1.bf16.msra.mxu0 0
    %2026 = vmatprep.subr.bf16.mxu0 0
    %2027 = vmatpush1.bf16.msra.mxu0 0
    %2028 = vmatprep.subr.bf16.mxu0 0
    %2029 = vmatpush1.bf16.msra.mxu0 0
    %2030 = vmatprep.subr.bf16.mxu0 0
    %2031 = vmatpush1.bf16.msra.mxu0 0
    %2032 = vmatprep.subr.bf16.mxu0 0
    %2033 = vmatpush1.bf16.msra.mxu0 0
    %2034 = vmatprep.subr.bf16.mxu0 0
    %2035 = vmatpush1.bf16.msra.mxu0 0
    %2036 = vmatprep.subr.bf16.mxu0 0
    %2037 = vmatpush1.bf16.msra.mxu0 0
    %2038 = vmatprep.subr.bf16.mxu0 0
    %2039 = vmatpush1.bf16.msra.mxu0 0
    %2040 = vmatprep.mubr.bf16.mxu0 0
    %2041 = vmatmul.mubr.bf16.gmra.mrb[0].mxu0 %v2003
    %v2042 = vpop.f32.mrb[0].mxu0
    %v2043 = vadd.f32 0.0, %v2042
    %v2044 = vpop.f32.mrb[0].mxu0
    %v2045 = vpop.f32.mrb[0].mxu0
    %v2046 = vpop.f32.mrb[0].mxu0
    %2047 = vdwg.mxu0
    %2048 = vrot.lane.b32.xlu0 %v1388, 104
    %v2049 = vpop.permute.xlu0 %2048
    %2050 = vrot.lane.b32.xlu0 %v1390, 104
    %v2051 = vpop.permute.xlu0 %2050
    %v2053 = vsel %vm239, %v2049, 0
    %v2056 = vsel %vm239, %v2051, 0
    %2058 = vmatprep.subr.bf16.mxu0 0
    %2059 = vmatpush1.bf16.xpose.msra.mxu0 %v2056
    %2060 = vmatprep.subr.bf16.mxu0 0
    %2061 = vmatpush1.bf16.xpose.msra.mxu0 0
    %2062 = vmatprep.subr.bf16.mxu0 0
    %2063 = vmatpush1.bf16.xpose.msra.mxu0 0
    %2064 = vmatprep.subr.bf16.mxu0 0
    %2065 = vmatpush1.bf16.xpose.msra.mxu0 0
    %2066 = vmatprep.subr.bf16.mxu0 0
    %2067 = vmatpush1.bf16.xpose.msra.mxu0 0
    %2068 = vmatprep.subr.bf16.mxu0 0
    %2069 = vmatpush1.bf16.xpose.msra.mxu0 0
    %2070 = vmatprep.subr.bf16.mxu0 0
    %2071 = vmatpush1.bf16.xpose.msra.mxu0 0
    %2072 = vmatprep.subr.bf16.mxu0 0
    %2073 = vmatpush1.bf16.xpose.msra.mxu0 0
    %2074 = vmatprep.subr.bf16.mxu0 0
    %2075 = vmatpush1.bf16.xpose.msra.mxu0 0
    %2076 = vmatprep.subr.bf16.mxu0 0
    %2077 = vmatpush1.bf16.xpose.msra.mxu0 0
    %2078 = vmatprep.subr.bf16.mxu0 0
    %2079 = vmatpush1.bf16.xpose.msra.mxu0 0
    %2080 = vmatprep.subr.bf16.mxu0 0
    %2081 = vmatpush1.bf16.xpose.msra.mxu0 0
    %2082 = vmatprep.subr.bf16.mxu0 0
    %2083 = vmatpush1.bf16.xpose.msra.mxu0 0
    %2084 = vmatprep.subr.bf16.mxu0 0
    %2085 = vmatpush1.bf16.xpose.msra.mxu0 0
    %2086 = vmatprep.subr.bf16.mxu0 0
    %2087 = vmatpush1.bf16.xpose.msra.mxu0 0
    %2088 = vmatprep.subr.bf16.mxu0 0
    %2089 = vmatpush1.bf16.xpose.msra.mxu0 0
    %2090 = vmatprep.mubr.bf16.mxu0 0
    %2091 = vmatmul.mubr.bf16.gmra.mrb[0].mxu0 %v2053
    %v2092 = vpop.f32.mrb[0].mxu0
    %v2093 = vadd.f32 %v160, %v2092
    %v2094 = vpop.f32.mrb[0].mxu0
    %v2095 = vpop.f32.mrb[0].mxu0
    %v2096 = vpop.f32.mrb[0].mxu0
    %2097 = vdwg.mxu0
    %2098 = vrot.lane.b32.xlu0 %v1389, 104
    %v2099 = vpop.permute.xlu0 %2098
    %2100 = vrot.lane.b32.xlu0 %v1391, 104
    %v2101 = vpop.permute.xlu0 %2100
    %v2103 = vsel %vm239, %v2099, 0
    %v2106 = vsel %vm239, %v2101, 0
    %2108 = vmatprep.subr.bf16.mxu0 0
    %2109 = vmatpush1.bf16.xpose.msra.mxu0 %v2106
    %2110 = vmatprep.subr.bf16.mxu0 0
    %2111 = vmatpush1.bf16.xpose.msra.mxu0 0
    %2112 = vmatprep.subr.bf16.mxu0 0
    %2113 = vmatpush1.bf16.xpose.msra.mxu0 0
    %2114 = vmatprep.subr.bf16.mxu0 0
    %2115 = vmatpush1.bf16.xpose.msra.mxu0 0
    %2116 = vmatprep.subr.bf16.mxu0 0
    %2117 = vmatpush1.bf16.xpose.msra.mxu0 0
    %2118 = vmatprep.subr.bf16.mxu0 0
    %2119 = vmatpush1.bf16.xpose.msra.mxu0 0
    %2120 = vmatprep.subr.bf16.mxu0 0
    %2121 = vmatpush1.bf16.xpose.msra.mxu0 0
    %2122 = vmatprep.subr.bf16.mxu0 0
    %2123 = vmatpush1.bf16.xpose.msra.mxu0 0
    %2124 = vmatprep.subr.bf16.mxu0 0
    %2125 = vmatpush1.bf16.xpose.msra.mxu0 0
    %2126 = vmatprep.subr.bf16.mxu0 0
    %2127 = vmatpush1.bf16.xpose.msra.mxu0 0
    %2128 = vmatprep.subr.bf16.mxu0 0
    %2129 = vmatpush1.bf16.xpose.msra.mxu0 0
    %2130 = vmatprep.subr.bf16.mxu0 0
    %2131 = vmatpush1.bf16.xpose.msra.mxu0 0
    %2132 = vmatprep.subr.bf16.mxu0 0
    %2133 = vmatpush1.bf16.xpose.msra.mxu0 0
    %2134 = vmatprep.subr.bf16.mxu0 0
    %2135 = vmatpush1.bf16.xpose.msra.mxu0 0
    %2136 = vmatprep.subr.bf16.mxu0 0
    %2137 = vmatpush1.bf16.xpose.msra.mxu0 0
    %2138 = vmatprep.subr.bf16.mxu0 0
    %2139 = vmatpush1.bf16.xpose.msra.mxu0 0
    %2140 = vmatprep.mubr.bf16.mxu0 0
    %2141 = vmatmul.mubr.bf16.gmra.mrb[0].mxu0 %v2103
    %v2142 = vpop.f32.mrb[0].mxu0
    %v2143 = vadd.f32 %v161, %v2142
    %v2144 = vpop.f32.mrb[0].mxu0
    %v2145 = vpop.f32.mrb[0].mxu0
    %v2146 = vpop.f32.mrb[0].mxu0
    %2147 = vdwg.mxu0
    %v2148 = vsel %vm239, %v2093, -inf
    %2149 = vmax.xlane.f32.xlu0 %v2148
    %v2150 = vpop.xlane.xlu0 %2149
    %v2151 = vsel %vm239, %v2143, -inf
    %2152 = vmax.xlane.f32.xlu0 %v2151
    %v2153 = vpop.xlane.xlu0 %2152
    %v2154 = vsub.f32 %v2093, %v2150
    %v2155 = vsub.f32 %v2143, %v2153
    %v2156 = vmul.f32 %v2154, 1.442695
    %v2157 = vpow.pop %v2156
    %v2158 = vmul.f32 %v2155, 1.442695
    %v2159 = vpow.pop %v2158
    %v2160 = vsel %vm239, %v2157, 0.0
    %2161 = vadd.xlane.f32.xlu0 %v2160
    %v2162 = vpop.xlane.xlu0 %2161
    %v2163 = vsel %vm239, %v2159, 0.0
    %2164 = vadd.xlane.f32.xlu0 %v2163
    %v2165 = vpop.xlane.xlu0 %2164
    %v2166 = vrcp.pop %v2162
    %v2167 = vrcp.pop %v2165
    %v2168 = vmul.f32 %v2157, %v2166
    %v2169 = vmul.f32 %v2159, %v2167
    %v2170 = vpack.c.bf16 %v2168, %v2168
    %v2171 = vpack.c.bf16 %v2169, %v2169
    %2172 = vrot.lane.b32.xlu0 %v1390, 72
    %v2173 = vpop.permute.xlu0 %2172
    %v2175 = vsel %vm239, %v2170, 0
    %v2178 = vsel %vm364, %v2173, 0
    %2180 = vmatprep.subr.bf16.mxu0 0
    %2181 = vmatpush1.bf16.msra.mxu0 %v2178
    %2182 = vmatprep.subr.bf16.mxu0 0
    %2183 = vmatpush1.bf16.msra.mxu0 0
    %2184 = vmatprep.subr.bf16.mxu0 0
    %2185 = vmatpush1.bf16.msra.mxu0 0
    %2186 = vmatprep.subr.bf16.mxu0 0
    %2187 = vmatpush1.bf16.msra.mxu0 0
    %2188 = vmatprep.subr.bf16.mxu0 0
    %2189 = vmatpush1.bf16.msra.mxu0 0
    %2190 = vmatprep.subr.bf16.mxu0 0
    %2191 = vmatpush1.bf16.msra.mxu0 0
    %2192 = vmatprep.subr.bf16.mxu0 0
    %2193 = vmatpush1.bf16.msra.mxu0 0
    %2194 = vmatprep.subr.bf16.mxu0 0
    %2195 = vmatpush1.bf16.msra.mxu0 0
    %2196 = vmatprep.subr.bf16.mxu0 0
    %2197 = vmatpush1.bf16.msra.mxu0 0
    %2198 = vmatprep.subr.bf16.mxu0 0
    %2199 = vmatpush1.bf16.msra.mxu0 0
    %2200 = vmatprep.subr.bf16.mxu0 0
    %2201 = vmatpush1.bf16.msra.mxu0 0
    %2202 = vmatprep.subr.bf16.mxu0 0
    %2203 = vmatpush1.bf16.msra.mxu0 0
    %2204 = vmatprep.subr.bf16.mxu0 0
    %2205 = vmatpush1.bf16.msra.mxu0 0
    %2206 = vmatprep.subr.bf16.mxu0 0
    %2207 = vmatpush1.bf16.msra.mxu0 0
    %2208 = vmatprep.subr.bf16.mxu0 0
    %2209 = vmatpush1.bf16.msra.mxu0 0
    %2210 = vmatprep.subr.bf16.mxu0 0
    %2211 = vmatpush1.bf16.msra.mxu0 0
    %2212 = vmatprep.mubr.bf16.mxu0 0
    %2213 = vmatmul.mubr.bf16.gmra.mrb[0].mxu0 %v2175
    %v2214 = vpop.f32.mrb[0].mxu0
    %v2215 = vadd.f32 0.0, %v2214
    %v2216 = vpop.f32.mrb[0].mxu0
    %v2217 = vpop.f32.mrb[0].mxu0
    %v2218 = vpop.f32.mrb[0].mxu0
    %2219 = vdwg.mxu0
    %2220 = vrot.lane.b32.xlu0 %v1391, 72
    %v2221 = vpop.permute.xlu0 %2220
    %v2223 = vsel %vm239, %v2171, 0
    %v2226 = vsel %vm364, %v2221, 0
    %2228 = vmatprep.subr.bf16.mxu0 0
    %2229 = vmatpush1.bf16.msra.mxu0 %v2226
    %2230 = vmatprep.subr.bf16.mxu0 0
    %2231 = vmatpush1.bf16.msra.mxu0 0
    %2232 = vmatprep.subr.bf16.mxu0 0
    %2233 = vmatpush1.bf16.msra.mxu0 0
    %2234 = vmatprep.subr.bf16.mxu0 0
    %2235 = vmatpush1.bf16.msra.mxu0 0
    %2236 = vmatprep.subr.bf16.mxu0 0
    %2237 = vmatpush1.bf16.msra.mxu0 0
    %2238 = vmatprep.subr.bf16.mxu0 0
    %2239 = vmatpush1.bf16.msra.mxu0 0
    %2240 = vmatprep.subr.bf16.mxu0 0
    %2241 = vmatpush1.bf16.msra.mxu0 0
    %2242 = vmatprep.subr.bf16.mxu0 0
    %2243 = vmatpush1.bf16.msra.mxu0 0
    %2244 = vmatprep.subr.bf16.mxu0 0
    %2245 = vmatpush1.bf16.msra.mxu0 0
    %2246 = vmatprep.subr.bf16.mxu0 0
    %2247 = vmatpush1.bf16.msra.mxu0 0
    %2248 = vmatprep.subr.bf16.mxu0 0
    %2249 = vmatpush1.bf16.msra.mxu0 0
    %2250 = vmatprep.subr.bf16.mxu0 0
    %2251 = vmatpush1.bf16.msra.mxu0 0
    %2252 = vmatprep.subr.bf16.mxu0 0
    %2253 = vmatpush1.bf16.msra.mxu0 0
    %2254 = vmatprep.subr.bf16.mxu0 0
    %2255 = vmatpush1.bf16.msra.mxu0 0
    %2256 = vmatprep.subr.bf16.mxu0 0
    %2257 = vmatpush1.bf16.msra.mxu0 0
    %2258 = vmatprep.subr.bf16.mxu0 0
    %2259 = vmatpush1.bf16.msra.mxu0 0
    %2260 = vmatprep.mubr.bf16.mxu0 0
    %2261 = vmatmul.mubr.bf16.gmra.mrb[0].mxu0 %v2223
    %v2262 = vpop.f32.mrb[0].mxu0
    %v2263 = vadd.f32 0.0, %v2262
    %v2264 = vpop.f32.mrb[0].mxu0
    %v2265 = vpop.f32.mrb[0].mxu0
    %v2266 = vpop.f32.mrb[0].mxu0
    %2267 = vdwg.mxu0
    %2270 = vrot.lane.b32.xlu0 %v1775, 8
    %v2271 = vpop.permute.xlu0 %2270
    %2272 = vrot.lane.b32.xlu0 %v1823, 8
    %v2273 = vpop.permute.xlu0 %2272
    %2278 = vrot.lane.b32.xlu0 %v1995, 16
    %v2279 = vpop.permute.xlu0 %2278
    %2280 = vrot.lane.b32.xlu0 %v2043, 16
    %v2281 = vpop.permute.xlu0 %2280
    %2286 = vrot.lane.b32.xlu0 %v2215, 24
    %v2287 = vpop.permute.xlu0 %2286
    %2288 = vrot.lane.b32.xlu0 %v2263, 24
    %v2289 = vpop.permute.xlu0 %2288
    %v2292 = vsel %vm239, %v1552, %v2271
    %v2293 = vsel %vm239, %v1601, %v2273
    %v2294 = vsel %vm1142, %v2292, %v2279
    %v2295 = vsel %vm1142, %v2293, %v2281
    %v2296 = vsel %vm1145, %v2294, %v2287
    %v2297 = vsel %vm1145, %v2295, %v2289
    %v2298 = vpack.c.bf16 %v2297, %v2296
    %v2299 = vlaneseq
    %v2300 = vshrl.u32 %v2299, 7
    %v2301 = vsub.s32 4, %v2300
    %v2302 = vrot.slane %v162, %v2301
    %v2307 = vunpack.c.l.b16 %v1384
    %v2308 = vunpack.c.l.b16 %v1385
    %v2309 = vunpack.c.l.b16 %v1386
    %v2310 = vunpack.c.l.b16 %v1387
    %v2311 = vpack.c.b16 %v2308, %v2307
    %v2312 = vpack.c.b16 %v2310, %v2309
    %v2316 = vsel %vm185, %v2298, 0
    %2318 = vmatprep.subr.bf16.mxu0 0
    %2319 = vmatpush1.bf16.msra.mxu0 %v2311
    %2320 = vmatprep.subr.bf16.mxu0 0
    %2321 = vmatpush1.bf16.msra.mxu0 %v2312
    %2322 = vmatprep.subr.bf16.mxu0 0
    %2323 = vmatpush1.bf16.msra.mxu0 0
    %2324 = vmatprep.subr.bf16.mxu0 0
    %2325 = vmatpush1.bf16.msra.mxu0 0
    %2326 = vmatprep.subr.bf16.mxu0 0
    %2327 = vmatpush1.bf16.msra.mxu0 0
    %2328 = vmatprep.subr.bf16.mxu0 0
    %2329 = vmatpush1.bf16.msra.mxu0 0
    %2330 = vmatprep.subr.bf16.mxu0 0
    %2331 = vmatpush1.bf16.msra.mxu0 0
    %2332 = vmatprep.subr.bf16.mxu0 0
    %2333 = vmatpush1.bf16.msra.mxu0 0
    %2334 = vmatprep.subr.bf16.mxu0 0
    %2335 = vmatpush1.bf16.msra.mxu0 0
    %2336 = vmatprep.subr.bf16.mxu0 0
    %2337 = vmatpush1.bf16.msra.mxu0 0
    %2338 = vmatprep.subr.bf16.mxu0 0
    %2339 = vmatpush1.bf16.msra.mxu0 0
    %2340 = vmatprep.subr.bf16.mxu0 0
    %2341 = vmatpush1.bf16.msra.mxu0 0
    %2342 = vmatprep.subr.bf16.mxu0 0
    %2343 = vmatpush1.bf16.msra.mxu0 0
    %2344 = vmatprep.subr.bf16.mxu0 0
    %2345 = vmatpush1.bf16.msra.mxu0 0
    %2346 = vmatprep.subr.bf16.mxu0 0
    %2347 = vmatpush1.bf16.msra.mxu0 0
    %2348 = vmatprep.subr.bf16.mxu0 0
    %2349 = vmatpush1.bf16.msra.mxu0 0
    %2350 = vmatprep.mubr.bf16.mxu0 0
    %2351 = vmatmul.mubr.bf16.gmra.mrb[0].mxu0 %v2316
    %v2352 = vpop.f32.mrb[0].mxu0
    %v2353 = vadd.f32 %v2302, %v2352
    %v2354 = vpop.f32.mrb[0].mxu0
    %v2355 = vpop.f32.mrb[0].mxu0
    %v2356 = vadd.f32 %v2302, %v2355
    %v2357 = vpop.f32.mrb[0].mxu0
    %2358 = vdwg.mxu0
    %v2359 = vadd.f32 %v1248, %v2353
    %v2360 = vadd.f32 %v1249, %v2356
    %v2361 = vsel %vm185, %v2359, 0.0
    %2362 = vadd.xlane.f32.xlu0 %v2361
    %v2363 = vpop.xlane.xlu0 %2362
    %v2364 = vsel %vm185, %v2360, 0.0
    %2365 = vadd.xlane.f32.xlu0 %v2364
    %v2366 = vpop.xlane.xlu0 %2365
    %v2367 = vmul.f32 %v2363, %v1217
    %v2368 = vmul.f32 %v2366, %v1217
    %v2369 = vsub.f32 %v2359, %v2367
    %v2370 = vsub.f32 %v2360, %v2368
    %v2371 = vmul.f32 %v2369, %v2369
    %v2372 = vmul.f32 %v2370, %v2370
    %v2373 = vsel %vm185, %v2371, 0.0
    %2374 = vadd.xlane.f32.xlu0 %v2373
    %v2375 = vpop.xlane.xlu0 %2374
    %v2376 = vsel %vm185, %v2372, 0.0
    %2377 = vadd.xlane.f32.xlu0 %v2376
    %v2378 = vpop.xlane.xlu0 %2377
    %v2379 = vmul.f32 %v2375, %v1217
    %v2380 = vmul.f32 %v2378, %v1217
    %v2381 = vadd.f32 %v2379, 1e-05
    %v2382 = vadd.f32 %v2380, 1e-05
    %v2383 = vrsqrt.pop %v2381
    %v2384 = vrsqrt.pop %v2382
    %v2385 = vmul.f32 %v2369, %v2383
    %v2386 = vmul.f32 %v2370, %v2384
    %v2387 = vlaneseq
    %v2388 = vshrl.u32 %v2387, 7
    %v2389 = vsub.s32 1, %v2388
    %v2390 = vrot.slane %v163, %v2389
    %v2391 = vmul.f32 %v2385, %v2390
    %v2392 = vmul.f32 %v2386, %v2390
    %v2393 = vlaneseq
    %v2394 = vshrl.u32 %v2393, 7
    %v2395 = vsub.s32 2, %v2394
    %v2396 = vrot.slane %v163, %v2395
    %v2397 = vadd.f32 %v2391, %v2396
    %v2398 = vadd.f32 %v2392, %v2396
    %v2399 = vpack.c.bf16 %v2398, %v2397
    %v2400 = vld [vmem:[%s9] sm:$0xf]
    %v2401 = vld [vmem:[%s9 + $0x4] sm:$0xf]
    %v2402 = vld [vmem:[%s9 + $0x8] sm:$0xf]
    %v2403 = vld [vmem:[%s9 + $0xc] sm:$0xf]
    %v2404 = vlaneseq
    %v2405 = vshrl.u32 %v2404, 7
    %v2406 = vsub.s32 5, %v2405
    %v2407 = vrot.slane %v162, %v2406
    %v2412 = vunpack.c.l.b16 %v2400
    %v2413 = vunpack.c.l.b16 %v2401
    %v2414 = vunpack.c.l.b16 %v2402
    %v2415 = vunpack.c.l.b16 %v2403
    %v2416 = vpack.c.b16 %v2413, %v2412
    %v2417 = vpack.c.b16 %v2415, %v2414
    %v2421 = vsel %vm185, %v2399, 0
    %2423 = vmatprep.subr.bf16.mxu0 0
    %2424 = vmatpush1.bf16.msra.mxu0 %v2416
    %2425 = vmatprep.subr.bf16.mxu0 0
    %2426 = vmatpush1.bf16.msra.mxu0 %v2417
    %2427 = vmatprep.subr.bf16.mxu0 0
    %2428 = vmatpush1.bf16.msra.mxu0 0
    %2429 = vmatprep.subr.bf16.mxu0 0
    %2430 = vmatpush1.bf16.msra.mxu0 0
    %2431 = vmatprep.subr.bf16.mxu0 0
    %2432 = vmatpush1.bf16.msra.mxu0 0
    %2433 = vmatprep.subr.bf16.mxu0 0
    %2434 = vmatpush1.bf16.msra.mxu0 0
    %2435 = vmatprep.subr.bf16.mxu0 0
    %2436 = vmatpush1.bf16.msra.mxu0 0
    %2437 = vmatprep.subr.bf16.mxu0 0
    %2438 = vmatpush1.bf16.msra.mxu0 0
    %2439 = vmatprep.subr.bf16.mxu0 0
    %2440 = vmatpush1.bf16.msra.mxu0 0
    %2441 = vmatprep.subr.bf16.mxu0 0
    %2442 = vmatpush1.bf16.msra.mxu0 0
    %2443 = vmatprep.subr.bf16.mxu0 0
    %2444 = vmatpush1.bf16.msra.mxu0 0
    %2445 = vmatprep.subr.bf16.mxu0 0
    %2446 = vmatpush1.bf16.msra.mxu0 0
    %2447 = vmatprep.subr.bf16.mxu0 0
    %2448 = vmatpush1.bf16.msra.mxu0 0
    %2449 = vmatprep.subr.bf16.mxu0 0
    %2450 = vmatpush1.bf16.msra.mxu0 0
    %2451 = vmatprep.subr.bf16.mxu0 0
    %2452 = vmatpush1.bf16.msra.mxu0 0
    %2453 = vmatprep.subr.bf16.mxu0 0
    %2454 = vmatpush1.bf16.msra.mxu0 0
    %2455 = vmatprep.mubr.bf16.mxu0 0
    %2456 = vmatmul.mubr.bf16.gmra.mrb[0].mxu0 %v2421
    %v2457 = vpop.f32.mrb[0].mxu0
    %v2458 = vadd.f32 %v2407, %v2457
    %v2459 = vpop.f32.mrb[0].mxu0
    %v2460 = vpop.f32.mrb[0].mxu0
    %v2461 = vadd.f32 %v2407, %v2460
    %v2462 = vpop.f32.mrb[0].mxu0
    %2463 = vdwg.mxu0
    %v2464 = vmax.f32 %v2458, 0.0
    %v2465 = vmax.f32 %v2461, 0.0
    %v2466 = vpack.c.bf16 %v2465, %v2464
    %v2467 = vld [vmem:[%s10] sm:$0xf]
    %v2468 = vld [vmem:[%s10 + $0x4] sm:$0xf]
    %v2469 = vld [vmem:[%s10 + $0x8] sm:$0xf]
    %v2470 = vld [vmem:[%s10 + $0xc] sm:$0xf]
    %v2471 = vld [vmem:[%s10 + $0x10] sm:$0xf]
    %v2472 = vld [vmem:[%s10 + $0x14] sm:$0xf]
    %v2473 = vld [vmem:[%s10 + $0x18] sm:$0xf]
    %v2474 = vld [vmem:[%s10 + $0x1c] sm:$0xf]
    %v2475 = vlaneseq
    %v2476 = vshrl.u32 %v2475, 7
    %v2477 = vsub.s32 6, %v2476
    %v2478 = vrot.slane %v162, %v2477
    %v2487 = vunpack.c.l.b16 %v2467
    %v2488 = vunpack.c.l.b16 %v2468
    %v2489 = vunpack.c.l.b16 %v2469
    %v2490 = vunpack.c.l.b16 %v2470
    %v2491 = vunpack.c.l.b16 %v2471
    %v2492 = vunpack.c.l.b16 %v2472
    %v2493 = vunpack.c.l.b16 %v2473
    %v2494 = vunpack.c.l.b16 %v2474
    %v2495 = vpack.c.b16 %v2488, %v2487
    %v2496 = vpack.c.b16 %v2490, %v2489
    %v2497 = vpack.c.b16 %v2492, %v2491
    %v2498 = vpack.c.b16 %v2494, %v2493
    %vm2503 = vcmask 523264
    %v2505 = vsel %vm2503, %v2466, 0
    %2507 = vmatprep.subr.bf16.mxu0 0
    %2508 = vmatpush1.bf16.msra.mxu0 %v2495
    %2509 = vmatprep.subr.bf16.mxu0 0
    %2510 = vmatpush1.bf16.msra.mxu0 %v2496
    %2511 = vmatprep.subr.bf16.mxu0 0
    %2512 = vmatpush1.bf16.msra.mxu0 %v2497
    %2513 = vmatprep.subr.bf16.mxu0 0
    %2514 = vmatpush1.bf16.msra.mxu0 %v2498
    %2515 = vmatprep.subr.bf16.mxu0 0
    %2516 = vmatpush1.bf16.msra.mxu0 0
    %2517 = vmatprep.subr.bf16.mxu0 0
    %2518 = vmatpush1.bf16.msra.mxu0 0
    %2519 = vmatprep.subr.bf16.mxu0 0
    %2520 = vmatpush1.bf16.msra.mxu0 0
    %2521 = vmatprep.subr.bf16.mxu0 0
    %2522 = vmatpush1.bf16.msra.mxu0 0
    %2523 = vmatprep.subr.bf16.mxu0 0
    %2524 = vmatpush1.bf16.msra.mxu0 0
    %2525 = vmatprep.subr.bf16.mxu0 0
    %2526 = vmatpush1.bf16.msra.mxu0 0
    %2527 = vmatprep.subr.bf16.mxu0 0
    %2528 = vmatpush1.bf16.msra.mxu0 0
    %2529 = vmatprep.subr.bf16.mxu0 0
    %2530 = vmatpush1.bf16.msra.mxu0 0
    %2531 = vmatprep.subr.bf16.mxu0 0
    %2532 = vmatpush1.bf16.msra.mxu0 0
    %2533 = vmatprep.subr.bf16.mxu0 0
    %2534 = vmatpush1.bf16.msra.mxu0 0
    %2535 = vmatprep.subr.bf16.mxu0 0
    %2536 = vmatpush1.bf16.msra.mxu0 0
    %2537 = vmatprep.subr.bf16.mxu0 0
    %2538 = vmatpush1.bf16.msra.mxu0 0
    %2539 = vmatprep.mubr.bf16.mxu0 0
    %2540 = vmatmul.mubr.bf16.gmra.mrb[0].mxu0 %v2505
    %v2541 = vpop.f32.mrb[0].mxu0
    %v2542 = vadd.f32 %v2478, %v2541
    %v2543 = vpop.f32.mrb[0].mxu0
    %v2544 = vpop.f32.mrb[0].mxu0
    %v2545 = vadd.f32 %v2478, %v2544
    %v2546 = vpop.f32.mrb[0].mxu0
    %2547 = vdwg.mxu0
    %v2548 = vadd.f32 %v2397, %v2542
    %v2549 = vadd.f32 %v2398, %v2545
    %v2550 = vsel %vm185, %v2548, 0.0
    %2551 = vadd.xlane.f32.xlu0 %v2550
    %v2552 = vpop.xlane.xlu0 %2551
    %v2553 = vsel %vm185, %v2549, 0.0
    %2554 = vadd.xlane.f32.xlu0 %v2553
    %v2555 = vpop.xlane.xlu0 %2554
    %v2556 = vmul.f32 %v2552, %v1217
    %v2557 = vmul.f32 %v2555, %v1217
    %v2558 = vsub.f32 %v2548, %v2556
    %v2559 = vsub.f32 %v2549, %v2557
    %v2560 = vmul.f32 %v2558, %v2558
    %v2561 = vmul.f32 %v2559, %v2559
    %v2562 = vsel %vm185, %v2560, 0.0
    %2563 = vadd.xlane.f32.xlu0 %v2562
    %v2564 = vpop.xlane.xlu0 %2563
    %v2565 = vsel %vm185, %v2561, 0.0
    %2566 = vadd.xlane.f32.xlu0 %v2565
    %v2567 = vpop.xlane.xlu0 %2566
    %v2568 = vmul.f32 %v2564, %v1217
    %v2569 = vmul.f32 %v2567, %v1217
    %v2570 = vadd.f32 %v2568, 1e-05
    %v2571 = vadd.f32 %v2569, 1e-05
    %v2572 = vrsqrt.pop %v2570
    %v2573 = vrsqrt.pop %v2571
    %v2574 = vmul.f32 %v2558, %v2572
    %v2575 = vmul.f32 %v2559, %v2573
    %v2576 = vlaneseq
    %v2577 = vshrl.u32 %v2576, 7
    %v2578 = vsub.s32 3, %v2577
    %v2579 = vrot.slane %v163, %v2578
    %v2580 = vmul.f32 %v2574, %v2579
    %v2581 = vmul.f32 %v2575, %v2579
    %v2582 = vlaneseq
    %v2583 = vshrl.u32 %v2582, 7
    %v2584 = vsub.s32 4, %v2583
    %v2585 = vrot.slane %v163, %v2584
    %v2586 = vadd.f32 %v2580, %v2585
    %v2587 = vadd.f32 %v2581, %v2585
    %2588 = vst.msk [vmem:[#allocation14] sm:$0xff] %vm185, %v2586
    %2589 = vst.msk [vmem:[#allocation14 + $0x8] sm:$0xff] %vm185, %v2587
    // Predicated region
    $region78: #{tpu_custom_call.1} parent=1 // pred_check
      _
    $region79: #{tpu_custom_call.1} parent=1 // pred_check_branch
      %2591 = sbr.rel (0) target = $region81
    $region80: #{tpu_custom_call.1} parent=1 // pred_region
      %s2593 = ssub.s32 256, 256
      %2594 = vsyncadd [#allocation4], %s2593
      %s2595 = sshll.u32 [#allocation14], 4
      %s2596 = int_to_ptr.vmem [resolvable:$true] %s2595
      %2601 = dma.vmem_to_hbm [thread:$0]  %s2596, 256, %s12, [#allocation4], 128, 128, 8
    $region81: #{tpu_custom_call.1} parent=1 // pred_fallthru
      _
    // Predicated region
    $region82: #{tpu_custom_call.1} parent=1 // pred_check
      _
    $region83: #{tpu_custom_call.1} parent=1 // pred_check_branch
      %2603 = sbr.rel (0) target = $region85
    $region84: #{tpu_custom_call.1} parent=1 // pred_region
      %2604 = dma.done [#allocation4], 256
    $region85: #{tpu_custom_call.1} parent=1 // pred_fallthru
      _
    %2605 = vsyncpa [#allocation3], 1
    %2606 = vsyncpa [#allocation6], 1
    %2607 = vsyncpa [#allocation9], 1
    %2608 = vsyncpa [#allocation12], 1
    %2609 = vsyncpa [#allocation4], 1

</llo_original>
